<compile_context>
chip_gen: v5e
topology: v5e:2x2
jax: 0.10.0
libtpu: 0.0.40
codegen_flags: <defaults>
</compile_context>

<pallas_src>
import jax
import jax.numpy as jnp
from jax.experimental import pallas as pl
from jax.experimental.pallas import tpu as pltpu


def _zero_halo(scr, h, w, c):
    """Zero only the 1-pixel border of a (h+2, w+2, c) scratch."""
    zrow = jnp.zeros((1, w + 2, c), scr.dtype)
    zcol = jnp.zeros((h + 2, 1, c), scr.dtype)
    scr[0:1, :, :] = zrow
    scr[h + 1:h + 2, :, :] = zrow
    scr[:, 0:1, :] = zcol
    scr[:, w + 1:w + 2, :] = zcol


def _conv3x3_from_padded(pad_scr, w_ref, h, w, cin, cout):
    """3x3 'SAME' conv from a zero-padded (h+2, w+2, cin) VMEM scratch.

    Only 3 sublane-shifted loads (one per dx); the 3 dy taps are leading-axis
    slices of the loaded value (free).  bf16 MXU matmuls, f32 accumulation.
    """
    acc = jnp.zeros((h * w, cout), jnp.float32)
    for dx in range(3):
        col = pad_scr[:, dx:dx + w, :].astype(jnp.bfloat16)      # (h+2, w, cin)
        for dy in range(3):
            patch = col[dy:dy + h].reshape(h * w, cin)           # free slice
            acc = acc + jnp.dot(patch, w_ref[dy, dx],
                                preferred_element_type=jnp.float32)
    return acc


def _resblock_kernel(x_ref, w1_ref, w2_ref, ws_ref,
                     s1_ref, b1_ref, s2_ref, b2_ref, ss_ref, bs_ref,
                     out_ref, xpad, mpad):
    # x_ref  : (1, H, W, Cin)    bf16 input block
    # w1_ref : (3, 3, Cin, Cout) bf16      w2_ref: (3, 3, Cout, Cout) bf16
    # ws_ref : (Cin, Cout)       bf16 (1x1 shortcut conv)
    # s*/b*  : (1, Cout) f32 folded BatchNorm scale / bias
    # out_ref: (1, H, W, Cout)   f32
    # xpad   : VMEM (H+2, W+2, Cin)  f32 scratch (padded input)
    # mpad   : VMEM (H+2, W+2, Cout) f32 scratch (padded intermediate)
    H, W, Cout = out_ref.shape[1], out_ref.shape[2], out_ref.shape[3]
    Cin = x_ref.shape[3]

    xv = x_ref[0]                                   # (H, W, Cin) bf16, loaded once

    # ---- conv1 (3x3, pad=1): build padded tile in VMEM, halo-only zeroing ----
    _zero_halo(xpad, H, W, Cin)
    xpad[1:H + 1, 1:W + 1, :] = xv.astype(jnp.float32)
    acc1 = _conv3x3_from_padded(xpad, w1_ref, H, W, Cin, Cout)

    # bn1 + relu   (dropout_prob = 0.0 -> identity)
    h1 = jnp.maximum(acc1 * s1_ref[...] + b1_ref[...], 0.0)

    # ---- conv2 (3x3, pad=1): single store of h1 into the padded scratch ----
    _zero_halo(mpad, H, W, Cout)
    mpad[1:H + 1, 1:W + 1, :] = h1.reshape(H, W, Cout)
    acc2 = _conv3x3_from_padded(mpad, w2_ref, H, W, Cout, Cout)
    h2 = acc2 * s2_ref[...] + b2_ref[...]

    # ---- shortcut: 1x1 conv + bn (reuses the already-loaded input) ----
    sc = jnp.dot(xv.reshape(H * W, Cin), ws_ref[...],
                 preferred_element_type=jnp.float32)
    sc = sc * ss_ref[...] + bs_ref[...]

    # ---- residual add + relu ----
    out = jnp.maximum(h2 + sc, 0.0)
    out_ref[0] = out.reshape(H, W, Cout).astype(out_ref.dtype)


def residual_block_pallas(x_nchw, params):
    """x_nchw: (N, Cin, H, W) float32. Returns (N, Cout, H, W) float32."""
    w1, w2, ws, s1, b1, s2, b2, ss, bs = params
    N, Cin, H, W = x_nchw.shape
    Cout = w1.shape[-1]

    # NHWC; bf16 activations and conv weights (accumulation stays f32 in-kernel).
    x = jnp.transpose(x_nchw, (0, 2, 3, 1)).astype(jnp.bfloat16)
    w1b = w1.astype(jnp.bfloat16)
    w2b = w2.astype(jnp.bfloat16)
    wsb = ws.astype(jnp.bfloat16)

    full = lambda shape: pl.BlockSpec(shape, lambda n: (0,) * len(shape))

    flops = 2 * N * H * W * Cout * (9 * Cin + 9 * Cout + Cin)
    bytes_accessed = (N * H * W * Cin * 2                               # x (bf16)
                      + (9 * Cin * Cout + 9 * Cout * Cout + Cin * Cout) * 2
                      + 6 * Cout * 4                                    # BN params
                      + N * H * W * Cout * 4)                           # out (f32)

    out = pl.pallas_call(
        _resblock_kernel,
        out_shape=jax.ShapeDtypeStruct((N, H, W, Cout), jnp.float32),
        grid_spec=pltpu.PrefetchScalarGridSpec(
            num_scalar_prefetch=0,
            grid=(N,),
            in_specs=[
                pl.BlockSpec((1, H, W, Cin), lambda n: (n, 0, 0, 0)),
                full((3, 3, Cin, Cout)),
                full((3, 3, Cout, Cout)),
                full((Cin, Cout)),
                full((1, Cout)), full((1, Cout)),
                full((1, Cout)), full((1, Cout)),
                full((1, Cout)), full((1, Cout)),
            ],
            out_specs=pl.BlockSpec((1, H, W, Cout), lambda n: (n, 0, 0, 0)),
            scratch_shapes=[
                pltpu.VMEM((H + 2, W + 2, Cin), jnp.float32),
                pltpu.VMEM((H + 2, W + 2, Cout), jnp.float32),
            ],
        ),
        compiler_params=pltpu.CompilerParams(
            dimension_semantics=("parallel",),
            vmem_limit_bytes=48 * 1024 * 1024),
        cost_estimate=pl.CostEstimate(flops=flops, transcendentals=0,
                                      bytes_accessed=bytes_accessed),
    )(x, w1b, w2b, wsb, s1, b1, s2, b2, ss, bs)

    return jnp.transpose(out, (0, 3, 1, 2))                             # back to NCHW


# ----------------------- parameter construction -----------------------

def make_params(key, cin, cout, eps=1e-5):
    ks = jax.random.split(key, 12)
    w1 = jax.random.normal(ks[0], (3, 3, cin, cout), jnp.float32) * 0.1   # HWIO
    w2 = jax.random.normal(ks[1], (3, 3, cout, cout), jnp.float32) * 0.1
    ws = jax.random.normal(ks[2], (cin, cout), jnp.float32) * 0.1

    def bn(k):
        k1, k2, k3, k4 = jax.random.split(k, 4)
        gamma = 1.0 + 0.1 * jax.random.normal(k1, (cout,), jnp.float32)
        beta = 0.1 * jax.random.normal(k2, (cout,), jnp.float32)
        mean = 0.1 * jax.random.normal(k3, (cout,), jnp.float32)
        var = jax.random.uniform(k4, (cout,), jnp.float32, 0.5, 1.5)
        scale = gamma / jnp.sqrt(var + eps)
        bias = beta - mean * scale
        return scale.reshape(1, cout), bias.reshape(1, cout)

    s1, b1 = bn(ks[3])
    s2, b2 = bn(ks[4])
    ss, bs = bn(ks[5])
    return (w1, w2, ws, s1, b1, s2, b2, ss, bs)


# ----------------------- pure-JAX reference -----------------------

def reference(x_nchw, params):
    w1, w2, ws, s1, b1, s2, b2, ss, bs = params
    x = jnp.transpose(x_nchw, (0, 2, 3, 1))

    def conv3x3(a, w):
        return jax.lax.conv_general_dilated(
            a, w, window_strides=(1, 1), padding="SAME",
            dimension_numbers=("NHWC", "HWIO", "NHWC"))

    h = jnp.maximum(conv3x3(x, w1) * s1 + b1, 0.0)
    h = conv3x3(h, w2) * s2 + b2
    sc = jnp.einsum("nhwc,cd->nhwd", x, ws) * ss + bs
    out = jnp.maximum(h + sc, 0.0)
    return jnp.transpose(out, (0, 3, 1, 2))


if __name__ == "__main__":
    key = jax.random.PRNGKey(0)
    k_x, k_p = jax.random.split(key)

    N, Cin, Cout, H, W = 2, 4, 8, 16, 16
    x = jax.random.normal(k_x, (N, Cin, H, W), jnp.float32)
    params = make_params(k_p, Cin, Cout)

    out = residual_block_pallas(x, params)
    out = jax.block_until_ready(out)

    ref = reference(x, params)
    assert out.shape == (N, Cout, H, W)
    # Kernel runs its matmuls in bf16 (f32 accumulation); compare against the
    # f32 reference with a tolerance covering bf16 input rounding.
    assert jnp.allclose(out, ref, atol=5e-2, rtol=5e-2), "mismatch vs reference"

    print("KERNEL_OK")
</pallas_src>

<mosaic_0001>
module attributes {stable_mosaic.version = 11 : i64} {
  func.func @_resblock_kernel(%arg0: i32, %arg1: memref<1x16x16x4xbf16, #tpu.memory_space<vmem>>, %arg2: memref<3x3x4x8xbf16, #tpu.memory_space<vmem>>, %arg3: memref<3x3x8x8xbf16, #tpu.memory_space<vmem>>, %arg4: memref<4x8xbf16, #tpu.memory_space<vmem>>, %arg5: memref<1x8xf32, #tpu.memory_space<vmem>>, %arg6: memref<1x8xf32, #tpu.memory_space<vmem>>, %arg7: memref<1x8xf32, #tpu.memory_space<vmem>>, %arg8: memref<1x8xf32, #tpu.memory_space<vmem>>, %arg9: memref<1x8xf32, #tpu.memory_space<vmem>>, %arg10: memref<1x8xf32, #tpu.memory_space<vmem>>, %arg11: memref<1x16x16x8xf32, #tpu.memory_space<vmem>>, %arg12: memref<18x18x4xf32, #tpu.memory_space<vmem>>, %arg13: memref<18x18x8xf32, #tpu.memory_space<vmem>>) attributes {dimension_semantics = [#tpu.dimension_semantics<parallel>], iteration_bounds = array<i64: 2>, scalar_prefetch = 0 : i64, scratch_operands = 2 : i64, tpu.core_type = #tpu.core_type<tc>, window_params = [{transform_indices = @transform_0, window_bounds = array<i64: 1, 16, 16, 4>}, {pipeline_mode = #tpu.pipeline_mode<synchronous>, transform_indices = @transform_1, window_bounds = array<i64: 3, 3, 4, 8>}, {pipeline_mode = #tpu.pipeline_mode<synchronous>, transform_indices = @transform_2, window_bounds = array<i64: 3, 3, 8, 8>}, {pipeline_mode = #tpu.pipeline_mode<synchronous>, transform_indices = @transform_3, window_bounds = array<i64: 4, 8>}, {pipeline_mode = #tpu.pipeline_mode<synchronous>, transform_indices = @transform_4, window_bounds = array<i64: 1, 8>}, {pipeline_mode = #tpu.pipeline_mode<synchronous>, transform_indices = @transform_5, window_bounds = array<i64: 1, 8>}, {pipeline_mode = #tpu.pipeline_mode<synchronous>, transform_indices = @transform_6, window_bounds = array<i64: 1, 8>}, {pipeline_mode = #tpu.pipeline_mode<synchronous>, transform_indices = @transform_7, window_bounds = array<i64: 1, 8>}, {pipeline_mode = #tpu.pipeline_mode<synchronous>, transform_indices = @transform_8, window_bounds = array<i64: 1, 8>}, {pipeline_mode = #tpu.pipeline_mode<synchronous>, transform_indices = @transform_9, window_bounds = array<i64: 1, 8>}, {transform_indices = @transform_10, window_bounds = array<i64: 1, 16, 16, 8>}]} {
    %c0 = arith.constant 0 : index
    %c0_0 = arith.constant 0 : index
    %c0_1 = arith.constant 0 : index
    %c0_2 = arith.constant 0 : index
    %0 = vector.load %arg1[%c0, %c0_0, %c0_1, %c0_2] : memref<1x16x16x4xbf16, #tpu.memory_space<vmem>>, vector<1x16x16x4xbf16>
    %1 = vector.shape_cast %0 : vector<1x16x16x4xbf16> to vector<16x16x4xbf16>
    %cst = arith.constant 0.000000e+00 : f32
    %2 = vector.broadcast %cst : f32 to vector<1x18x4xf32>
    %cst_3 = arith.constant 0.000000e+00 : f32
    %3 = vector.broadcast %cst_3 : f32 to vector<18x1x4xf32>
    %c0_4 = arith.constant 0 : index
    %c0_5 = arith.constant 0 : index
    %c0_6 = arith.constant 0 : index
    %4 = vector.load %arg12[%c0_4, %c0_5, %c0_6] : memref<18x18x4xf32, #tpu.memory_space<vmem>>, vector<1x18x4xf32>
    tpu.vector_store %arg12[%c0_4, %c0_5, %c0_6], %2 {strides = array<i32>} : memref<18x18x4xf32, #tpu.memory_space<vmem>>, vector<1x18x4xf32>,
    %c17 = arith.constant 17 : index
    %c0_7 = arith.constant 0 : index
    %c0_8 = arith.constant 0 : index
    %5 = vector.load %arg12[%c17, %c0_7, %c0_8] : memref<18x18x4xf32, #tpu.memory_space<vmem>>, vector<1x18x4xf32>
    tpu.vector_store %arg12[%c17, %c0_7, %c0_8], %2 {strides = array<i32>} : memref<18x18x4xf32, #tpu.memory_space<vmem>>, vector<1x18x4xf32>,
    %c0_9 = arith.constant 0 : index
    %c0_10 = arith.constant 0 : index
    %c0_11 = arith.constant 0 : index
    %6 = vector.load %arg12[%c0_9, %c0_10, %c0_11] : memref<18x18x4xf32, #tpu.memory_space<vmem>>, vector<18x1x4xf32>
    tpu.vector_store %arg12[%c0_9, %c0_10, %c0_11], %3 {strides = array<i32>} : memref<18x18x4xf32, #tpu.memory_space<vmem>>, vector<18x1x4xf32>,
    %c0_12 = arith.constant 0 : index
    %c17_13 = arith.constant 17 : index
    %c0_14 = arith.constant 0 : index
    %7 = vector.load %arg12[%c0_12, %c17_13, %c0_14] : memref<18x18x4xf32, #tpu.memory_space<vmem>>, vector<18x1x4xf32>
    tpu.vector_store %arg12[%c0_12, %c17_13, %c0_14], %3 {strides = array<i32>} : memref<18x18x4xf32, #tpu.memory_space<vmem>>, vector<18x1x4xf32>,
    %8 = arith.extf %1 : vector<16x16x4xbf16> to vector<16x16x4xf32>
    %c1 = arith.constant 1 : index
    %c1_15 = arith.constant 1 : index
    %c0_16 = arith.constant 0 : index
    %9 = vector.load %arg12[%c1, %c1_15, %c0_16] : memref<18x18x4xf32, #tpu.memory_space<vmem>>, vector<16x16x4xf32>
    tpu.vector_store %arg12[%c1, %c1_15, %c0_16], %8 {strides = array<i32>} : memref<18x18x4xf32, #tpu.memory_space<vmem>>, vector<16x16x4xf32>,
    %cst_17 = arith.constant 0.000000e+00 : f32
    %10 = vector.broadcast %cst_17 : f32 to vector<256x8xf32>
    %c0_18 = arith.constant 0 : index
    %c0_19 = arith.constant 0 : index
    %c0_20 = arith.constant 0 : index
    %11 = vector.load %arg12[%c0_18, %c0_19, %c0_20] : memref<18x18x4xf32, #tpu.memory_space<vmem>>, vector<18x16x4xf32>
    %12 = arith.truncf %11 : vector<18x16x4xf32> to vector<18x16x4xbf16>
    %13 = vector.extract_strided_slice %12 {offsets = [0, 0, 0], sizes = [16, 16, 4], strides = [1, 1, 1]} : vector<18x16x4xbf16> to vector<16x16x4xbf16>
    %14 = vector.shape_cast %13 : vector<16x16x4xbf16> to vector<256x4xbf16>
    %c0_21 = arith.constant 0 : index
    %c0_22 = arith.constant 0 : index
    %c0_23 = arith.constant 0 : index
    %c0_24 = arith.constant 0 : index
    %15 = vector.load %arg2[%c0_21, %c0_22, %c0_23, %c0_24] : memref<3x3x4x8xbf16, #tpu.memory_space<vmem>>, vector<1x1x4x8xbf16>
    %16 = vector.shape_cast %15 : vector<1x1x4x8xbf16> to vector<4x8xbf16>
    %cst_25 = arith.constant dense<0.000000e+00> : vector<256x8xf32>
    %17 = tpu.matmul %14, %16, %cst_25 {dimension_numbers = #tpu.dot_dimension_numbers<[1], [0], [0], [1], [0, 0, 1, 1], [], []>} : vector<256x4xbf16>, vector<4x8xbf16>, vector<256x8xf32> -> vector<256x8xf32>
    %18 = arith.addf %10, %17 : vector<256x8xf32>
    %19 = vector.extract_strided_slice %12 {offsets = [1, 0, 0], sizes = [16, 16, 4], strides = [1, 1, 1]} : vector<18x16x4xbf16> to vector<16x16x4xbf16>
    %20 = vector.shape_cast %19 : vector<16x16x4xbf16> to vector<256x4xbf16>
    %c1_26 = arith.constant 1 : index
    %c0_27 = arith.constant 0 : index
    %c0_28 = arith.constant 0 : index
    %c0_29 = arith.constant 0 : index
    %21 = vector.load %arg2[%c1_26, %c0_27, %c0_28, %c0_29] : memref<3x3x4x8xbf16, #tpu.memory_space<vmem>>, vector<1x1x4x8xbf16>
    %22 = vector.shape_cast %21 : vector<1x1x4x8xbf16> to vector<4x8xbf16>
    %cst_30 = arith.constant dense<0.000000e+00> : vector<256x8xf32>
    %23 = tpu.matmul %20, %22, %cst_30 {dimension_numbers = #tpu.dot_dimension_numbers<[1], [0], [0], [1], [0, 0, 1, 1], [], []>} : vector<256x4xbf16>, vector<4x8xbf16>, vector<256x8xf32> -> vector<256x8xf32>
    %24 = arith.addf %18, %23 : vector<256x8xf32>
    %25 = vector.extract_strided_slice %12 {offsets = [2, 0, 0], sizes = [16, 16, 4], strides = [1, 1, 1]} : vector<18x16x4xbf16> to vector<16x16x4xbf16>
    %26 = vector.shape_cast %25 : vector<16x16x4xbf16> to vector<256x4xbf16>
    %c2 = arith.constant 2 : index
    %c0_31 = arith.constant 0 : index
    %c0_32 = arith.constant 0 : index
    %c0_33 = arith.constant 0 : index
    %27 = vector.load %arg2[%c2, %c0_31, %c0_32, %c0_33] : memref<3x3x4x8xbf16, #tpu.memory_space<vmem>>, vector<1x1x4x8xbf16>
    %28 = vector.shape_cast %27 : vector<1x1x4x8xbf16> to vector<4x8xbf16>
    %cst_34 = arith.constant dense<0.000000e+00> : vector<256x8xf32>
    %29 = tpu.matmul %26, %28, %cst_34 {dimension_numbers = #tpu.dot_dimension_numbers<[1], [0], [0], [1], [0, 0, 1, 1], [], []>} : vector<256x4xbf16>, vector<4x8xbf16>, vector<256x8xf32> -> vector<256x8xf32>
    %30 = arith.addf %24, %29 : vector<256x8xf32>
    %c0_35 = arith.constant 0 : index
    %c1_36 = arith.constant 1 : index
    %c0_37 = arith.constant 0 : index
    %31 = vector.load %arg12[%c0_35, %c1_36, %c0_37] : memref<18x18x4xf32, #tpu.memory_space<vmem>>, vector<18x16x4xf32>
    %32 = arith.truncf %31 : vector<18x16x4xf32> to vector<18x16x4xbf16>
    %33 = vector.extract_strided_slice %32 {offsets = [0, 0, 0], sizes = [16, 16, 4], strides = [1, 1, 1]} : vector<18x16x4xbf16> to vector<16x16x4xbf16>
    %34 = vector.shape_cast %33 : vector<16x16x4xbf16> to vector<256x4xbf16>
    %c0_38 = arith.constant 0 : index
    %c1_39 = arith.constant 1 : index
    %c0_40 = arith.constant 0 : index
    %c0_41 = arith.constant 0 : index
    %35 = vector.load %arg2[%c0_38, %c1_39, %c0_40, %c0_41] : memref<3x3x4x8xbf16, #tpu.memory_space<vmem>>, vector<1x1x4x8xbf16>
    %36 = vector.shape_cast %35 : vector<1x1x4x8xbf16> to vector<4x8xbf16>
    %cst_42 = arith.constant dense<0.000000e+00> : vector<256x8xf32>
    %37 = tpu.matmul %34, %36, %cst_42 {dimension_numbers = #tpu.dot_dimension_numbers<[1], [0], [0], [1], [0, 0, 1, 1], [], []>} : vector<256x4xbf16>, vector<4x8xbf16>, vector<256x8xf32> -> vector<256x8xf32>
    %38 = arith.addf %30, %37 : vector<256x8xf32>
    %39 = vector.extract_strided_slice %32 {offsets = [1, 0, 0], sizes = [16, 16, 4], strides = [1, 1, 1]} : vector<18x16x4xbf16> to vector<16x16x4xbf16>
    %40 = vector.shape_cast %39 : vector<16x16x4xbf16> to vector<256x4xbf16>
    %c1_43 = arith.constant 1 : index
    %c1_44 = arith.constant 1 : index
    %c0_45 = arith.constant 0 : index
    %c0_46 = arith.constant 0 : index
    %41 = vector.load %arg2[%c1_43, %c1_44, %c0_45, %c0_46] : memref<3x3x4x8xbf16, #tpu.memory_space<vmem>>, vector<1x1x4x8xbf16>
    %42 = vector.shape_cast %41 : vector<1x1x4x8xbf16> to vector<4x8xbf16>
    %cst_47 = arith.constant dense<0.000000e+00> : vector<256x8xf32>
    %43 = tpu.matmul %40, %42, %cst_47 {dimension_numbers = #tpu.dot_dimension_numbers<[1], [0], [0], [1], [0, 0, 1, 1], [], []>} : vector<256x4xbf16>, vector<4x8xbf16>, vector<256x8xf32> -> vector<256x8xf32>
    %44 = arith.addf %38, %43 : vector<256x8xf32>
    %45 = vector.extract_strided_slice %32 {offsets = [2, 0, 0], sizes = [16, 16, 4], strides = [1, 1, 1]} : vector<18x16x4xbf16> to vector<16x16x4xbf16>
    %46 = vector.shape_cast %45 : vector<16x16x4xbf16> to vector<256x4xbf16>
    %c2_48 = arith.constant 2 : index
    %c1_49 = arith.constant 1 : index
    %c0_50 = arith.constant 0 : index
    %c0_51 = arith.constant 0 : index
    %47 = vector.load %arg2[%c2_48, %c1_49, %c0_50, %c0_51] : memref<3x3x4x8xbf16, #tpu.memory_space<vmem>>, vector<1x1x4x8xbf16>
    %48 = vector.shape_cast %47 : vector<1x1x4x8xbf16> to vector<4x8xbf16>
    %cst_52 = arith.constant dense<0.000000e+00> : vector<256x8xf32>
    %49 = tpu.matmul %46, %48, %cst_52 {dimension_numbers = #tpu.dot_dimension_numbers<[1], [0], [0], [1], [0, 0, 1, 1], [], []>} : vector<256x4xbf16>, vector<4x8xbf16>, vector<256x8xf32> -> vector<256x8xf32>
    %50 = arith.addf %44, %49 : vector<256x8xf32>
    %c0_53 = arith.constant 0 : index
    %c2_54 = arith.constant 2 : index
    %c0_55 = arith.constant 0 : index
    %51 = vector.load %arg12[%c0_53, %c2_54, %c0_55] : memref<18x18x4xf32, #tpu.memory_space<vmem>>, vector<18x16x4xf32>
    %52 = arith.truncf %51 : vector<18x16x4xf32> to vector<18x16x4xbf16>
    %53 = vector.extract_strided_slice %52 {offsets = [0, 0, 0], sizes = [16, 16, 4], strides = [1, 1, 1]} : vector<18x16x4xbf16> to vector<16x16x4xbf16>
    %54 = vector.shape_cast %53 : vector<16x16x4xbf16> to vector<256x4xbf16>
    %c0_56 = arith.constant 0 : index
    %c2_57 = arith.constant 2 : index
    %c0_58 = arith.constant 0 : index
    %c0_59 = arith.constant 0 : index
    %55 = vector.load %arg2[%c0_56, %c2_57, %c0_58, %c0_59] : memref<3x3x4x8xbf16, #tpu.memory_space<vmem>>, vector<1x1x4x8xbf16>
    %56 = vector.shape_cast %55 : vector<1x1x4x8xbf16> to vector<4x8xbf16>
    %cst_60 = arith.constant dense<0.000000e+00> : vector<256x8xf32>
    %57 = tpu.matmul %54, %56, %cst_60 {dimension_numbers = #tpu.dot_dimension_numbers<[1], [0], [0], [1], [0, 0, 1, 1], [], []>} : vector<256x4xbf16>, vector<4x8xbf16>, vector<256x8xf32> -> vector<256x8xf32>
    %58 = arith.addf %50, %57 : vector<256x8xf32>
    %59 = vector.extract_strided_slice %52 {offsets = [1, 0, 0], sizes = [16, 16, 4], strides = [1, 1, 1]} : vector<18x16x4xbf16> to vector<16x16x4xbf16>
    %60 = vector.shape_cast %59 : vector<16x16x4xbf16> to vector<256x4xbf16>
    %c1_61 = arith.constant 1 : index
    %c2_62 = arith.constant 2 : index
    %c0_63 = arith.constant 0 : index
    %c0_64 = arith.constant 0 : index
    %61 = vector.load %arg2[%c1_61, %c2_62, %c0_63, %c0_64] : memref<3x3x4x8xbf16, #tpu.memory_space<vmem>>, vector<1x1x4x8xbf16>
    %62 = vector.shape_cast %61 : vector<1x1x4x8xbf16> to vector<4x8xbf16>
    %cst_65 = arith.constant dense<0.000000e+00> : vector<256x8xf32>
    %63 = tpu.matmul %60, %62, %cst_65 {dimension_numbers = #tpu.dot_dimension_numbers<[1], [0], [0], [1], [0, 0, 1, 1], [], []>} : vector<256x4xbf16>, vector<4x8xbf16>, vector<256x8xf32> -> vector<256x8xf32>
    %64 = arith.addf %58, %63 : vector<256x8xf32>
    %65 = vector.extract_strided_slice %52 {offsets = [2, 0, 0], sizes = [16, 16, 4], strides = [1, 1, 1]} : vector<18x16x4xbf16> to vector<16x16x4xbf16>
    %66 = vector.shape_cast %65 : vector<16x16x4xbf16> to vector<256x4xbf16>
    %c2_66 = arith.constant 2 : index
    %c2_67 = arith.constant 2 : index
    %c0_68 = arith.constant 0 : index
    %c0_69 = arith.constant 0 : index
    %67 = vector.load %arg2[%c2_66, %c2_67, %c0_68, %c0_69] : memref<3x3x4x8xbf16, #tpu.memory_space<vmem>>, vector<1x1x4x8xbf16>
    %68 = vector.shape_cast %67 : vector<1x1x4x8xbf16> to vector<4x8xbf16>
    %cst_70 = arith.constant dense<0.000000e+00> : vector<256x8xf32>
    %69 = tpu.matmul %66, %68, %cst_70 {dimension_numbers = #tpu.dot_dimension_numbers<[1], [0], [0], [1], [0, 0, 1, 1], [], []>} : vector<256x4xbf16>, vector<4x8xbf16>, vector<256x8xf32> -> vector<256x8xf32>
    %70 = arith.addf %64, %69 : vector<256x8xf32>
    %c0_71 = arith.constant 0 : index
    %c0_72 = arith.constant 0 : index
    %71 = vector.load %arg5[%c0_71, %c0_72] : memref<1x8xf32, #tpu.memory_space<vmem>>, vector<1x8xf32>
    %72 = vector.broadcast %71 : vector<1x8xf32> to vector<256x8xf32>
    %73 = arith.mulf %70, %72 : vector<256x8xf32>
    %c0_73 = arith.constant 0 : index
    %c0_74 = arith.constant 0 : index
    %74 = vector.load %arg6[%c0_73, %c0_74] : memref<1x8xf32, #tpu.memory_space<vmem>>, vector<1x8xf32>
    %75 = vector.broadcast %74 : vector<1x8xf32> to vector<256x8xf32>
    %76 = arith.addf %73, %75 : vector<256x8xf32>
    %cst_75 = arith.constant 0.000000e+00 : f32
    %77 = vector.broadcast %cst_75 : f32 to vector<256x8xf32>
    %78 = arith.maximumf %76, %77 : vector<256x8xf32>
    %cst_76 = arith.constant 0.000000e+00 : f32
    %79 = vector.broadcast %cst_76 : f32 to vector<1x18x8xf32>
    %cst_77 = arith.constant 0.000000e+00 : f32
    %80 = vector.broadcast %cst_77 : f32 to vector<18x1x8xf32>
    %c0_78 = arith.constant 0 : index
    %c0_79 = arith.constant 0 : index
    %c0_80 = arith.constant 0 : index
    %81 = vector.load %arg13[%c0_78, %c0_79, %c0_80] : memref<18x18x8xf32, #tpu.memory_space<vmem>>, vector<1x18x8xf32>
    tpu.vector_store %arg13[%c0_78, %c0_79, %c0_80], %79 {strides = array<i32>} : memref<18x18x8xf32, #tpu.memory_space<vmem>>, vector<1x18x8xf32>,
    %c17_81 = arith.constant 17 : index
    %c0_82 = arith.constant 0 : index
    %c0_83 = arith.constant 0 : index
    %82 = vector.load %arg13[%c17_81, %c0_82, %c0_83] : memref<18x18x8xf32, #tpu.memory_space<vmem>>, vector<1x18x8xf32>
    tpu.vector_store %arg13[%c17_81, %c0_82, %c0_83], %79 {strides = array<i32>} : memref<18x18x8xf32, #tpu.memory_space<vmem>>, vector<1x18x8xf32>,
    %c0_84 = arith.constant 0 : index
    %c0_85 = arith.constant 0 : index
    %c0_86 = arith.constant 0 : index
    %83 = vector.load %arg13[%c0_84, %c0_85, %c0_86] : memref<18x18x8xf32, #tpu.memory_space<vmem>>, vector<18x1x8xf32>
    tpu.vector_store %arg13[%c0_84, %c0_85, %c0_86], %80 {strides = array<i32>} : memref<18x18x8xf32, #tpu.memory_space<vmem>>, vector<18x1x8xf32>,
    %c0_87 = arith.constant 0 : index
    %c17_88 = arith.constant 17 : index
    %c0_89 = arith.constant 0 : index
    %84 = vector.load %arg13[%c0_87, %c17_88, %c0_89] : memref<18x18x8xf32, #tpu.memory_space<vmem>>, vector<18x1x8xf32>
    tpu.vector_store %arg13[%c0_87, %c17_88, %c0_89], %80 {strides = array<i32>} : memref<18x18x8xf32, #tpu.memory_space<vmem>>, vector<18x1x8xf32>,
    %85 = vector.shape_cast %78 : vector<256x8xf32> to vector<16x16x8xf32>
    %c1_90 = arith.constant 1 : index
    %c1_91 = arith.constant 1 : index
    %c0_92 = arith.constant 0 : index
    %86 = vector.load %arg13[%c1_90, %c1_91, %c0_92] : memref<18x18x8xf32, #tpu.memory_space<vmem>>, vector<16x16x8xf32>
    tpu.vector_store %arg13[%c1_90, %c1_91, %c0_92], %85 {strides = array<i32>} : memref<18x18x8xf32, #tpu.memory_space<vmem>>, vector<16x16x8xf32>,
    %cst_93 = arith.constant 0.000000e+00 : f32
    %87 = vector.broadcast %cst_93 : f32 to vector<256x8xf32>
    %c0_94 = arith.constant 0 : index
    %c0_95 = arith.constant 0 : index
    %c0_96 = arith.constant 0 : index
    %88 = vector.load %arg13[%c0_94, %c0_95, %c0_96] : memref<18x18x8xf32, #tpu.memory_space<vmem>>, vector<18x16x8xf32>
    %89 = arith.truncf %88 : vector<18x16x8xf32> to vector<18x16x8xbf16>
    %90 = vector.extract_strided_slice %89 {offsets = [0, 0, 0], sizes = [16, 16, 8], strides = [1, 1, 1]} : vector<18x16x8xbf16> to vector<16x16x8xbf16>
    %91 = vector.shape_cast %90 : vector<16x16x8xbf16> to vector<256x8xbf16>
    %c0_97 = arith.constant 0 : index
    %c0_98 = arith.constant 0 : index
    %c0_99 = arith.constant 0 : index
    %c0_100 = arith.constant 0 : index
    %92 = vector.load %arg3[%c0_97, %c0_98, %c0_99, %c0_100] : memref<3x3x8x8xbf16, #tpu.memory_space<vmem>>, vector<1x1x8x8xbf16>
    %93 = vector.shape_cast %92 : vector<1x1x8x8xbf16> to vector<8x8xbf16>
    %cst_101 = arith.constant dense<0.000000e+00> : vector<256x8xf32>
    %94 = tpu.matmul %91, %93, %cst_101 {dimension_numbers = #tpu.dot_dimension_numbers<[1], [0], [0], [1], [0, 0, 1, 1], [], []>} : vector<256x8xbf16>, vector<8x8xbf16>, vector<256x8xf32> -> vector<256x8xf32>
    %95 = arith.addf %87, %94 : vector<256x8xf32>
    %96 = vector.extract_strided_slice %89 {offsets = [1, 0, 0], sizes = [16, 16, 8], strides = [1, 1, 1]} : vector<18x16x8xbf16> to vector<16x16x8xbf16>
    %97 = vector.shape_cast %96 : vector<16x16x8xbf16> to vector<256x8xbf16>
    %c1_102 = arith.constant 1 : index
    %c0_103 = arith.constant 0 : index
    %c0_104 = arith.constant 0 : index
    %c0_105 = arith.constant 0 : index
    %98 = vector.load %arg3[%c1_102, %c0_103, %c0_104, %c0_105] : memref<3x3x8x8xbf16, #tpu.memory_space<vmem>>, vector<1x1x8x8xbf16>
    %99 = vector.shape_cast %98 : vector<1x1x8x8xbf16> to vector<8x8xbf16>
    %cst_106 = arith.constant dense<0.000000e+00> : vector<256x8xf32>
    %100 = tpu.matmul %97, %99, %cst_106 {dimension_numbers = #tpu.dot_dimension_numbers<[1], [0], [0], [1], [0, 0, 1, 1], [], []>} : vector<256x8xbf16>, vector<8x8xbf16>, vector<256x8xf32> -> vector<256x8xf32>
    %101 = arith.addf %95, %100 : vector<256x8xf32>
    %102 = vector.extract_strided_slice %89 {offsets = [2, 0, 0], sizes = [16, 16, 8], strides = [1, 1, 1]} : vector<18x16x8xbf16> to vector<16x16x8xbf16>
    %103 = vector.shape_cast %102 : vector<16x16x8xbf16> to vector<256x8xbf16>
    %c2_107 = arith.constant 2 : index
    %c0_108 = arith.constant 0 : index
    %c0_109 = arith.constant 0 : index
    %c0_110 = arith.constant 0 : index
    %104 = vector.load %arg3[%c2_107, %c0_108, %c0_109, %c0_110] : memref<3x3x8x8xbf16, #tpu.memory_space<vmem>>, vector<1x1x8x8xbf16>
    %105 = vector.shape_cast %104 : vector<1x1x8x8xbf16> to vector<8x8xbf16>
    %cst_111 = arith.constant dense<0.000000e+00> : vector<256x8xf32>
    %106 = tpu.matmul %103, %105, %cst_111 {dimension_numbers = #tpu.dot_dimension_numbers<[1], [0], [0], [1], [0, 0, 1, 1], [], []>} : vector<256x8xbf16>, vector<8x8xbf16>, vector<256x8xf32> -> vector<256x8xf32>
    %107 = arith.addf %101, %106 : vector<256x8xf32>
    %c0_112 = arith.constant 0 : index
    %c1_113 = arith.constant 1 : index
    %c0_114 = arith.constant 0 : index
    %108 = vector.load %arg13[%c0_112, %c1_113, %c0_114] : memref<18x18x8xf32, #tpu.memory_space<vmem>>, vector<18x16x8xf32>
    %109 = arith.truncf %108 : vector<18x16x8xf32> to vector<18x16x8xbf16>
    %110 = vector.extract_strided_slice %109 {offsets = [0, 0, 0], sizes = [16, 16, 8], strides = [1, 1, 1]} : vector<18x16x8xbf16> to vector<16x16x8xbf16>
    %111 = vector.shape_cast %110 : vector<16x16x8xbf16> to vector<256x8xbf16>
    %c0_115 = arith.constant 0 : index
    %c1_116 = arith.constant 1 : index
    %c0_117 = arith.constant 0 : index
    %c0_118 = arith.constant 0 : index
    %112 = vector.load %arg3[%c0_115, %c1_116, %c0_117, %c0_118] : memref<3x3x8x8xbf16, #tpu.memory_space<vmem>>, vector<1x1x8x8xbf16>
    %113 = vector.shape_cast %112 : vector<1x1x8x8xbf16> to vector<8x8xbf16>
    %cst_119 = arith.constant dense<0.000000e+00> : vector<256x8xf32>
    %114 = tpu.matmul %111, %113, %cst_119 {dimension_numbers = #tpu.dot_dimension_numbers<[1], [0], [0], [1], [0, 0, 1, 1], [], []>} : vector<256x8xbf16>, vector<8x8xbf16>, vector<256x8xf32> -> vector<256x8xf32>
    %115 = arith.addf %107, %114 : vector<256x8xf32>
    %116 = vector.extract_strided_slice %109 {offsets = [1, 0, 0], sizes = [16, 16, 8], strides = [1, 1, 1]} : vector<18x16x8xbf16> to vector<16x16x8xbf16>
    %117 = vector.shape_cast %116 : vector<16x16x8xbf16> to vector<256x8xbf16>
    %c1_120 = arith.constant 1 : index
    %c1_121 = arith.constant 1 : index
    %c0_122 = arith.constant 0 : index
    %c0_123 = arith.constant 0 : index
    %118 = vector.load %arg3[%c1_120, %c1_121, %c0_122, %c0_123] : memref<3x3x8x8xbf16, #tpu.memory_space<vmem>>, vector<1x1x8x8xbf16>
    %119 = vector.shape_cast %118 : vector<1x1x8x8xbf16> to vector<8x8xbf16>
    %cst_124 = arith.constant dense<0.000000e+00> : vector<256x8xf32>
    %120 = tpu.matmul %117, %119, %cst_124 {dimension_numbers = #tpu.dot_dimension_numbers<[1], [0], [0], [1], [0, 0, 1, 1], [], []>} : vector<256x8xbf16>, vector<8x8xbf16>, vector<256x8xf32> -> vector<256x8xf32>
    %121 = arith.addf %115, %120 : vector<256x8xf32>
    %122 = vector.extract_strided_slice %109 {offsets = [2, 0, 0], sizes = [16, 16, 8], strides = [1, 1, 1]} : vector<18x16x8xbf16> to vector<16x16x8xbf16>
    %123 = vector.shape_cast %122 : vector<16x16x8xbf16> to vector<256x8xbf16>
    %c2_125 = arith.constant 2 : index
    %c1_126 = arith.constant 1 : index
    %c0_127 = arith.constant 0 : index
    %c0_128 = arith.constant 0 : index
    %124 = vector.load %arg3[%c2_125, %c1_126, %c0_127, %c0_128] : memref<3x3x8x8xbf16, #tpu.memory_space<vmem>>, vector<1x1x8x8xbf16>
    %125 = vector.shape_cast %124 : vector<1x1x8x8xbf16> to vector<8x8xbf16>
    %cst_129 = arith.constant dense<0.000000e+00> : vector<256x8xf32>
    %126 = tpu.matmul %123, %125, %cst_129 {dimension_numbers = #tpu.dot_dimension_numbers<[1], [0], [0], [1], [0, 0, 1, 1], [], []>} : vector<256x8xbf16>, vector<8x8xbf16>, vector<256x8xf32> -> vector<256x8xf32>
    %127 = arith.addf %121, %126 : vector<256x8xf32>
    %c0_130 = arith.constant 0 : index
    %c2_131 = arith.constant 2 : index
    %c0_132 = arith.constant 0 : index
    %128 = vector.load %arg13[%c0_130, %c2_131, %c0_132] : memref<18x18x8xf32, #tpu.memory_space<vmem>>, vector<18x16x8xf32>
    %129 = arith.truncf %128 : vector<18x16x8xf32> to vector<18x16x8xbf16>
    %130 = vector.extract_strided_slice %129 {offsets = [0, 0, 0], sizes = [16, 16, 8], strides = [1, 1, 1]} : vector<18x16x8xbf16> to vector<16x16x8xbf16>
    %131 = vector.shape_cast %130 : vector<16x16x8xbf16> to vector<256x8xbf16>
    %c0_133 = arith.constant 0 : index
    %c2_134 = arith.constant 2 : index
    %c0_135 = arith.constant 0 : index
    %c0_136 = arith.constant 0 : index
    %132 = vector.load %arg3[%c0_133, %c2_134, %c0_135, %c0_136] : memref<3x3x8x8xbf16, #tpu.memory_space<vmem>>, vector<1x1x8x8xbf16>
    %133 = vector.shape_cast %132 : vector<1x1x8x8xbf16> to vector<8x8xbf16>
    %cst_137 = arith.constant dense<0.000000e+00> : vector<256x8xf32>
    %134 = tpu.matmul %131, %133, %cst_137 {dimension_numbers = #tpu.dot_dimension_numbers<[1], [0], [0], [1], [0, 0, 1, 1], [], []>} : vector<256x8xbf16>, vector<8x8xbf16>, vector<256x8xf32> -> vector<256x8xf32>
    %135 = arith.addf %127, %134 : vector<256x8xf32>
    %136 = vector.extract_strided_slice %129 {offsets = [1, 0, 0], sizes = [16, 16, 8], strides = [1, 1, 1]} : vector<18x16x8xbf16> to vector<16x16x8xbf16>
    %137 = vector.shape_cast %136 : vector<16x16x8xbf16> to vector<256x8xbf16>
    %c1_138 = arith.constant 1 : index
    %c2_139 = arith.constant 2 : index
    %c0_140 = arith.constant 0 : index
    %c0_141 = arith.constant 0 : index
    %138 = vector.load %arg3[%c1_138, %c2_139, %c0_140, %c0_141] : memref<3x3x8x8xbf16, #tpu.memory_space<vmem>>, vector<1x1x8x8xbf16>
    %139 = vector.shape_cast %138 : vector<1x1x8x8xbf16> to vector<8x8xbf16>
    %cst_142 = arith.constant dense<0.000000e+00> : vector<256x8xf32>
    %140 = tpu.matmul %137, %139, %cst_142 {dimension_numbers = #tpu.dot_dimension_numbers<[1], [0], [0], [1], [0, 0, 1, 1], [], []>} : vector<256x8xbf16>, vector<8x8xbf16>, vector<256x8xf32> -> vector<256x8xf32>
    %141 = arith.addf %135, %140 : vector<256x8xf32>
    %142 = vector.extract_strided_slice %129 {offsets = [2, 0, 0], sizes = [16, 16, 8], strides = [1, 1, 1]} : vector<18x16x8xbf16> to vector<16x16x8xbf16>
    %143 = vector.shape_cast %142 : vector<16x16x8xbf16> to vector<256x8xbf16>
    %c2_143 = arith.constant 2 : index
    %c2_144 = arith.constant 2 : index
    %c0_145 = arith.constant 0 : index
    %c0_146 = arith.constant 0 : index
    %144 = vector.load %arg3[%c2_143, %c2_144, %c0_145, %c0_146] : memref<3x3x8x8xbf16, #tpu.memory_space<vmem>>, vector<1x1x8x8xbf16>
    %145 = vector.shape_cast %144 : vector<1x1x8x8xbf16> to vector<8x8xbf16>
    %cst_147 = arith.constant dense<0.000000e+00> : vector<256x8xf32>
    %146 = tpu.matmul %143, %145, %cst_147 {dimension_numbers = #tpu.dot_dimension_numbers<[1], [0], [0], [1], [0, 0, 1, 1], [], []>} : vector<256x8xbf16>, vector<8x8xbf16>, vector<256x8xf32> -> vector<256x8xf32>
    %147 = arith.addf %141, %146 : vector<256x8xf32>
    %c0_148 = arith.constant 0 : index
    %c0_149 = arith.constant 0 : index
    %148 = vector.load %arg7[%c0_148, %c0_149] : memref<1x8xf32, #tpu.memory_space<vmem>>, vector<1x8xf32>
    %149 = vector.broadcast %148 : vector<1x8xf32> to vector<256x8xf32>
    %150 = arith.mulf %147, %149 : vector<256x8xf32>
    %c0_150 = arith.constant 0 : index
    %c0_151 = arith.constant 0 : index
    %151 = vector.load %arg8[%c0_150, %c0_151] : memref<1x8xf32, #tpu.memory_space<vmem>>, vector<1x8xf32>
    %152 = vector.broadcast %151 : vector<1x8xf32> to vector<256x8xf32>
    %153 = arith.addf %150, %152 : vector<256x8xf32>
    %154 = vector.shape_cast %1 : vector<16x16x4xbf16> to vector<256x4xbf16>
    %c0_152 = arith.constant 0 : index
    %c0_153 = arith.constant 0 : index
    %155 = vector.load %arg4[%c0_152, %c0_153] : memref<4x8xbf16, #tpu.memory_space<vmem>>, vector<4x8xbf16>
    %cst_154 = arith.constant dense<0.000000e+00> : vector<256x8xf32>
    %156 = tpu.matmul %154, %155, %cst_154 {dimension_numbers = #tpu.dot_dimension_numbers<[1], [0], [0], [1], [0, 0, 1, 1], [], []>} : vector<256x4xbf16>, vector<4x8xbf16>, vector<256x8xf32> -> vector<256x8xf32>
    %c0_155 = arith.constant 0 : index
    %c0_156 = arith.constant 0 : index
    %157 = vector.load %arg9[%c0_155, %c0_156] : memref<1x8xf32, #tpu.memory_space<vmem>>, vector<1x8xf32>
    %158 = vector.broadcast %157 : vector<1x8xf32> to vector<256x8xf32>
    %159 = arith.mulf %156, %158 : vector<256x8xf32>
    %c0_157 = arith.constant 0 : index
    %c0_158 = arith.constant 0 : index
    %160 = vector.load %arg10[%c0_157, %c0_158] : memref<1x8xf32, #tpu.memory_space<vmem>>, vector<1x8xf32>
    %161 = vector.broadcast %160 : vector<1x8xf32> to vector<256x8xf32>
    %162 = arith.addf %159, %161 : vector<256x8xf32>
    %163 = arith.addf %153, %162 : vector<256x8xf32>
    %cst_159 = arith.constant 0.000000e+00 : f32
    %164 = vector.broadcast %cst_159 : f32 to vector<256x8xf32>
    %165 = arith.maximumf %163, %164 : vector<256x8xf32>
    %166 = vector.shape_cast %165 : vector<256x8xf32> to vector<16x16x8xf32>
    %c0_160 = arith.constant 0 : index
    %c0_161 = arith.constant 0 : index
    %c0_162 = arith.constant 0 : index
    %c0_163 = arith.constant 0 : index
    %167 = vector.load %arg11[%c0_160, %c0_161, %c0_162, %c0_163] : memref<1x16x16x8xf32, #tpu.memory_space<vmem>>, vector<1x16x16x8xf32>
    %168 = vector.shape_cast %167 : vector<1x16x16x8xf32> to vector<16x16x8xf32>
    %169 = vector.shape_cast %166 : vector<16x16x8xf32> to vector<1x16x16x8xf32>
    tpu.vector_store %arg11[%c0_160, %c0_161, %c0_162, %c0_163], %169 {strides = array<i32>} : memref<1x16x16x8xf32, #tpu.memory_space<vmem>>, vector<1x16x16x8xf32>,
    return
  }
  func.func @transform_0(%arg0: i32) -> (i32, i32, i32, i32) {
    %c0_i32 = arith.constant 0 : i32
    %c0_i32_0 = arith.constant 0 : i32
    %c0_i32_1 = arith.constant 0 : i32
    %c0_i32_2 = arith.constant 0 : i32
    return %arg0, %c0_i32, %c0_i32_0, %c0_i32_1 : i32, i32, i32, i32
  }
  func.func @transform_1(%arg0: i32) -> (i32, i32, i32, i32) {
    %c0_i32 = arith.constant 0 : i32
    %c0_i32_0 = arith.constant 0 : i32
    %c0_i32_1 = arith.constant 0 : i32
    %c0_i32_2 = arith.constant 0 : i32
    %c0_i32_3 = arith.constant 0 : i32
    return %c0_i32, %c0_i32_0, %c0_i32_1, %c0_i32_2 : i32, i32, i32, i32
  }
  func.func @transform_2(%arg0: i32) -> (i32, i32, i32, i32) {
    %c0_i32 = arith.constant 0 : i32
    %c0_i32_0 = arith.constant 0 : i32
    %c0_i32_1 = arith.constant 0 : i32
    %c0_i32_2 = arith.constant 0 : i32
    %c0_i32_3 = arith.constant 0 : i32
    return %c0_i32, %c0_i32_0, %c0_i32_1, %c0_i32_2 : i32, i32, i32, i32
  }
  func.func @transform_3(%arg0: i32) -> (i32, i32) {
    %c0_i32 = arith.constant 0 : i32
    %c0_i32_0 = arith.constant 0 : i32
    %c0_i32_1 = arith.constant 0 : i32
    return %c0_i32, %c0_i32_0 : i32, i32
  }
  func.func @transform_4(%arg0: i32) -> (i32, i32) {
    %c0_i32 = arith.constant 0 : i32
    %c0_i32_0 = arith.constant 0 : i32
    %c0_i32_1 = arith.constant 0 : i32
    return %c0_i32, %c0_i32_0 : i32, i32
  }
  func.func @transform_5(%arg0: i32) -> (i32, i32) {
    %c0_i32 = arith.constant 0 : i32
    %c0_i32_0 = arith.constant 0 : i32
    %c0_i32_1 = arith.constant 0 : i32
    return %c0_i32, %c0_i32_0 : i32, i32
  }
  func.func @transform_6(%arg0: i32) -> (i32, i32) {
    %c0_i32 = arith.constant 0 : i32
    %c0_i32_0 = arith.constant 0 : i32
    %c0_i32_1 = arith.constant 0 : i32
    return %c0_i32, %c0_i32_0 : i32, i32
  }
  func.func @transform_7(%arg0: i32) -> (i32, i32) {
    %c0_i32 = arith.constant 0 : i32
    %c0_i32_0 = arith.constant 0 : i32
    %c0_i32_1 = arith.constant 0 : i32
    return %c0_i32, %c0_i32_0 : i32, i32
  }
  func.func @transform_8(%arg0: i32) -> (i32, i32) {
    %c0_i32 = arith.constant 0 : i32
    %c0_i32_0 = arith.constant 0 : i32
    %c0_i32_1 = arith.constant 0 : i32
    return %c0_i32, %c0_i32_0 : i32, i32
  }
  func.func @transform_9(%arg0: i32) -> (i32, i32) {
    %c0_i32 = arith.constant 0 : i32
    %c0_i32_0 = arith.constant 0 : i32
    %c0_i32_1 = arith.constant 0 : i32
    return %c0_i32, %c0_i32_0 : i32, i32
  }
  func.func @transform_10(%arg0: i32) -> (i32, i32, i32, i32) {
    %c0_i32 = arith.constant 0 : i32
    %c0_i32_0 = arith.constant 0 : i32
    %c0_i32_1 = arith.constant 0 : i32
    %c0_i32_2 = arith.constant 0 : i32
    return %arg0, %c0_i32, %c0_i32_0, %c0_i32_1 : i32, i32, i32, i32
  }
}

</mosaic_0001>

<llo_original>
// kernel: tpu_custom_call.1
$region0: #{tpu_custom_call.1}
  #allocation0 [shape = 'u32[]', space=smem, size = 0x4, offset = 0x4, fixed_abs, tag = 'smem constant byte address 0x4 - core index']
  #allocation1 [shape = 'u32[72,128]{1,0:T(1,128)}', space=vmem, size = 0x9000, scoped, tag = 'internal scratch']
  #allocation2 [shape = 'f32[18,18,4]{2,1,0:T(8,128)}', space=vmem, size = 0x36000, scoped, tag = 'scratch operand']
  #allocation3 [shape = 'f32[18,18,8]{2,1,0:T(8,128)}', space=vmem, size = 0x36000, scoped, tag = 'scratch operand']
  %s0 = inlined_call_operand.vmem [shape: bf16[2,16,16,4], index: 0, kind: input, shape index: {}]
  %s1 = inlined_call_operand.vmem [shape: bf16[3,3,4,8], index: 1, kind: input, shape index: {}]
  %s2 = inlined_call_operand.vmem [shape: bf16[3,3,8,8], index: 2, kind: input, shape index: {}]
  %s3 = inlined_call_operand.vmem [shape: bf16[4,8], index: 3, kind: input, shape index: {}]
  %s4 = inlined_call_operand.vmem [shape: f32[1,8], index: 4, kind: input, shape index: {}]
  %s5 = inlined_call_operand.vmem [shape: f32[1,8], index: 5, kind: input, shape index: {}]
  %s6 = inlined_call_operand.vmem [shape: f32[1,8], index: 6, kind: input, shape index: {}]
  %s7 = inlined_call_operand.vmem [shape: f32[1,8], index: 7, kind: input, shape index: {}]
  %s8 = inlined_call_operand.vmem [shape: f32[1,8], index: 8, kind: input, shape index: {}]
  %s9 = inlined_call_operand.vmem [shape: f32[1,8], index: 9, kind: input, shape index: {}]
  %s10 = inlined_call_operand.vmem [shape: f32[2,16,16,8], index: 10, kind: output, shape index: {}]
  %s11 = sld [smem:[#allocation0]]
  $region73: #{tpu_custom_call.1} parent=0
    _
  %s13 = ssub.s32 1, %s11
  %s14 = scalar_select 0, %s13, %s11
  loop: start=0, step=1, limit=4
  $region2: #{tpu_custom_call.1} parent=0 // loop_pre_header
    _
  $region3: #{tpu_custom_call.1} parent=0 // loop_header
    %s16 = sphi 0, %s20
    %p17 = scmp.ge.s32.totalorder %s16, 4
    %s26 = sphi 0, %s28
    %s29 = sphi 0, %s26
    %s30 = sphi 0, %s29
    %s46 = sphi 0, %s30
    %s50 = sphi 0, %s50
    %s52 = sphi 0, %s50
    %s53 = sphi 0, %s52
    %s67 = sphi 0, %s53
    %s71 = sphi 0, %s71
    %s73 = sphi 0, %s71
    %s74 = sphi 0, %s73
    %s88 = sphi 0, %s74
    %s92 = sphi 0, %s92
    %s94 = sphi 0, %s92
    %s95 = sphi 0, %s94
    %s109 = sphi 0, %s95
    %s113 = sphi 0, %s113
    %s115 = sphi 0, %s113
    %s116 = sphi 0, %s115
    %s130 = sphi 0, %s116
    %s134 = sphi 0, %s134
    %s136 = sphi 0, %s134
    %s137 = sphi 0, %s136
    %s151 = sphi 0, %s137
    %s155 = sphi 0, %s155
    %s157 = sphi 0, %s155
    %s158 = sphi 0, %s157
    %s172 = sphi 0, %s158
    %s176 = sphi 0, %s176
    %s178 = sphi 0, %s176
    %s179 = sphi 0, %s178
    %s193 = sphi 0, %s179
    %s197 = sphi 0, %s197
    %s199 = sphi 0, %s197
    %s200 = sphi 0, %s199
    %s214 = sphi 0, %s200
    %s218 = sphi 0, %s218
    %s220 = sphi 0, %s218
    %s221 = sphi 0, %s220
    %s235 = sphi 0, %s221
    %s241 = sphi 0, %s243
    %s244 = sphi 0, %s241
    %s245 = sphi 0, %s244
    %s261 = sphi 0, %s245
  $region4: #{tpu_custom_call.1} parent=0 // loop_header_branch
    %19 = sbr.rel (%p17) target = $region8
  $region5: #{tpu_custom_call.1} parent=0 // loop_body
    %s21 = ssub.s32 %s16, 1
    %s22 = ssub.s32 %s16, 2
    %s23 = sadd.s32 %s16, 1
    %s24 = ssub.s32 %s16, %s23
    %p25 = scmp.eq.s32.totalorder %s24, 0
    %s27 = sadd.s32 %s26, 1
    %s28 = scalar_select %p25, %s26, %s27
    %p31 = pneg %p25
    %p32 = scmp.eq.s32.totalorder %s16, 1
    %p33 = por %p31, %p32
    %p34 = scmp.ne.s32.totalorder %s26, %s29
    %p35 = scmp.eq.s32.totalorder %s16, 0
    %p36 = por %p34, %p35
    %p37 = scmp.ne.s32.totalorder %s26, %s29
    %p38 = scmp.eq.s32.totalorder %s21, 1
    %p39 = por %p37, %p38
    %p40 = scmp.ne.s32.totalorder %s29, %s30
    %p41 = scmp.eq.s32.totalorder %s21, 0
    %p42 = por %p40, %p41
    %p43 = scmp.ne.s32.totalorder %s29, %s30
    %p44 = scmp.eq.s32.totalorder %s22, 1
    %p45 = por %p43, %p44
    %p47 = scmp.ne.s32.totalorder %s30, %s46
    %p48 = scmp.eq.s32.totalorder %s22, 0
    %p49 = por %p47, %p48
    %s51 = sadd.s32 %s50, 1
    %p54 = scmp.eq.s32.totalorder %s16, 1
    %p55 = scmp.ne.s32.totalorder %s50, %s52
    %p56 = scmp.eq.s32.totalorder %s16, 0
    %p57 = por %p55, %p56
    %p58 = scmp.ne.s32.totalorder %s50, %s52
    %p59 = scmp.eq.s32.totalorder %s21, 1
    %p60 = por %p58, %p59
    %p61 = scmp.ne.s32.totalorder %s52, %s53
    %p62 = scmp.eq.s32.totalorder %s21, 0
    %p63 = por %p61, %p62
    %p64 = scmp.ne.s32.totalorder %s52, %s53
    %p65 = scmp.eq.s32.totalorder %s22, 1
    %p66 = por %p64, %p65
    %p68 = scmp.ne.s32.totalorder %s53, %s67
    %p69 = scmp.eq.s32.totalorder %s22, 0
    %p70 = por %p68, %p69
    %s72 = sadd.s32 %s71, 1
    %p75 = scmp.eq.s32.totalorder %s16, 1
    %p76 = scmp.ne.s32.totalorder %s71, %s73
    %p77 = scmp.eq.s32.totalorder %s16, 0
    %p78 = por %p76, %p77
    %p79 = scmp.ne.s32.totalorder %s71, %s73
    %p80 = scmp.eq.s32.totalorder %s21, 1
    %p81 = por %p79, %p80
    %p82 = scmp.ne.s32.totalorder %s73, %s74
    %p83 = scmp.eq.s32.totalorder %s21, 0
    %p84 = por %p82, %p83
    %p85 = scmp.ne.s32.totalorder %s73, %s74
    %p86 = scmp.eq.s32.totalorder %s22, 1
    %p87 = por %p85, %p86
    %p89 = scmp.ne.s32.totalorder %s74, %s88
    %p90 = scmp.eq.s32.totalorder %s22, 0
    %p91 = por %p89, %p90
    %s93 = sadd.s32 %s92, 1
    %p96 = scmp.eq.s32.totalorder %s16, 1
    %p97 = scmp.ne.s32.totalorder %s92, %s94
    %p98 = scmp.eq.s32.totalorder %s16, 0
    %p99 = por %p97, %p98
    %p100 = scmp.ne.s32.totalorder %s92, %s94
    %p101 = scmp.eq.s32.totalorder %s21, 1
    %p102 = por %p100, %p101
    %p103 = scmp.ne.s32.totalorder %s94, %s95
    %p104 = scmp.eq.s32.totalorder %s21, 0
    %p105 = por %p103, %p104
    %p106 = scmp.ne.s32.totalorder %s94, %s95
    %p107 = scmp.eq.s32.totalorder %s22, 1
    %p108 = por %p106, %p107
    %p110 = scmp.ne.s32.totalorder %s95, %s109
    %p111 = scmp.eq.s32.totalorder %s22, 0
    %p112 = por %p110, %p111
    %s114 = sadd.s32 %s113, 1
    %p117 = scmp.eq.s32.totalorder %s16, 1
    %p118 = scmp.ne.s32.totalorder %s113, %s115
    %p119 = scmp.eq.s32.totalorder %s16, 0
    %p120 = por %p118, %p119
    %p121 = scmp.ne.s32.totalorder %s113, %s115
    %p122 = scmp.eq.s32.totalorder %s21, 1
    %p123 = por %p121, %p122
    %p124 = scmp.ne.s32.totalorder %s115, %s116
    %p125 = scmp.eq.s32.totalorder %s21, 0
    %p126 = por %p124, %p125
    %p127 = scmp.ne.s32.totalorder %s115, %s116
    %p128 = scmp.eq.s32.totalorder %s22, 1
    %p129 = por %p127, %p128
    %p131 = scmp.ne.s32.totalorder %s116, %s130
    %p132 = scmp.eq.s32.totalorder %s22, 0
    %p133 = por %p131, %p132
    %s135 = sadd.s32 %s134, 1
    %p138 = scmp.eq.s32.totalorder %s16, 1
    %p139 = scmp.ne.s32.totalorder %s134, %s136
    %p140 = scmp.eq.s32.totalorder %s16, 0
    %p141 = por %p139, %p140
    %p142 = scmp.ne.s32.totalorder %s134, %s136
    %p143 = scmp.eq.s32.totalorder %s21, 1
    %p144 = por %p142, %p143
    %p145 = scmp.ne.s32.totalorder %s136, %s137
    %p146 = scmp.eq.s32.totalorder %s21, 0
    %p147 = por %p145, %p146
    %p148 = scmp.ne.s32.totalorder %s136, %s137
    %p149 = scmp.eq.s32.totalorder %s22, 1
    %p150 = por %p148, %p149
    %p152 = scmp.ne.s32.totalorder %s137, %s151
    %p153 = scmp.eq.s32.totalorder %s22, 0
    %p154 = por %p152, %p153
    %s156 = sadd.s32 %s155, 1
    %p159 = scmp.eq.s32.totalorder %s16, 1
    %p160 = scmp.ne.s32.totalorder %s155, %s157
    %p161 = scmp.eq.s32.totalorder %s16, 0
    %p162 = por %p160, %p161
    %p163 = scmp.ne.s32.totalorder %s155, %s157
    %p164 = scmp.eq.s32.totalorder %s21, 1
    %p165 = por %p163, %p164
    %p166 = scmp.ne.s32.totalorder %s157, %s158
    %p167 = scmp.eq.s32.totalorder %s21, 0
    %p168 = por %p166, %p167
    %p169 = scmp.ne.s32.totalorder %s157, %s158
    %p170 = scmp.eq.s32.totalorder %s22, 1
    %p171 = por %p169, %p170
    %p173 = scmp.ne.s32.totalorder %s158, %s172
    %p174 = scmp.eq.s32.totalorder %s22, 0
    %p175 = por %p173, %p174
    %s177 = sadd.s32 %s176, 1
    %p180 = scmp.eq.s32.totalorder %s16, 1
    %p181 = scmp.ne.s32.totalorder %s176, %s178
    %p182 = scmp.eq.s32.totalorder %s16, 0
    %p183 = por %p181, %p182
    %p184 = scmp.ne.s32.totalorder %s176, %s178
    %p185 = scmp.eq.s32.totalorder %s21, 1
    %p186 = por %p184, %p185
    %p187 = scmp.ne.s32.totalorder %s178, %s179
    %p188 = scmp.eq.s32.totalorder %s21, 0
    %p189 = por %p187, %p188
    %p190 = scmp.ne.s32.totalorder %s178, %s179
    %p191 = scmp.eq.s32.totalorder %s22, 1
    %p192 = por %p190, %p191
    %p194 = scmp.ne.s32.totalorder %s179, %s193
    %p195 = scmp.eq.s32.totalorder %s22, 0
    %p196 = por %p194, %p195
    %s198 = sadd.s32 %s197, 1
    %p201 = scmp.eq.s32.totalorder %s16, 1
    %p202 = scmp.ne.s32.totalorder %s197, %s199
    %p203 = scmp.eq.s32.totalorder %s16, 0
    %p204 = por %p202, %p203
    %p205 = scmp.ne.s32.totalorder %s197, %s199
    %p206 = scmp.eq.s32.totalorder %s21, 1
    %p207 = por %p205, %p206
    %p208 = scmp.ne.s32.totalorder %s199, %s200
    %p209 = scmp.eq.s32.totalorder %s21, 0
    %p210 = por %p208, %p209
    %p211 = scmp.ne.s32.totalorder %s199, %s200
    %p212 = scmp.eq.s32.totalorder %s22, 1
    %p213 = por %p211, %p212
    %p215 = scmp.ne.s32.totalorder %s200, %s214
    %p216 = scmp.eq.s32.totalorder %s22, 0
    %p217 = por %p215, %p216
    %s219 = sadd.s32 %s218, 1
    %p222 = scmp.eq.s32.totalorder %s16, 1
    %p223 = scmp.ne.s32.totalorder %s218, %s220
    %p224 = scmp.eq.s32.totalorder %s16, 0
    %p225 = por %p223, %p224
    %p226 = scmp.ne.s32.totalorder %s218, %s220
    %p227 = scmp.eq.s32.totalorder %s21, 1
    %p228 = por %p226, %p227
    %p229 = scmp.ne.s32.totalorder %s220, %s221
    %p230 = scmp.eq.s32.totalorder %s21, 0
    %p231 = por %p229, %p230
    %p232 = scmp.ne.s32.totalorder %s220, %s221
    %p233 = scmp.eq.s32.totalorder %s22, 1
    %p234 = por %p232, %p233
    %p236 = scmp.ne.s32.totalorder %s221, %s235
    %p237 = scmp.eq.s32.totalorder %s22, 0
    %p238 = por %p236, %p237
    %s239 = ssub.s32 %s16, %s23
    %p240 = scmp.eq.s32.totalorder %s239, 0
    %s242 = sadd.s32 %s241, 1
    %s243 = scalar_select %p240, %s241, %s242
    %p246 = pneg %p240
    %p247 = scmp.eq.s32.totalorder %s16, 1
    %p248 = por %p246, %p247
    %p249 = scmp.ne.s32.totalorder %s241, %s244
    %p250 = scmp.eq.s32.totalorder %s16, 0
    %p251 = por %p249, %p250
    %p252 = scmp.ne.s32.totalorder %s241, %s244
    %p253 = scmp.eq.s32.totalorder %s21, 1
    %p254 = por %p252, %p253
    %p255 = scmp.ne.s32.totalorder %s244, %s245
    %p256 = scmp.eq.s32.totalorder %s21, 0
    %p257 = por %p255, %p256
    %p258 = scmp.ne.s32.totalorder %s244, %s245
    %p259 = scmp.eq.s32.totalorder %s22, 1
    %p260 = por %p258, %p259
    %p262 = scmp.ne.s32.totalorder %s245, %s261
    %p263 = scmp.eq.s32.totalorder %s22, 0
    %p264 = por %p262, %p263
    %p265 = scmp.le.s32.totalorder 1, %s16
    %p266 = scmp.lt.s32.totalorder %s16, 3
    %p267 = pnand %p265, %p266
    %p268 = pneg %p267
    // Predicated region
    $region9: #{tpu_custom_call.1} parent=5 // pred_check
      _
    $region10: #{tpu_custom_call.1} parent=5 // pred_check_branch
      %270 = sbr.rel (%p267) target = $region12
    $region11: #{tpu_custom_call.1} parent=5 // pred_region
      %s271 = ssub.s32 %s16, 1
      // Predicated region
      $region13: #{tpu_custom_call.1} parent=11 // pred_check
        %p272 = pneg %p63
      $region14: #{tpu_custom_call.1} parent=11 // pred_check_branch
        %274 = sbr.rel (%p272) target = $region16
      $region15: #{tpu_custom_call.1} parent=11 // pred_region
        _
      $region16: #{tpu_custom_call.1} parent=11 // pred_fallthru
        _
      // Predicated region
      $region17: #{tpu_custom_call.1} parent=11 // pred_check
        %p275 = pneg %p84
      $region18: #{tpu_custom_call.1} parent=11 // pred_check_branch
        %277 = sbr.rel (%p275) target = $region20
      $region19: #{tpu_custom_call.1} parent=11 // pred_region
        _
      $region20: #{tpu_custom_call.1} parent=11 // pred_fallthru
        _
      // Predicated region
      $region21: #{tpu_custom_call.1} parent=11 // pred_check
        %p278 = pneg %p105
      $region22: #{tpu_custom_call.1} parent=11 // pred_check_branch
        %280 = sbr.rel (%p278) target = $region24
      $region23: #{tpu_custom_call.1} parent=11 // pred_region
        _
      $region24: #{tpu_custom_call.1} parent=11 // pred_fallthru
        _
      // Predicated region
      $region25: #{tpu_custom_call.1} parent=11 // pred_check
        %p281 = pneg %p126
      $region26: #{tpu_custom_call.1} parent=11 // pred_check_branch
        %283 = sbr.rel (%p281) target = $region28
      $region27: #{tpu_custom_call.1} parent=11 // pred_region
        _
      $region28: #{tpu_custom_call.1} parent=11 // pred_fallthru
        _
      // Predicated region
      $region29: #{tpu_custom_call.1} parent=11 // pred_check
        %p284 = pneg %p147
      $region30: #{tpu_custom_call.1} parent=11 // pred_check_branch
        %286 = sbr.rel (%p284) target = $region32
      $region31: #{tpu_custom_call.1} parent=11 // pred_region
        _
      $region32: #{tpu_custom_call.1} parent=11 // pred_fallthru
        _
      // Predicated region
      $region33: #{tpu_custom_call.1} parent=11 // pred_check
        %p287 = pneg %p168
      $region34: #{tpu_custom_call.1} parent=11 // pred_check_branch
        %289 = sbr.rel (%p287) target = $region36
      $region35: #{tpu_custom_call.1} parent=11 // pred_region
        _
      $region36: #{tpu_custom_call.1} parent=11 // pred_fallthru
        _
      // Predicated region
      $region37: #{tpu_custom_call.1} parent=11 // pred_check
        %p290 = pneg %p189
      $region38: #{tpu_custom_call.1} parent=11 // pred_check_branch
        %292 = sbr.rel (%p290) target = $region40
      $region39: #{tpu_custom_call.1} parent=11 // pred_region
        _
      $region40: #{tpu_custom_call.1} parent=11 // pred_fallthru
        _
      // Predicated region
      $region41: #{tpu_custom_call.1} parent=11 // pred_check
        %p293 = pneg %p210
      $region42: #{tpu_custom_call.1} parent=11 // pred_check_branch
        %295 = sbr.rel (%p293) target = $region44
      $region43: #{tpu_custom_call.1} parent=11 // pred_region
        _
      $region44: #{tpu_custom_call.1} parent=11 // pred_fallthru
        _
      // Predicated region
      $region45: #{tpu_custom_call.1} parent=11 // pred_check
        %p296 = pneg %p231
      $region46: #{tpu_custom_call.1} parent=11 // pred_check_branch
        %298 = sbr.rel (%p296) target = $region48
      $region47: #{tpu_custom_call.1} parent=11 // pred_region
        _
      $region48: #{tpu_custom_call.1} parent=11 // pred_fallthru
        _
    $region12: #{tpu_custom_call.1} parent=5 // pred_fallthru
      _
    %p299 = scmp.lt.s32.totalorder %s16, 2
    // Predicated region
    $region49: #{tpu_custom_call.1} parent=5 // pred_check
      %p300 = pneg %p299
    $region50: #{tpu_custom_call.1} parent=5 // pred_check_branch
      %302 = sbr.rel (%p300) target = $region52
    $region51: #{tpu_custom_call.1} parent=5 // pred_region
      // Predicated region
      $region53: #{tpu_custom_call.1} parent=51 // pred_check
        %p303 = pneg %p36
      $region54: #{tpu_custom_call.1} parent=51 // pred_check_branch
        %305 = sbr.rel (%p303) target = $region56
      $region55: #{tpu_custom_call.1} parent=51 // pred_region
        %p306 = scmp.lt.s32.totalorder %s16, 1
        %s307 = scalar_select %p306, %s16, 1
        %s308 = smul.addr %s307, 32
        %s309 = smul.addr %s308, 4
        %s310 = scalar_lea.vmem %s0, %s309
      $region56: #{tpu_custom_call.1} parent=51 // pred_fallthru
        _
    $region52: #{tpu_custom_call.1} parent=5 // pred_fallthru
      _
    %p311 = scmp.le.s32.totalorder 1, %s16
    %p312 = scmp.lt.s32.totalorder %s16, 3
    %p313 = pnand %p311, %p312
    %p314 = pneg %p313
    // Predicated region
    $region57: #{tpu_custom_call.1} parent=5 // pred_check
      _
    $region58: #{tpu_custom_call.1} parent=5 // pred_check_branch
      %316 = sbr.rel (%p313) target = $region60
    $region59: #{tpu_custom_call.1} parent=5 // pred_region
      %s317 = ssub.s32 %s16, 1
      %p318 = scmp.lt.s32.totalorder %s21, 1
      %s319 = scalar_select %p318, %s21, 1
      %s320 = smul.addr %s319, 32
      %s321 = smul.addr %s320, 4
      %s322 = scalar_lea.vmem %s0, %s321
      %p323 = pneg %p42
      %p324 = pneg %p39
      %p325 = pneg %p63
      %p326 = pneg %p60
      %p327 = pneg %p84
      %p328 = pneg %p81
      %p329 = pneg %p105
      %p330 = pneg %p102
      %p331 = pneg %p126
      %p332 = pneg %p123
      %p333 = pneg %p147
      %p334 = pneg %p144
      %p335 = pneg %p168
      %p336 = pneg %p165
      %p337 = pneg %p189
      %p338 = pneg %p186
      %p339 = pneg %p210
      %p340 = pneg %p207
      %p341 = pneg %p231
      %p342 = pneg %p228
      %p343 = pneg %p257
      %p344 = pneg %p254
      %p345 = scmp.lt.s32.totalorder %s21, 1
      %s346 = scalar_select %p345, %s21, 1
      %s347 = smul.addr %s346, 32
      %s348 = smul.addr %s347, 8
      %s349 = scalar_lea.vmem %s10, %s348
      %p350 = scmp.lt.s32.totalorder %s21, 1
      %s351 = scalar_select %p350, %s21, 1
      %s352 = smul.addr %s351, 32
      %s353 = smul.addr %s352, 4
      %s354 = scalar_lea.vmem %s0, %s353
      %p355 = scmp.lt.s32.totalorder %s21, 1
      %s356 = scalar_select %p355, %s21, 1
      %s357 = smul.addr %s356, 32
      %s358 = smul.addr %s357, 8
      %s359 = scalar_lea.vmem %s10, %s358
      %v361 = vld [vmem:[%s354] sm:$0xf]
      %v362 = vld [vmem:[%s354 + $0x4] sm:$0xf]
      %v363 = vld [vmem:[%s354 + $0x8] sm:$0xf]
      %v364 = vld [vmem:[%s354 + $0xc] sm:$0xf]
      %v365 = vld [vmem:[%s354 + $0x10] sm:$0xf]
      %v366 = vld [vmem:[%s354 + $0x14] sm:$0xf]
      %v367 = vld [vmem:[%s354 + $0x18] sm:$0xf]
      %v368 = vld [vmem:[%s354 + $0x1c] sm:$0xf]
      %v369 = vld [vmem:[%s354 + $0x20] sm:$0xf]
      %v370 = vld [vmem:[%s354 + $0x24] sm:$0xf]
      %v371 = vld [vmem:[%s354 + $0x28] sm:$0xf]
      %v372 = vld [vmem:[%s354 + $0x2c] sm:$0xf]
      %v373 = vld [vmem:[%s354 + $0x30] sm:$0xf]
      %v374 = vld [vmem:[%s354 + $0x34] sm:$0xf]
      %v375 = vld [vmem:[%s354 + $0x38] sm:$0xf]
      %v376 = vld [vmem:[%s354 + $0x3c] sm:$0xf]
      %v377 = vld [vmem:[%s354 + $0x40] sm:$0xf]
      %v378 = vld [vmem:[%s354 + $0x44] sm:$0xf]
      %v379 = vld [vmem:[%s354 + $0x48] sm:$0xf]
      %v380 = vld [vmem:[%s354 + $0x4c] sm:$0xf]
      %v381 = vld [vmem:[%s354 + $0x50] sm:$0xf]
      %v382 = vld [vmem:[%s354 + $0x54] sm:$0xf]
      %v383 = vld [vmem:[%s354 + $0x58] sm:$0xf]
      %v384 = vld [vmem:[%s354 + $0x5c] sm:$0xf]
      %v385 = vld [vmem:[%s354 + $0x60] sm:$0xf]
      %v386 = vld [vmem:[%s354 + $0x64] sm:$0xf]
      %v387 = vld [vmem:[%s354 + $0x68] sm:$0xf]
      %v388 = vld [vmem:[%s354 + $0x6c] sm:$0xf]
      %v389 = vld [vmem:[%s354 + $0x70] sm:$0xf]
      %v390 = vld [vmem:[%s354 + $0x74] sm:$0xf]
      %v391 = vld [vmem:[%s354 + $0x78] sm:$0xf]
      %v392 = vld [vmem:[%s354 + $0x7c] sm:$0xf]
      %vm393 = vcmask 31744
      %394 = vst.msk [vmem:[#allocation2] sm:$0xff] %vm393, 0.0
      %395 = vst.msk [vmem:[#allocation2 + $0x8] sm:$0xff] %vm393, 0.0
      %vm396 = vcmask 25600
      %397 = vst.msk [vmem:[#allocation2 + $0x10] sm:$0x3] %vm396, 0.0
      %s398 = scalar_lea.vmem [#allocation2], 408
      %399 = vst.msk [vmem:[%s398] sm:$0xff] %vm393, 0.0
      %400 = vst.msk [vmem:[%s398 + $0x8] sm:$0xff] %vm393, 0.0
      %401 = vst.msk [vmem:[%s398 + $0x10] sm:$0x3] %vm396, 0.0
      %vm402 = vcmask 24576
      %403 = vst.msk [vmem:[#allocation2] sm:$0x1] %vm402, 0.0
      %404 = vst.msk [vmem:[#allocation2 + $0x18] sm:$0x1] %vm402, 0.0
      %405 = vst.msk [vmem:[#allocation2 + $0x30] sm:$0x1] %vm402, 0.0
      %406 = vst.msk [vmem:[#allocation2 + $0x48] sm:$0x1] %vm402, 0.0
      %407 = vst.msk [vmem:[#allocation2 + $0x60] sm:$0x1] %vm402, 0.0
      %408 = vst.msk [vmem:[#allocation2 + $0x78] sm:$0x1] %vm402, 0.0
      %409 = vst.msk [vmem:[#allocation2 + $0x90] sm:$0x1] %vm402, 0.0
      %410 = vst.msk [vmem:[#allocation2 + $0xa8] sm:$0x1] %vm402, 0.0
      %411 = vst.msk [vmem:[#allocation2 + $0xc0] sm:$0x1] %vm402, 0.0
      %412 = vst.msk [vmem:[#allocation2 + $0xd8] sm:$0x1] %vm402, 0.0
      %413 = vst.msk [vmem:[#allocation2 + $0xf0] sm:$0x1] %vm402, 0.0
      %414 = vst.msk [vmem:[#allocation2 + $0x108] sm:$0x1] %vm402, 0.0
      %415 = vst.msk [vmem:[#allocation2 + $0x120] sm:$0x1] %vm402, 0.0
      %416 = vst.msk [vmem:[#allocation2 + $0x138] sm:$0x1] %vm402, 0.0
      %417 = vst.msk [vmem:[#allocation2 + $0x150] sm:$0x1] %vm402, 0.0
      %418 = vst.msk [vmem:[#allocation2 + $0x168] sm:$0x1] %vm402, 0.0
      %419 = vst.msk [vmem:[#allocation2 + $0x180] sm:$0x1] %vm402, 0.0
      %420 = vst.msk [vmem:[#allocation2 + $0x198] sm:$0x1] %vm402, 0.0
      %421 = vst.msk [vmem:[#allocation2 + $0x11] sm:$0x1] %vm402, 0.0
      %422 = vst.msk [vmem:[#allocation2 + $0x29] sm:$0x1] %vm402, 0.0
      %423 = vst.msk [vmem:[#allocation2 + $0x41] sm:$0x1] %vm402, 0.0
      %424 = vst.msk [vmem:[#allocation2 + $0x59] sm:$0x1] %vm402, 0.0
      %425 = vst.msk [vmem:[#allocation2 + $0x71] sm:$0x1] %vm402, 0.0
      %426 = vst.msk [vmem:[#allocation2 + $0x89] sm:$0x1] %vm402, 0.0
      %427 = vst.msk [vmem:[#allocation2 + $0xa1] sm:$0x1] %vm402, 0.0
      %428 = vst.msk [vmem:[#allocation2 + $0xb9] sm:$0x1] %vm402, 0.0
      %429 = vst.msk [vmem:[#allocation2 + $0xd1] sm:$0x1] %vm402, 0.0
      %430 = vst.msk [vmem:[#allocation2 + $0xe9] sm:$0x1] %vm402, 0.0
      %431 = vst.msk [vmem:[#allocation2 + $0x101] sm:$0x1] %vm402, 0.0
      %432 = vst.msk [vmem:[#allocation2 + $0x119] sm:$0x1] %vm402, 0.0
      %433 = vst.msk [vmem:[#allocation2 + $0x131] sm:$0x1] %vm402, 0.0
      %434 = vst.msk [vmem:[#allocation2 + $0x149] sm:$0x1] %vm402, 0.0
      %435 = vst.msk [vmem:[#allocation2 + $0x161] sm:$0x1] %vm402, 0.0
      %436 = vst.msk [vmem:[#allocation2 + $0x179] sm:$0x1] %vm402, 0.0
      %437 = vst.msk [vmem:[#allocation2 + $0x191] sm:$0x1] %vm402, 0.0
      %438 = vst.msk [vmem:[#allocation2 + $0x1a9] sm:$0x1] %vm402, 0.0
      %v439 = vunpack.c.l.bf16 %v361
      %v440 = vunpack.c.l.bf16 %v362
      %v441 = vunpack.c.l.bf16 %v363
      %v442 = vunpack.c.l.bf16 %v364
      %v443 = vunpack.c.l.bf16 %v365
      %v444 = vunpack.c.l.bf16 %v366
      %v445 = vunpack.c.l.bf16 %v367
      %v446 = vunpack.c.l.bf16 %v368
      %v447 = vunpack.c.l.bf16 %v369
      %v448 = vunpack.c.l.bf16 %v370
      %v449 = vunpack.c.l.bf16 %v371
      %v450 = vunpack.c.l.bf16 %v372
      %v451 = vunpack.c.l.bf16 %v373
      %v452 = vunpack.c.l.bf16 %v374
      %v453 = vunpack.c.l.bf16 %v375
      %v454 = vunpack.c.l.bf16 %v376
      %v455 = vunpack.c.l.bf16 %v377
      %v456 = vunpack.c.l.bf16 %v378
      %v457 = vunpack.c.l.bf16 %v379
      %v458 = vunpack.c.l.bf16 %v380
      %v459 = vunpack.c.l.bf16 %v381
      %v460 = vunpack.c.l.bf16 %v382
      %v461 = vunpack.c.l.bf16 %v383
      %v462 = vunpack.c.l.bf16 %v384
      %v463 = vunpack.c.l.bf16 %v385
      %v464 = vunpack.c.l.bf16 %v386
      %v465 = vunpack.c.l.bf16 %v387
      %v466 = vunpack.c.l.bf16 %v388
      %v467 = vunpack.c.l.bf16 %v389
      %v468 = vunpack.c.l.bf16 %v390
      %v469 = vunpack.c.l.bf16 %v391
      %v470 = vunpack.c.l.bf16 %v392
      %s471 = scalar_lea.vmem [#allocation2], 24
      %472 = vst.msk [vmem:[%s471 + $0x1] sm:$0xff] %vm393, %v439
      %473 = vst.msk [vmem:[%s471 + $0x9] sm:$0xff] %vm393, %v440
      %474 = vst.msk [vmem:[%s471 + $0x19] sm:$0xff] %vm393, %v441
      %475 = vst.msk [vmem:[%s471 + $0x21] sm:$0xff] %vm393, %v442
      %476 = vst.msk [vmem:[%s471 + $0x31] sm:$0xff] %vm393, %v443
      %477 = vst.msk [vmem:[%s471 + $0x39] sm:$0xff] %vm393, %v444
      %478 = vst.msk [vmem:[%s471 + $0x49] sm:$0xff] %vm393, %v445
      %479 = vst.msk [vmem:[%s471 + $0x51] sm:$0xff] %vm393, %v446
      %480 = vst.msk [vmem:[%s471 + $0x61] sm:$0xff] %vm393, %v447
      %481 = vst.msk [vmem:[%s471 + $0x69] sm:$0xff] %vm393, %v448
      %482 = vst.msk [vmem:[%s471 + $0x79] sm:$0xff] %vm393, %v449
      %483 = vst.msk [vmem:[%s471 + $0x81] sm:$0xff] %vm393, %v450
      %484 = vst.msk [vmem:[%s471 + $0x91] sm:$0xff] %vm393, %v451
      %485 = vst.msk [vmem:[%s471 + $0x99] sm:$0xff] %vm393, %v452
      %486 = vst.msk [vmem:[%s471 + $0xa9] sm:$0xff] %vm393, %v453
      %487 = vst.msk [vmem:[%s471 + $0xb1] sm:$0xff] %vm393, %v454
      %488 = vst.msk [vmem:[%s471 + $0xc1] sm:$0xff] %vm393, %v455
      %489 = vst.msk [vmem:[%s471 + $0xc9] sm:$0xff] %vm393, %v456
      %490 = vst.msk [vmem:[%s471 + $0xd9] sm:$0xff] %vm393, %v457
      %491 = vst.msk [vmem:[%s471 + $0xe1] sm:$0xff] %vm393, %v458
      %492 = vst.msk [vmem:[%s471 + $0xf1] sm:$0xff] %vm393, %v459
      %493 = vst.msk [vmem:[%s471 + $0xf9] sm:$0xff] %vm393, %v460
      %494 = vst.msk [vmem:[%s471 + $0x109] sm:$0xff] %vm393, %v461
      %495 = vst.msk [vmem:[%s471 + $0x111] sm:$0xff] %vm393, %v462
      %496 = vst.msk [vmem:[%s471 + $0x121] sm:$0xff] %vm393, %v463
      %497 = vst.msk [vmem:[%s471 + $0x129] sm:$0xff] %vm393, %v464
      %498 = vst.msk [vmem:[%s471 + $0x139] sm:$0xff] %vm393, %v465
      %499 = vst.msk [vmem:[%s471 + $0x141] sm:$0xff] %vm393, %v466
      %500 = vst.msk [vmem:[%s471 + $0x151] sm:$0xff] %vm393, %v467
      %501 = vst.msk [vmem:[%s471 + $0x159] sm:$0xff] %vm393, %v468
      %502 = vst.msk [vmem:[%s471 + $0x169] sm:$0xff] %vm393, %v469
      %503 = vst.msk [vmem:[%s471 + $0x171] sm:$0xff] %vm393, %v470
      %v504 = vld [vmem:[#allocation2] sm:$0xff]
      %v505 = vld [vmem:[#allocation2 + $0x8] sm:$0xff]
      %v506 = vld [vmem:[#allocation2 + $0x18] sm:$0xff]
      %v507 = vld [vmem:[#allocation2 + $0x20] sm:$0xff]
      %v508 = vld [vmem:[#allocation2 + $0x30] sm:$0xff]
      %v509 = vld [vmem:[#allocation2 + $0x38] sm:$0xff]
      %v510 = vld [vmem:[#allocation2 + $0x48] sm:$0xff]
      %v511 = vld [vmem:[#allocation2 + $0x50] sm:$0xff]
      %v512 = vld [vmem:[#allocation2 + $0x60] sm:$0xff]
      %v513 = vld [vmem:[#allocation2 + $0x68] sm:$0xff]
      %v514 = vld [vmem:[#allocation2 + $0x78] sm:$0xff]
      %v515 = vld [vmem:[#allocation2 + $0x80] sm:$0xff]
      %v516 = vld [vmem:[#allocation2 + $0x90] sm:$0xff]
      %v517 = vld [vmem:[#allocation2 + $0x98] sm:$0xff]
      %v518 = vld [vmem:[#allocation2 + $0xa8] sm:$0xff]
      %v519 = vld [vmem:[#allocation2 + $0xb0] sm:$0xff]
      %v520 = vld [vmem:[#allocation2 + $0xc0] sm:$0xff]
      %v521 = vld [vmem:[#allocation2 + $0xc8] sm:$0xff]
      %v522 = vld [vmem:[#allocation2 + $0xd8] sm:$0xff]
      %v523 = vld [vmem:[#allocation2 + $0xe0] sm:$0xff]
      %v524 = vld [vmem:[#allocation2 + $0xf0] sm:$0xff]
      %v525 = vld [vmem:[#allocation2 + $0xf8] sm:$0xff]
      %v526 = vld [vmem:[#allocation2 + $0x108] sm:$0xff]
      %v527 = vld [vmem:[#allocation2 + $0x110] sm:$0xff]
      %v528 = vld [vmem:[#allocation2 + $0x120] sm:$0xff]
      %v529 = vld [vmem:[#allocation2 + $0x128] sm:$0xff]
      %v530 = vld [vmem:[#allocation2 + $0x138] sm:$0xff]
      %v531 = vld [vmem:[#allocation2 + $0x140] sm:$0xff]
      %v532 = vld [vmem:[#allocation2 + $0x150] sm:$0xff]
      %v533 = vld [vmem:[#allocation2 + $0x158] sm:$0xff]
      %v534 = vld [vmem:[#allocation2 + $0x168] sm:$0xff]
      %v535 = vld [vmem:[#allocation2 + $0x170] sm:$0xff]
      %v536 = vld [vmem:[#allocation2 + $0x180] sm:$0xff]
      %v537 = vld [vmem:[#allocation2 + $0x188] sm:$0xff]
      %v538 = vld [vmem:[#allocation2 + $0x198] sm:$0xff]
      %v539 = vld [vmem:[#allocation2 + $0x1a0] sm:$0xff]
      %v540 = vpack.c.bf16 %v504, %v504
      %v541 = vpack.c.bf16 %v505, %v505
      %v542 = vpack.c.bf16 %v506, %v506
      %v543 = vpack.c.bf16 %v507, %v507
      %v544 = vpack.c.bf16 %v508, %v508
      %v545 = vpack.c.bf16 %v509, %v509
      %v546 = vpack.c.bf16 %v510, %v510
      %v547 = vpack.c.bf16 %v511, %v511
      %v548 = vpack.c.bf16 %v512, %v512
      %v549 = vpack.c.bf16 %v513, %v513
      %v550 = vpack.c.bf16 %v514, %v514
      %v551 = vpack.c.bf16 %v515, %v515
      %v552 = vpack.c.bf16 %v516, %v516
      %v553 = vpack.c.bf16 %v517, %v517
      %v554 = vpack.c.bf16 %v518, %v518
      %v555 = vpack.c.bf16 %v519, %v519
      %v556 = vpack.c.bf16 %v520, %v520
      %v557 = vpack.c.bf16 %v521, %v521
      %v558 = vpack.c.bf16 %v522, %v522
      %v559 = vpack.c.bf16 %v523, %v523
      %v560 = vpack.c.bf16 %v524, %v524
      %v561 = vpack.c.bf16 %v525, %v525
      %v562 = vpack.c.bf16 %v526, %v526
      %v563 = vpack.c.bf16 %v527, %v527
      %v564 = vpack.c.bf16 %v528, %v528
      %v565 = vpack.c.bf16 %v529, %v529
      %v566 = vpack.c.bf16 %v530, %v530
      %v567 = vpack.c.bf16 %v531, %v531
      %v568 = vpack.c.bf16 %v532, %v532
      %v569 = vpack.c.bf16 %v533, %v533
      %v570 = vpack.c.bf16 %v534, %v534
      %v571 = vpack.c.bf16 %v535, %v535
      %v572 = vpack.c.bf16 %v536, %v536
      %v573 = vpack.c.bf16 %v537, %v537
      %v574 = vpack.c.bf16 %v538, %v538
      %v575 = vpack.c.bf16 %v539, %v539
      %v576 = vld [vmem:[%s1] sm:$0x3]
      %s577 = scalar_lea.vmem %s1, 6
      %v578 = vld [vmem:[%s577] sm:$0x3]
      %v611 = vunpack.c.l.b16 %v542
      %v612 = vunpack.c.l.b16 %v543
      %v613 = vunpack.c.l.b16 %v544
      %v614 = vunpack.c.l.b16 %v545
      %v615 = vunpack.c.l.b16 %v546
      %v616 = vunpack.c.l.b16 %v547
      %v617 = vunpack.c.l.b16 %v548
      %v618 = vunpack.c.l.b16 %v549
      %v619 = vunpack.c.l.b16 %v550
      %v620 = vunpack.c.l.b16 %v551
      %v621 = vunpack.c.l.b16 %v552
      %v622 = vunpack.c.l.b16 %v553
      %v623 = vunpack.c.l.b16 %v554
      %v624 = vunpack.c.l.b16 %v555
      %v625 = vunpack.c.l.b16 %v556
      %v626 = vunpack.c.l.b16 %v557
      %v627 = vunpack.c.l.b16 %v558
      %v628 = vunpack.c.l.b16 %v559
      %v629 = vunpack.c.l.b16 %v560
      %v630 = vunpack.c.l.b16 %v561
      %v631 = vunpack.c.l.b16 %v562
      %v632 = vunpack.c.l.b16 %v563
      %v633 = vunpack.c.l.b16 %v564
      %v634 = vunpack.c.l.b16 %v565
      %v635 = vunpack.c.l.b16 %v566
      %v636 = vunpack.c.l.b16 %v567
      %v637 = vunpack.c.l.b16 %v568
      %v638 = vunpack.c.l.b16 %v569
      %v639 = vunpack.c.l.b16 %v570
      %v640 = vunpack.c.l.b16 %v571
      %v641 = vunpack.c.l.b16 %v572
      %v642 = vunpack.c.l.b16 %v573
      %v643 = vpack.c.b16 %v612, %v611
      %v644 = vpack.c.b16 %v614, %v613
      %v645 = vpack.c.b16 %v616, %v615
      %v646 = vpack.c.b16 %v618, %v617
      %v647 = vpack.c.b16 %v620, %v619
      %v648 = vpack.c.b16 %v622, %v621
      %v649 = vpack.c.b16 %v624, %v623
      %v650 = vpack.c.b16 %v626, %v625
      %v651 = vpack.c.b16 %v628, %v627
      %v652 = vpack.c.b16 %v630, %v629
      %v653 = vpack.c.b16 %v632, %v631
      %v654 = vpack.c.b16 %v634, %v633
      %v655 = vpack.c.b16 %v636, %v635
      %v656 = vpack.c.b16 %v638, %v637
      %v657 = vpack.c.b16 %v640, %v639
      %v658 = vpack.c.b16 %v642, %v641
      %v660 = vsel %vm393, %v643, 0
      %v663 = vsel %vm393, %v644, 0
      %v666 = vsel %vm393, %v645, 0
      %v669 = vsel %vm393, %v646, 0
      %v672 = vsel %vm393, %v647, 0
      %v675 = vsel %vm393, %v648, 0
      %v678 = vsel %vm393, %v649, 0
      %v681 = vsel %vm393, %v650, 0
      %v684 = vsel %vm393, %v651, 0
      %v687 = vsel %vm393, %v652, 0
      %v690 = vsel %vm393, %v653, 0
      %v693 = vsel %vm393, %v654, 0
      %v696 = vsel %vm393, %v655, 0
      %v699 = vsel %vm393, %v656, 0
      %v702 = vsel %vm393, %v657, 0
      %v705 = vsel %vm393, %v658, 0
      %vm707 = vcmask 1041408
      %v709 = vsel %vm707, %v578, 0
      %711 = vmatpush.bf16.msra.mxu0 0
      %712 = vmatpush.bf16.msra.mxu0 0
      %713 = vmatpush.bf16.msra.mxu0 0
      %714 = vmatpush.bf16.msra.mxu0 0
      %715 = vmatpush.bf16.msra.mxu0 0
      %716 = vmatpush.bf16.msra.mxu0 0
      %717 = vmatpush.bf16.msra.mxu0 0
      %718 = vmatpush.bf16.msra.mxu0 %v709
      %719 = vmatmul.bf16.gmra.mxu0 %v660
      %v720 = vpop.f32.mrf.mxu0
      %v721 = vadd.f32 0.0, %v720
      %v722 = vpop.f32.mrf.mxu0
      %v723 = vadd.f32 0.0, %v722
      %724 = vmatmul.bf16.gmra.mxu0 %v663
      %v725 = vpop.f32.mrf.mxu0
      %v726 = vadd.f32 0.0, %v725
      %v727 = vpop.f32.mrf.mxu0
      %v728 = vadd.f32 0.0, %v727
      %729 = vmatmul.bf16.gmra.mxu0 %v666
      %v730 = vpop.f32.mrf.mxu0
      %v731 = vadd.f32 0.0, %v730
      %v732 = vpop.f32.mrf.mxu0
      %v733 = vadd.f32 0.0, %v732
      %734 = vmatmul.bf16.gmra.mxu0 %v669
      %v735 = vpop.f32.mrf.mxu0
      %v736 = vadd.f32 0.0, %v735
      %v737 = vpop.f32.mrf.mxu0
      %v738 = vadd.f32 0.0, %v737
      %739 = vmatmul.bf16.gmra.mxu0 %v672
      %v740 = vpop.f32.mrf.mxu0
      %v741 = vadd.f32 0.0, %v740
      %v742 = vpop.f32.mrf.mxu0
      %v743 = vadd.f32 0.0, %v742
      %744 = vmatmul.bf16.gmra.mxu0 %v675
      %v745 = vpop.f32.mrf.mxu0
      %v746 = vadd.f32 0.0, %v745
      %v747 = vpop.f32.mrf.mxu0
      %v748 = vadd.f32 0.0, %v747
      %749 = vmatmul.bf16.gmra.mxu0 %v678
      %v750 = vpop.f32.mrf.mxu0
      %v751 = vadd.f32 0.0, %v750
      %v752 = vpop.f32.mrf.mxu0
      %v753 = vadd.f32 0.0, %v752
      %754 = vmatmul.bf16.gmra.mxu0 %v681
      %v755 = vpop.f32.mrf.mxu0
      %v756 = vadd.f32 0.0, %v755
      %v757 = vpop.f32.mrf.mxu0
      %v758 = vadd.f32 0.0, %v757
      %759 = vmatmul.bf16.gmra.mxu0 %v684
      %v760 = vpop.f32.mrf.mxu0
      %v761 = vadd.f32 0.0, %v760
      %v762 = vpop.f32.mrf.mxu0
      %v763 = vadd.f32 0.0, %v762
      %764 = vmatmul.bf16.gmra.mxu0 %v687
      %v765 = vpop.f32.mrf.mxu0
      %v766 = vadd.f32 0.0, %v765
      %v767 = vpop.f32.mrf.mxu0
      %v768 = vadd.f32 0.0, %v767
      %769 = vmatmul.bf16.gmra.mxu0 %v690
      %v770 = vpop.f32.mrf.mxu0
      %v771 = vadd.f32 0.0, %v770
      %v772 = vpop.f32.mrf.mxu0
      %v773 = vadd.f32 0.0, %v772
      %774 = vmatmul.bf16.gmra.mxu0 %v693
      %v775 = vpop.f32.mrf.mxu0
      %v776 = vadd.f32 0.0, %v775
      %v777 = vpop.f32.mrf.mxu0
      %v778 = vadd.f32 0.0, %v777
      %779 = vmatmul.bf16.gmra.mxu0 %v696
      %v780 = vpop.f32.mrf.mxu0
      %v781 = vadd.f32 0.0, %v780
      %v782 = vpop.f32.mrf.mxu0
      %v783 = vadd.f32 0.0, %v782
      %784 = vmatmul.bf16.gmra.mxu0 %v699
      %v785 = vpop.f32.mrf.mxu0
      %v786 = vadd.f32 0.0, %v785
      %v787 = vpop.f32.mrf.mxu0
      %v788 = vadd.f32 0.0, %v787
      %789 = vmatmul.bf16.gmra.mxu0 %v702
      %v790 = vpop.f32.mrf.mxu0
      %v791 = vadd.f32 0.0, %v790
      %v792 = vpop.f32.mrf.mxu0
      %v793 = vadd.f32 0.0, %v792
      %794 = vmatmul.bf16.gmra.mxu0 %v705
      %v795 = vpop.f32.mrf.mxu0
      %v796 = vadd.f32 0.0, %v795
      %v797 = vpop.f32.mrf.mxu0
      %v798 = vadd.f32 0.0, %v797
      %799 = vdwg.mxu0
      %v802 = vunpack.c.l.b16 %v540
      %v803 = vunpack.c.l.b16 %v541
      %v804 = vpack.c.b16 %v803, %v802
      %v806 = vsel %vm393, %v804, 0
      %v809 = vsel %vm707, %v576, 0
      %811 = vmatpush.bf16.msra.mxu0 0
      %812 = vmatpush.bf16.msra.mxu0 0
      %813 = vmatpush.bf16.msra.mxu0 0
      %814 = vmatpush.bf16.msra.mxu0 0
      %815 = vmatpush.bf16.msra.mxu0 0
      %816 = vmatpush.bf16.msra.mxu0 0
      %817 = vmatpush.bf16.msra.mxu0 0
      %818 = vmatpush.bf16.msra.mxu0 %v809
      %819 = vmatmul.bf16.gmra.mxu0 %v806
      %v820 = vpop.f32.mrf.mxu0
      %v821 = vadd.f32 %v721, %v820
      %v822 = vpop.f32.mrf.mxu0
      %v823 = vadd.f32 %v723, %v822
      %824 = vmatmul.bf16.gmra.mxu0 %v660
      %v825 = vpop.f32.mrf.mxu0
      %v826 = vadd.f32 %v726, %v825
      %v827 = vpop.f32.mrf.mxu0
      %v828 = vadd.f32 %v728, %v827
      %829 = vmatmul.bf16.gmra.mxu0 %v663
      %v830 = vpop.f32.mrf.mxu0
      %v831 = vadd.f32 %v731, %v830
      %v832 = vpop.f32.mrf.mxu0
      %v833 = vadd.f32 %v733, %v832
      %834 = vmatmul.bf16.gmra.mxu0 %v666
      %v835 = vpop.f32.mrf.mxu0
      %v836 = vadd.f32 %v736, %v835
      %v837 = vpop.f32.mrf.mxu0
      %v838 = vadd.f32 %v738, %v837
      %839 = vmatmul.bf16.gmra.mxu0 %v669
      %v840 = vpop.f32.mrf.mxu0
      %v841 = vadd.f32 %v741, %v840
      %v842 = vpop.f32.mrf.mxu0
      %v843 = vadd.f32 %v743, %v842
      %844 = vmatmul.bf16.gmra.mxu0 %v672
      %v845 = vpop.f32.mrf.mxu0
      %v846 = vadd.f32 %v746, %v845
      %v847 = vpop.f32.mrf.mxu0
      %v848 = vadd.f32 %v748, %v847
      %849 = vmatmul.bf16.gmra.mxu0 %v675
      %v850 = vpop.f32.mrf.mxu0
      %v851 = vadd.f32 %v751, %v850
      %v852 = vpop.f32.mrf.mxu0
      %v853 = vadd.f32 %v753, %v852
      %854 = vmatmul.bf16.gmra.mxu0 %v678
      %v855 = vpop.f32.mrf.mxu0
      %v856 = vadd.f32 %v756, %v855
      %v857 = vpop.f32.mrf.mxu0
      %v858 = vadd.f32 %v758, %v857
      %859 = vmatmul.bf16.gmra.mxu0 %v681
      %v860 = vpop.f32.mrf.mxu0
      %v861 = vadd.f32 %v761, %v860
      %v862 = vpop.f32.mrf.mxu0
      %v863 = vadd.f32 %v763, %v862
      %864 = vmatmul.bf16.gmra.mxu0 %v684
      %v865 = vpop.f32.mrf.mxu0
      %v866 = vadd.f32 %v766, %v865
      %v867 = vpop.f32.mrf.mxu0
      %v868 = vadd.f32 %v768, %v867
      %869 = vmatmul.bf16.gmra.mxu0 %v687
      %v870 = vpop.f32.mrf.mxu0
      %v871 = vadd.f32 %v771, %v870
      %v872 = vpop.f32.mrf.mxu0
      %v873 = vadd.f32 %v773, %v872
      %874 = vmatmul.bf16.gmra.mxu0 %v690
      %v875 = vpop.f32.mrf.mxu0
      %v876 = vadd.f32 %v776, %v875
      %v877 = vpop.f32.mrf.mxu0
      %v878 = vadd.f32 %v778, %v877
      %879 = vmatmul.bf16.gmra.mxu0 %v693
      %v880 = vpop.f32.mrf.mxu0
      %v881 = vadd.f32 %v781, %v880
      %v882 = vpop.f32.mrf.mxu0
      %v883 = vadd.f32 %v783, %v882
      %884 = vmatmul.bf16.gmra.mxu0 %v696
      %v885 = vpop.f32.mrf.mxu0
      %v886 = vadd.f32 %v786, %v885
      %v887 = vpop.f32.mrf.mxu0
      %v888 = vadd.f32 %v788, %v887
      %889 = vmatmul.bf16.gmra.mxu0 %v699
      %v890 = vpop.f32.mrf.mxu0
      %v891 = vadd.f32 %v791, %v890
      %v892 = vpop.f32.mrf.mxu0
      %v893 = vadd.f32 %v793, %v892
      %894 = vmatmul.bf16.gmra.mxu0 %v702
      %v895 = vpop.f32.mrf.mxu0
      %v896 = vadd.f32 %v796, %v895
      %v897 = vpop.f32.mrf.mxu0
      %v898 = vadd.f32 %v798, %v897
      %899 = vdwg.mxu0
      %s900 = scalar_lea.vmem %s1, 12
      %v901 = vld [vmem:[%s900] sm:$0x3]
      %v904 = vunpack.c.l.b16 %v574
      %v905 = vunpack.c.l.b16 %v575
      %v906 = vpack.c.b16 %v905, %v904
      %v908 = vsel %vm393, %v906, 0
      %v911 = vsel %vm707, %v901, 0
      %913 = vmatpush.bf16.msra.mxu0 0
      %914 = vmatpush.bf16.msra.mxu0 0
      %915 = vmatpush.bf16.msra.mxu0 0
      %916 = vmatpush.bf16.msra.mxu0 0
      %917 = vmatpush.bf16.msra.mxu0 0
      %918 = vmatpush.bf16.msra.mxu0 0
      %919 = vmatpush.bf16.msra.mxu0 0
      %920 = vmatpush.bf16.msra.mxu0 %v911
      %921 = vmatmul.bf16.gmra.mxu0 %v663
      %v922 = vpop.f32.mrf.mxu0
      %v923 = vadd.f32 0.0, %v922
      %v924 = vpop.f32.mrf.mxu0
      %v925 = vadd.f32 0.0, %v924
      %926 = vmatmul.bf16.gmra.mxu0 %v666
      %v927 = vpop.f32.mrf.mxu0
      %v928 = vadd.f32 0.0, %v927
      %v929 = vpop.f32.mrf.mxu0
      %v930 = vadd.f32 0.0, %v929
      %931 = vmatmul.bf16.gmra.mxu0 %v669
      %v932 = vpop.f32.mrf.mxu0
      %v933 = vadd.f32 0.0, %v932
      %v934 = vpop.f32.mrf.mxu0
      %v935 = vadd.f32 0.0, %v934
      %936 = vmatmul.bf16.gmra.mxu0 %v672
      %v937 = vpop.f32.mrf.mxu0
      %v938 = vadd.f32 0.0, %v937
      %v939 = vpop.f32.mrf.mxu0
      %v940 = vadd.f32 0.0, %v939
      %941 = vmatmul.bf16.gmra.mxu0 %v675
      %v942 = vpop.f32.mrf.mxu0
      %v943 = vadd.f32 0.0, %v942
      %v944 = vpop.f32.mrf.mxu0
      %v945 = vadd.f32 0.0, %v944
      %946 = vmatmul.bf16.gmra.mxu0 %v678
      %v947 = vpop.f32.mrf.mxu0
      %v948 = vadd.f32 0.0, %v947
      %v949 = vpop.f32.mrf.mxu0
      %v950 = vadd.f32 0.0, %v949
      %951 = vmatmul.bf16.gmra.mxu0 %v681
      %v952 = vpop.f32.mrf.mxu0
      %v953 = vadd.f32 0.0, %v952
      %v954 = vpop.f32.mrf.mxu0
      %v955 = vadd.f32 0.0, %v954
      %956 = vmatmul.bf16.gmra.mxu0 %v684
      %v957 = vpop.f32.mrf.mxu0
      %v958 = vadd.f32 0.0, %v957
      %v959 = vpop.f32.mrf.mxu0
      %v960 = vadd.f32 0.0, %v959
      %961 = vmatmul.bf16.gmra.mxu0 %v687
      %v962 = vpop.f32.mrf.mxu0
      %v963 = vadd.f32 0.0, %v962
      %v964 = vpop.f32.mrf.mxu0
      %v965 = vadd.f32 0.0, %v964
      %966 = vmatmul.bf16.gmra.mxu0 %v690
      %v967 = vpop.f32.mrf.mxu0
      %v968 = vadd.f32 0.0, %v967
      %v969 = vpop.f32.mrf.mxu0
      %v970 = vadd.f32 0.0, %v969
      %971 = vmatmul.bf16.gmra.mxu0 %v693
      %v972 = vpop.f32.mrf.mxu0
      %v973 = vadd.f32 0.0, %v972
      %v974 = vpop.f32.mrf.mxu0
      %v975 = vadd.f32 0.0, %v974
      %976 = vmatmul.bf16.gmra.mxu0 %v696
      %v977 = vpop.f32.mrf.mxu0
      %v978 = vadd.f32 0.0, %v977
      %v979 = vpop.f32.mrf.mxu0
      %v980 = vadd.f32 0.0, %v979
      %981 = vmatmul.bf16.gmra.mxu0 %v699
      %v982 = vpop.f32.mrf.mxu0
      %v983 = vadd.f32 0.0, %v982
      %v984 = vpop.f32.mrf.mxu0
      %v985 = vadd.f32 0.0, %v984
      %986 = vmatmul.bf16.gmra.mxu0 %v702
      %v987 = vpop.f32.mrf.mxu0
      %v988 = vadd.f32 0.0, %v987
      %v989 = vpop.f32.mrf.mxu0
      %v990 = vadd.f32 0.0, %v989
      %991 = vmatmul.bf16.gmra.mxu0 %v705
      %v992 = vpop.f32.mrf.mxu0
      %v993 = vadd.f32 0.0, %v992
      %v994 = vpop.f32.mrf.mxu0
      %v995 = vadd.f32 0.0, %v994
      %996 = vmatmul.bf16.gmra.mxu0 %v908
      %v997 = vpop.f32.mrf.mxu0
      %v998 = vadd.f32 0.0, %v997
      %v999 = vpop.f32.mrf.mxu0
      %v1000 = vadd.f32 0.0, %v999
      %1001 = vdwg.mxu0
      %v1002 = vadd.f32 %v821, %v923
      %v1003 = vadd.f32 %v823, %v925
      %v1004 = vadd.f32 %v826, %v928
      %v1005 = vadd.f32 %v828, %v930
      %v1006 = vadd.f32 %v831, %v933
      %v1007 = vadd.f32 %v833, %v935
      %v1008 = vadd.f32 %v836, %v938
      %v1009 = vadd.f32 %v838, %v940
      %v1010 = vadd.f32 %v841, %v943
      %v1011 = vadd.f32 %v843, %v945
      %v1012 = vadd.f32 %v846, %v948
      %v1013 = vadd.f32 %v848, %v950
      %v1014 = vadd.f32 %v851, %v953
      %v1015 = vadd.f32 %v853, %v955
      %v1016 = vadd.f32 %v856, %v958
      %v1017 = vadd.f32 %v858, %v960
      %v1018 = vadd.f32 %v861, %v963
      %v1019 = vadd.f32 %v863, %v965
      %v1020 = vadd.f32 %v866, %v968
      %v1021 = vadd.f32 %v868, %v970
      %v1022 = vadd.f32 %v871, %v973
      %v1023 = vadd.f32 %v873, %v975
      %v1024 = vadd.f32 %v876, %v978
      %v1025 = vadd.f32 %v878, %v980
      %v1026 = vadd.f32 %v881, %v983
      %v1027 = vadd.f32 %v883, %v985
      %v1028 = vadd.f32 %v886, %v988
      %v1029 = vadd.f32 %v888, %v990
      %v1030 = vadd.f32 %v891, %v993
      %v1031 = vadd.f32 %v893, %v995
      %v1032 = vadd.f32 %v896, %v998
      %v1033 = vadd.f32 %v898, %v1000
      %v1034 = vld [vmem:[#allocation2 + $0x1] sm:$0xff]
      %v1035 = vld [vmem:[#allocation2 + $0x9] sm:$0xff]
      %v1036 = vld [vmem:[#allocation2 + $0x19] sm:$0xff]
      %v1037 = vld [vmem:[#allocation2 + $0x21] sm:$0xff]
      %v1038 = vld [vmem:[#allocation2 + $0x31] sm:$0xff]
      %v1039 = vld [vmem:[#allocation2 + $0x39] sm:$0xff]
      %v1040 = vld [vmem:[#allocation2 + $0x49] sm:$0xff]
      %v1041 = vld [vmem:[#allocation2 + $0x51] sm:$0xff]
      %v1042 = vld [vmem:[#allocation2 + $0x61] sm:$0xff]
      %v1043 = vld [vmem:[#allocation2 + $0x69] sm:$0xff]
      %v1044 = vld [vmem:[#allocation2 + $0x79] sm:$0xff]
      %v1045 = vld [vmem:[#allocation2 + $0x81] sm:$0xff]
      %v1046 = vld [vmem:[#allocation2 + $0x91] sm:$0xff]
      %v1047 = vld [vmem:[#allocation2 + $0x99] sm:$0xff]
      %v1048 = vld [vmem:[#allocation2 + $0xa9] sm:$0xff]
      %v1049 = vld [vmem:[#allocation2 + $0xb1] sm:$0xff]
      %v1050 = vld [vmem:[#allocation2 + $0xc1] sm:$0xff]
      %v1051 = vld [vmem:[#allocation2 + $0xc9] sm:$0xff]
      %v1052 = vld [vmem:[#allocation2 + $0xd9] sm:$0xff]
      %v1053 = vld [vmem:[#allocation2 + $0xe1] sm:$0xff]
      %v1054 = vld [vmem:[#allocation2 + $0xf1] sm:$0xff]
      %v1055 = vld [vmem:[#allocation2 + $0xf9] sm:$0xff]
      %v1056 = vld [vmem:[#allocation2 + $0x109] sm:$0xff]
      %v1057 = vld [vmem:[#allocation2 + $0x111] sm:$0xff]
      %v1058 = vld [vmem:[#allocation2 + $0x121] sm:$0xff]
      %v1059 = vld [vmem:[#allocation2 + $0x129] sm:$0xff]
      %v1060 = vld [vmem:[#allocation2 + $0x139] sm:$0xff]
      %v1061 = vld [vmem:[#allocation2 + $0x141] sm:$0xff]
      %v1062 = vld [vmem:[#allocation2 + $0x151] sm:$0xff]
      %v1063 = vld [vmem:[#allocation2 + $0x159] sm:$0xff]
      %v1064 = vld [vmem:[#allocation2 + $0x169] sm:$0xff]
      %v1065 = vld [vmem:[#allocation2 + $0x171] sm:$0xff]
      %v1066 = vld [vmem:[#allocation2 + $0x181] sm:$0xff]
      %v1067 = vld [vmem:[#allocation2 + $0x189] sm:$0xff]
      %v1068 = vld [vmem:[#allocation2 + $0x199] sm:$0xff]
      %v1069 = vld [vmem:[#allocation2 + $0x1a1] sm:$0xff]
      %v1070 = vpack.c.bf16 %v1034, %v1034
      %v1071 = vpack.c.bf16 %v1035, %v1035
      %v1072 = vpack.c.bf16 %v1036, %v1036
      %v1073 = vpack.c.bf16 %v1037, %v1037
      %v1074 = vpack.c.bf16 %v1038, %v1038
      %v1075 = vpack.c.bf16 %v1039, %v1039
      %v1076 = vpack.c.bf16 %v1040, %v1040
      %v1077 = vpack.c.bf16 %v1041, %v1041
      %v1078 = vpack.c.bf16 %v1042, %v1042
      %v1079 = vpack.c.bf16 %v1043, %v1043
      %v1080 = vpack.c.bf16 %v1044, %v1044
      %v1081 = vpack.c.bf16 %v1045, %v1045
      %v1082 = vpack.c.bf16 %v1046, %v1046
      %v1083 = vpack.c.bf16 %v1047, %v1047
      %v1084 = vpack.c.bf16 %v1048, %v1048
      %v1085 = vpack.c.bf16 %v1049, %v1049
      %v1086 = vpack.c.bf16 %v1050, %v1050
      %v1087 = vpack.c.bf16 %v1051, %v1051
      %v1088 = vpack.c.bf16 %v1052, %v1052
      %v1089 = vpack.c.bf16 %v1053, %v1053
      %v1090 = vpack.c.bf16 %v1054, %v1054
      %v1091 = vpack.c.bf16 %v1055, %v1055
      %v1092 = vpack.c.bf16 %v1056, %v1056
      %v1093 = vpack.c.bf16 %v1057, %v1057
      %v1094 = vpack.c.bf16 %v1058, %v1058
      %v1095 = vpack.c.bf16 %v1059, %v1059
      %v1096 = vpack.c.bf16 %v1060, %v1060
      %v1097 = vpack.c.bf16 %v1061, %v1061
      %v1098 = vpack.c.bf16 %v1062, %v1062
      %v1099 = vpack.c.bf16 %v1063, %v1063
      %v1100 = vpack.c.bf16 %v1064, %v1064
      %v1101 = vpack.c.bf16 %v1065, %v1065
      %v1102 = vpack.c.bf16 %v1066, %v1066
      %v1103 = vpack.c.bf16 %v1067, %v1067
      %v1104 = vpack.c.bf16 %v1068, %v1068
      %v1105 = vpack.c.bf16 %v1069, %v1069
      %s1106 = scalar_lea.vmem %s1, 2
      %v1107 = vld [vmem:[%s1106] sm:$0x3]
      %v1140 = vunpack.c.l.b16 %v1070
      %v1141 = vunpack.c.l.b16 %v1071
      %v1142 = vunpack.c.l.b16 %v1072
      %v1143 = vunpack.c.l.b16 %v1073
      %v1144 = vunpack.c.l.b16 %v1074
      %v1145 = vunpack.c.l.b16 %v1075
      %v1146 = vunpack.c.l.b16 %v1076
      %v1147 = vunpack.c.l.b16 %v1077
      %v1148 = vunpack.c.l.b16 %v1078
      %v1149 = vunpack.c.l.b16 %v1079
      %v1150 = vunpack.c.l.b16 %v1080
      %v1151 = vunpack.c.l.b16 %v1081
      %v1152 = vunpack.c.l.b16 %v1082
      %v1153 = vunpack.c.l.b16 %v1083
      %v1154 = vunpack.c.l.b16 %v1084
      %v1155 = vunpack.c.l.b16 %v1085
      %v1156 = vunpack.c.l.b16 %v1086
      %v1157 = vunpack.c.l.b16 %v1087
      %v1158 = vunpack.c.l.b16 %v1088
      %v1159 = vunpack.c.l.b16 %v1089
      %v1160 = vunpack.c.l.b16 %v1090
      %v1161 = vunpack.c.l.b16 %v1091
      %v1162 = vunpack.c.l.b16 %v1092
      %v1163 = vunpack.c.l.b16 %v1093
      %v1164 = vunpack.c.l.b16 %v1094
      %v1165 = vunpack.c.l.b16 %v1095
      %v1166 = vunpack.c.l.b16 %v1096
      %v1167 = vunpack.c.l.b16 %v1097
      %v1168 = vunpack.c.l.b16 %v1098
      %v1169 = vunpack.c.l.b16 %v1099
      %v1170 = vunpack.c.l.b16 %v1100
      %v1171 = vunpack.c.l.b16 %v1101
      %v1172 = vpack.c.b16 %v1141, %v1140
      %v1173 = vpack.c.b16 %v1143, %v1142
      %v1174 = vpack.c.b16 %v1145, %v1144
      %v1175 = vpack.c.b16 %v1147, %v1146
      %v1176 = vpack.c.b16 %v1149, %v1148
      %v1177 = vpack.c.b16 %v1151, %v1150
      %v1178 = vpack.c.b16 %v1153, %v1152
      %v1179 = vpack.c.b16 %v1155, %v1154
      %v1180 = vpack.c.b16 %v1157, %v1156
      %v1181 = vpack.c.b16 %v1159, %v1158
      %v1182 = vpack.c.b16 %v1161, %v1160
      %v1183 = vpack.c.b16 %v1163, %v1162
      %v1184 = vpack.c.b16 %v1165, %v1164
      %v1185 = vpack.c.b16 %v1167, %v1166
      %v1186 = vpack.c.b16 %v1169, %v1168
      %v1187 = vpack.c.b16 %v1171, %v1170
      %v1189 = vsel %vm393, %v1172, 0
      %v1192 = vsel %vm393, %v1173, 0
      %v1195 = vsel %vm393, %v1174, 0
      %v1198 = vsel %vm393, %v1175, 0
      %v1201 = vsel %vm393, %v1176, 0
      %v1204 = vsel %vm393, %v1177, 0
      %v1207 = vsel %vm393, %v1178, 0
      %v1210 = vsel %vm393, %v1179, 0
      %v1213 = vsel %vm393, %v1180, 0
      %v1216 = vsel %vm393, %v1181, 0
      %v1219 = vsel %vm393, %v1182, 0
      %v1222 = vsel %vm393, %v1183, 0
      %v1225 = vsel %vm393, %v1184, 0
      %v1228 = vsel %vm393, %v1185, 0
      %v1231 = vsel %vm393, %v1186, 0
      %v1234 = vsel %vm393, %v1187, 0
      %v1237 = vsel %vm707, %v1107, 0
      %1239 = vmatpush.bf16.msra.mxu0 0
      %1240 = vmatpush.bf16.msra.mxu0 0
      %1241 = vmatpush.bf16.msra.mxu0 0
      %1242 = vmatpush.bf16.msra.mxu0 0
      %1243 = vmatpush.bf16.msra.mxu0 0
      %1244 = vmatpush.bf16.msra.mxu0 0
      %1245 = vmatpush.bf16.msra.mxu0 0
      %1246 = vmatpush.bf16.msra.mxu0 %v1237
      %1247 = vmatmul.bf16.gmra.mxu0 %v1189
      %v1248 = vpop.f32.mrf.mxu0
      %v1249 = vadd.f32 0.0, %v1248
      %v1250 = vpop.f32.mrf.mxu0
      %v1251 = vadd.f32 0.0, %v1250
      %1252 = vmatmul.bf16.gmra.mxu0 %v1192
      %v1253 = vpop.f32.mrf.mxu0
      %v1254 = vadd.f32 0.0, %v1253
      %v1255 = vpop.f32.mrf.mxu0
      %v1256 = vadd.f32 0.0, %v1255
      %1257 = vmatmul.bf16.gmra.mxu0 %v1195
      %v1258 = vpop.f32.mrf.mxu0
      %v1259 = vadd.f32 0.0, %v1258
      %v1260 = vpop.f32.mrf.mxu0
      %v1261 = vadd.f32 0.0, %v1260
      %1262 = vmatmul.bf16.gmra.mxu0 %v1198
      %v1263 = vpop.f32.mrf.mxu0
      %v1264 = vadd.f32 0.0, %v1263
      %v1265 = vpop.f32.mrf.mxu0
      %v1266 = vadd.f32 0.0, %v1265
      %1267 = vmatmul.bf16.gmra.mxu0 %v1201
      %v1268 = vpop.f32.mrf.mxu0
      %v1269 = vadd.f32 0.0, %v1268
      %v1270 = vpop.f32.mrf.mxu0
      %v1271 = vadd.f32 0.0, %v1270
      %1272 = vmatmul.bf16.gmra.mxu0 %v1204
      %v1273 = vpop.f32.mrf.mxu0
      %v1274 = vadd.f32 0.0, %v1273
      %v1275 = vpop.f32.mrf.mxu0
      %v1276 = vadd.f32 0.0, %v1275
      %1277 = vmatmul.bf16.gmra.mxu0 %v1207
      %v1278 = vpop.f32.mrf.mxu0
      %v1279 = vadd.f32 0.0, %v1278
      %v1280 = vpop.f32.mrf.mxu0
      %v1281 = vadd.f32 0.0, %v1280
      %1282 = vmatmul.bf16.gmra.mxu0 %v1210
      %v1283 = vpop.f32.mrf.mxu0
      %v1284 = vadd.f32 0.0, %v1283
      %v1285 = vpop.f32.mrf.mxu0
      %v1286 = vadd.f32 0.0, %v1285
      %1287 = vmatmul.bf16.gmra.mxu0 %v1213
      %v1288 = vpop.f32.mrf.mxu0
      %v1289 = vadd.f32 0.0, %v1288
      %v1290 = vpop.f32.mrf.mxu0
      %v1291 = vadd.f32 0.0, %v1290
      %1292 = vmatmul.bf16.gmra.mxu0 %v1216
      %v1293 = vpop.f32.mrf.mxu0
      %v1294 = vadd.f32 0.0, %v1293
      %v1295 = vpop.f32.mrf.mxu0
      %v1296 = vadd.f32 0.0, %v1295
      %1297 = vmatmul.bf16.gmra.mxu0 %v1219
      %v1298 = vpop.f32.mrf.mxu0
      %v1299 = vadd.f32 0.0, %v1298
      %v1300 = vpop.f32.mrf.mxu0
      %v1301 = vadd.f32 0.0, %v1300
      %1302 = vmatmul.bf16.gmra.mxu0 %v1222
      %v1303 = vpop.f32.mrf.mxu0
      %v1304 = vadd.f32 0.0, %v1303
      %v1305 = vpop.f32.mrf.mxu0
      %v1306 = vadd.f32 0.0, %v1305
      %1307 = vmatmul.bf16.gmra.mxu0 %v1225
      %v1308 = vpop.f32.mrf.mxu0
      %v1309 = vadd.f32 0.0, %v1308
      %v1310 = vpop.f32.mrf.mxu0
      %v1311 = vadd.f32 0.0, %v1310
      %1312 = vmatmul.bf16.gmra.mxu0 %v1228
      %v1313 = vpop.f32.mrf.mxu0
      %v1314 = vadd.f32 0.0, %v1313
      %v1315 = vpop.f32.mrf.mxu0
      %v1316 = vadd.f32 0.0, %v1315
      %1317 = vmatmul.bf16.gmra.mxu0 %v1231
      %v1318 = vpop.f32.mrf.mxu0
      %v1319 = vadd.f32 0.0, %v1318
      %v1320 = vpop.f32.mrf.mxu0
      %v1321 = vadd.f32 0.0, %v1320
      %1322 = vmatmul.bf16.gmra.mxu0 %v1234
      %v1323 = vpop.f32.mrf.mxu0
      %v1324 = vadd.f32 0.0, %v1323
      %v1325 = vpop.f32.mrf.mxu0
      %v1326 = vadd.f32 0.0, %v1325
      %1327 = vdwg.mxu0
      %v1328 = vadd.f32 %v1002, %v1249
      %v1329 = vadd.f32 %v1003, %v1251
      %v1330 = vadd.f32 %v1004, %v1254
      %v1331 = vadd.f32 %v1005, %v1256
      %v1332 = vadd.f32 %v1006, %v1259
      %v1333 = vadd.f32 %v1007, %v1261
      %v1334 = vadd.f32 %v1008, %v1264
      %v1335 = vadd.f32 %v1009, %v1266
      %v1336 = vadd.f32 %v1010, %v1269
      %v1337 = vadd.f32 %v1011, %v1271
      %v1338 = vadd.f32 %v1012, %v1274
      %v1339 = vadd.f32 %v1013, %v1276
      %v1340 = vadd.f32 %v1014, %v1279
      %v1341 = vadd.f32 %v1015, %v1281
      %v1342 = vadd.f32 %v1016, %v1284
      %v1343 = vadd.f32 %v1017, %v1286
      %v1344 = vadd.f32 %v1018, %v1289
      %v1345 = vadd.f32 %v1019, %v1291
      %v1346 = vadd.f32 %v1020, %v1294
      %v1347 = vadd.f32 %v1021, %v1296
      %v1348 = vadd.f32 %v1022, %v1299
      %v1349 = vadd.f32 %v1023, %v1301
      %v1350 = vadd.f32 %v1024, %v1304
      %v1351 = vadd.f32 %v1025, %v1306
      %v1352 = vadd.f32 %v1026, %v1309
      %v1353 = vadd.f32 %v1027, %v1311
      %v1354 = vadd.f32 %v1028, %v1314
      %v1355 = vadd.f32 %v1029, %v1316
      %v1356 = vadd.f32 %v1030, %v1319
      %v1357 = vadd.f32 %v1031, %v1321
      %v1358 = vadd.f32 %v1032, %v1324
      %v1359 = vadd.f32 %v1033, %v1326
      %s1360 = scalar_lea.vmem %s1, 8
      %v1361 = vld [vmem:[%s1360] sm:$0x3]
      %v1364 = vunpack.c.l.b16 %v1102
      %v1365 = vunpack.c.l.b16 %v1103
      %v1366 = vpack.c.b16 %v1365, %v1364
      %v1368 = vsel %vm393, %v1366, 0
      %v1371 = vsel %vm707, %v1361, 0
      %1373 = vmatpush.bf16.msra.mxu0 0
      %1374 = vmatpush.bf16.msra.mxu0 0
      %1375 = vmatpush.bf16.msra.mxu0 0
      %1376 = vmatpush.bf16.msra.mxu0 0
      %1377 = vmatpush.bf16.msra.mxu0 0
      %1378 = vmatpush.bf16.msra.mxu0 0
      %1379 = vmatpush.bf16.msra.mxu0 0
      %1380 = vmatpush.bf16.msra.mxu0 %v1371
      %1381 = vmatmul.bf16.gmra.mxu0 %v1192
      %v1382 = vpop.f32.mrf.mxu0
      %v1383 = vadd.f32 0.0, %v1382
      %v1384 = vpop.f32.mrf.mxu0
      %v1385 = vadd.f32 0.0, %v1384
      %1386 = vmatmul.bf16.gmra.mxu0 %v1195
      %v1387 = vpop.f32.mrf.mxu0
      %v1388 = vadd.f32 0.0, %v1387
      %v1389 = vpop.f32.mrf.mxu0
      %v1390 = vadd.f32 0.0, %v1389
      %1391 = vmatmul.bf16.gmra.mxu0 %v1198
      %v1392 = vpop.f32.mrf.mxu0
      %v1393 = vadd.f32 0.0, %v1392
      %v1394 = vpop.f32.mrf.mxu0
      %v1395 = vadd.f32 0.0, %v1394
      %1396 = vmatmul.bf16.gmra.mxu0 %v1201
      %v1397 = vpop.f32.mrf.mxu0
      %v1398 = vadd.f32 0.0, %v1397
      %v1399 = vpop.f32.mrf.mxu0
      %v1400 = vadd.f32 0.0, %v1399
      %1401 = vmatmul.bf16.gmra.mxu0 %v1204
      %v1402 = vpop.f32.mrf.mxu0
      %v1403 = vadd.f32 0.0, %v1402
      %v1404 = vpop.f32.mrf.mxu0
      %v1405 = vadd.f32 0.0, %v1404
      %1406 = vmatmul.bf16.gmra.mxu0 %v1207
      %v1407 = vpop.f32.mrf.mxu0
      %v1408 = vadd.f32 0.0, %v1407
      %v1409 = vpop.f32.mrf.mxu0
      %v1410 = vadd.f32 0.0, %v1409
      %1411 = vmatmul.bf16.gmra.mxu0 %v1210
      %v1412 = vpop.f32.mrf.mxu0
      %v1413 = vadd.f32 0.0, %v1412
      %v1414 = vpop.f32.mrf.mxu0
      %v1415 = vadd.f32 0.0, %v1414
      %1416 = vmatmul.bf16.gmra.mxu0 %v1213
      %v1417 = vpop.f32.mrf.mxu0
      %v1418 = vadd.f32 0.0, %v1417
      %v1419 = vpop.f32.mrf.mxu0
      %v1420 = vadd.f32 0.0, %v1419
      %1421 = vmatmul.bf16.gmra.mxu0 %v1216
      %v1422 = vpop.f32.mrf.mxu0
      %v1423 = vadd.f32 0.0, %v1422
      %v1424 = vpop.f32.mrf.mxu0
      %v1425 = vadd.f32 0.0, %v1424
      %1426 = vmatmul.bf16.gmra.mxu0 %v1219
      %v1427 = vpop.f32.mrf.mxu0
      %v1428 = vadd.f32 0.0, %v1427
      %v1429 = vpop.f32.mrf.mxu0
      %v1430 = vadd.f32 0.0, %v1429
      %1431 = vmatmul.bf16.gmra.mxu0 %v1222
      %v1432 = vpop.f32.mrf.mxu0
      %v1433 = vadd.f32 0.0, %v1432
      %v1434 = vpop.f32.mrf.mxu0
      %v1435 = vadd.f32 0.0, %v1434
      %1436 = vmatmul.bf16.gmra.mxu0 %v1225
      %v1437 = vpop.f32.mrf.mxu0
      %v1438 = vadd.f32 0.0, %v1437
      %v1439 = vpop.f32.mrf.mxu0
      %v1440 = vadd.f32 0.0, %v1439
      %1441 = vmatmul.bf16.gmra.mxu0 %v1228
      %v1442 = vpop.f32.mrf.mxu0
      %v1443 = vadd.f32 0.0, %v1442
      %v1444 = vpop.f32.mrf.mxu0
      %v1445 = vadd.f32 0.0, %v1444
      %1446 = vmatmul.bf16.gmra.mxu0 %v1231
      %v1447 = vpop.f32.mrf.mxu0
      %v1448 = vadd.f32 0.0, %v1447
      %v1449 = vpop.f32.mrf.mxu0
      %v1450 = vadd.f32 0.0, %v1449
      %1451 = vmatmul.bf16.gmra.mxu0 %v1234
      %v1452 = vpop.f32.mrf.mxu0
      %v1453 = vadd.f32 0.0, %v1452
      %v1454 = vpop.f32.mrf.mxu0
      %v1455 = vadd.f32 0.0, %v1454
      %1456 = vmatmul.bf16.gmra.mxu0 %v1368
      %v1457 = vpop.f32.mrf.mxu0
      %v1458 = vadd.f32 0.0, %v1457
      %v1459 = vpop.f32.mrf.mxu0
      %v1460 = vadd.f32 0.0, %v1459
      %1461 = vdwg.mxu0
      %v1462 = vadd.f32 %v1328, %v1383
      %v1463 = vadd.f32 %v1329, %v1385
      %v1464 = vadd.f32 %v1330, %v1388
      %v1465 = vadd.f32 %v1331, %v1390
      %v1466 = vadd.f32 %v1332, %v1393
      %v1467 = vadd.f32 %v1333, %v1395
      %v1468 = vadd.f32 %v1334, %v1398
      %v1469 = vadd.f32 %v1335, %v1400
      %v1470 = vadd.f32 %v1336, %v1403
      %v1471 = vadd.f32 %v1337, %v1405
      %v1472 = vadd.f32 %v1338, %v1408
      %v1473 = vadd.f32 %v1339, %v1410
      %v1474 = vadd.f32 %v1340, %v1413
      %v1475 = vadd.f32 %v1341, %v1415
      %v1476 = vadd.f32 %v1342, %v1418
      %v1477 = vadd.f32 %v1343, %v1420
      %v1478 = vadd.f32 %v1344, %v1423
      %v1479 = vadd.f32 %v1345, %v1425
      %v1480 = vadd.f32 %v1346, %v1428
      %v1481 = vadd.f32 %v1347, %v1430
      %v1482 = vadd.f32 %v1348, %v1433
      %v1483 = vadd.f32 %v1349, %v1435
      %v1484 = vadd.f32 %v1350, %v1438
      %v1485 = vadd.f32 %v1351, %v1440
      %v1486 = vadd.f32 %v1352, %v1443
      %v1487 = vadd.f32 %v1353, %v1445
      %v1488 = vadd.f32 %v1354, %v1448
      %v1489 = vadd.f32 %v1355, %v1450
      %v1490 = vadd.f32 %v1356, %v1453
      %v1491 = vadd.f32 %v1357, %v1455
      %v1492 = vadd.f32 %v1358, %v1458
      %v1493 = vadd.f32 %v1359, %v1460
      %s1494 = scalar_lea.vmem %s1, 14
      %v1495 = vld [vmem:[%s1494] sm:$0x3]
      %v1498 = vunpack.c.l.b16 %v1104
      %v1499 = vunpack.c.l.b16 %v1105
      %v1500 = vpack.c.b16 %v1499, %v1498
      %v1502 = vsel %vm393, %v1500, 0
      %v1505 = vsel %vm707, %v1495, 0
      %1507 = vmatpush.bf16.msra.mxu0 0
      %1508 = vmatpush.bf16.msra.mxu0 0
      %1509 = vmatpush.bf16.msra.mxu0 0
      %1510 = vmatpush.bf16.msra.mxu0 0
      %1511 = vmatpush.bf16.msra.mxu0 0
      %1512 = vmatpush.bf16.msra.mxu0 0
      %1513 = vmatpush.bf16.msra.mxu0 0
      %1514 = vmatpush.bf16.msra.mxu0 %v1505
      %1515 = vmatmul.bf16.gmra.mxu0 %v1195
      %v1516 = vpop.f32.mrf.mxu0
      %v1517 = vadd.f32 0.0, %v1516
      %v1518 = vpop.f32.mrf.mxu0
      %v1519 = vadd.f32 0.0, %v1518
      %1520 = vmatmul.bf16.gmra.mxu0 %v1198
      %v1521 = vpop.f32.mrf.mxu0
      %v1522 = vadd.f32 0.0, %v1521
      %v1523 = vpop.f32.mrf.mxu0
      %v1524 = vadd.f32 0.0, %v1523
      %1525 = vmatmul.bf16.gmra.mxu0 %v1201
      %v1526 = vpop.f32.mrf.mxu0
      %v1527 = vadd.f32 0.0, %v1526
      %v1528 = vpop.f32.mrf.mxu0
      %v1529 = vadd.f32 0.0, %v1528
      %1530 = vmatmul.bf16.gmra.mxu0 %v1204
      %v1531 = vpop.f32.mrf.mxu0
      %v1532 = vadd.f32 0.0, %v1531
      %v1533 = vpop.f32.mrf.mxu0
      %v1534 = vadd.f32 0.0, %v1533
      %1535 = vmatmul.bf16.gmra.mxu0 %v1207
      %v1536 = vpop.f32.mrf.mxu0
      %v1537 = vadd.f32 0.0, %v1536
      %v1538 = vpop.f32.mrf.mxu0
      %v1539 = vadd.f32 0.0, %v1538
      %1540 = vmatmul.bf16.gmra.mxu0 %v1210
      %v1541 = vpop.f32.mrf.mxu0
      %v1542 = vadd.f32 0.0, %v1541
      %v1543 = vpop.f32.mrf.mxu0
      %v1544 = vadd.f32 0.0, %v1543
      %1545 = vmatmul.bf16.gmra.mxu0 %v1213
      %v1546 = vpop.f32.mrf.mxu0
      %v1547 = vadd.f32 0.0, %v1546
      %v1548 = vpop.f32.mrf.mxu0
      %v1549 = vadd.f32 0.0, %v1548
      %1550 = vmatmul.bf16.gmra.mxu0 %v1216
      %v1551 = vpop.f32.mrf.mxu0
      %v1552 = vadd.f32 0.0, %v1551
      %v1553 = vpop.f32.mrf.mxu0
      %v1554 = vadd.f32 0.0, %v1553
      %1555 = vmatmul.bf16.gmra.mxu0 %v1219
      %v1556 = vpop.f32.mrf.mxu0
      %v1557 = vadd.f32 0.0, %v1556
      %v1558 = vpop.f32.mrf.mxu0
      %v1559 = vadd.f32 0.0, %v1558
      %1560 = vmatmul.bf16.gmra.mxu0 %v1222
      %v1561 = vpop.f32.mrf.mxu0
      %v1562 = vadd.f32 0.0, %v1561
      %v1563 = vpop.f32.mrf.mxu0
      %v1564 = vadd.f32 0.0, %v1563
      %1565 = vmatmul.bf16.gmra.mxu0 %v1225
      %v1566 = vpop.f32.mrf.mxu0
      %v1567 = vadd.f32 0.0, %v1566
      %v1568 = vpop.f32.mrf.mxu0
      %v1569 = vadd.f32 0.0, %v1568
      %1570 = vmatmul.bf16.gmra.mxu0 %v1228
      %v1571 = vpop.f32.mrf.mxu0
      %v1572 = vadd.f32 0.0, %v1571
      %v1573 = vpop.f32.mrf.mxu0
      %v1574 = vadd.f32 0.0, %v1573
      %1575 = vmatmul.bf16.gmra.mxu0 %v1231
      %v1576 = vpop.f32.mrf.mxu0
      %v1577 = vadd.f32 0.0, %v1576
      %v1578 = vpop.f32.mrf.mxu0
      %v1579 = vadd.f32 0.0, %v1578
      %1580 = vmatmul.bf16.gmra.mxu0 %v1234
      %v1581 = vpop.f32.mrf.mxu0
      %v1582 = vadd.f32 0.0, %v1581
      %v1583 = vpop.f32.mrf.mxu0
      %v1584 = vadd.f32 0.0, %v1583
      %1585 = vmatmul.bf16.gmra.mxu0 %v1368
      %v1586 = vpop.f32.mrf.mxu0
      %v1587 = vadd.f32 0.0, %v1586
      %v1588 = vpop.f32.mrf.mxu0
      %v1589 = vadd.f32 0.0, %v1588
      %1590 = vmatmul.bf16.gmra.mxu0 %v1502
      %v1591 = vpop.f32.mrf.mxu0
      %v1592 = vadd.f32 0.0, %v1591
      %v1593 = vpop.f32.mrf.mxu0
      %v1594 = vadd.f32 0.0, %v1593
      %1595 = vdwg.mxu0
      %v1596 = vadd.f32 %v1462, %v1517
      %v1597 = vadd.f32 %v1463, %v1519
      %v1598 = vadd.f32 %v1464, %v1522
      %v1599 = vadd.f32 %v1465, %v1524
      %v1600 = vadd.f32 %v1466, %v1527
      %v1601 = vadd.f32 %v1467, %v1529
      %v1602 = vadd.f32 %v1468, %v1532
      %v1603 = vadd.f32 %v1469, %v1534
      %v1604 = vadd.f32 %v1470, %v1537
      %v1605 = vadd.f32 %v1471, %v1539
      %v1606 = vadd.f32 %v1472, %v1542
      %v1607 = vadd.f32 %v1473, %v1544
      %v1608 = vadd.f32 %v1474, %v1547
      %v1609 = vadd.f32 %v1475, %v1549
      %v1610 = vadd.f32 %v1476, %v1552
      %v1611 = vadd.f32 %v1477, %v1554
      %v1612 = vadd.f32 %v1478, %v1557
      %v1613 = vadd.f32 %v1479, %v1559
      %v1614 = vadd.f32 %v1480, %v1562
      %v1615 = vadd.f32 %v1481, %v1564
      %v1616 = vadd.f32 %v1482, %v1567
      %v1617 = vadd.f32 %v1483, %v1569
      %v1618 = vadd.f32 %v1484, %v1572
      %v1619 = vadd.f32 %v1485, %v1574
      %v1620 = vadd.f32 %v1486, %v1577
      %v1621 = vadd.f32 %v1487, %v1579
      %v1622 = vadd.f32 %v1488, %v1582
      %v1623 = vadd.f32 %v1489, %v1584
      %v1624 = vadd.f32 %v1490, %v1587
      %v1625 = vadd.f32 %v1491, %v1589
      %v1626 = vadd.f32 %v1492, %v1592
      %v1627 = vadd.f32 %v1493, %v1594
      %v1628 = vld [vmem:[#allocation2 + $0x2] sm:$0xff]
      %v1629 = vld [vmem:[#allocation2 + $0xa] sm:$0xff]
      %v1630 = vld [vmem:[#allocation2 + $0x1a] sm:$0xff]
      %v1631 = vld [vmem:[#allocation2 + $0x22] sm:$0xff]
      %v1632 = vld [vmem:[#allocation2 + $0x32] sm:$0xff]
      %v1633 = vld [vmem:[#allocation2 + $0x3a] sm:$0xff]
      %v1634 = vld [vmem:[#allocation2 + $0x4a] sm:$0xff]
      %v1635 = vld [vmem:[#allocation2 + $0x52] sm:$0xff]
      %v1636 = vld [vmem:[#allocation2 + $0x62] sm:$0xff]
      %v1637 = vld [vmem:[#allocation2 + $0x6a] sm:$0xff]
      %v1638 = vld [vmem:[#allocation2 + $0x7a] sm:$0xff]
      %v1639 = vld [vmem:[#allocation2 + $0x82] sm:$0xff]
      %v1640 = vld [vmem:[#allocation2 + $0x92] sm:$0xff]
      %v1641 = vld [vmem:[#allocation2 + $0x9a] sm:$0xff]
      %v1642 = vld [vmem:[#allocation2 + $0xaa] sm:$0xff]
      %v1643 = vld [vmem:[#allocation2 + $0xb2] sm:$0xff]
      %v1644 = vld [vmem:[#allocation2 + $0xc2] sm:$0xff]
      %v1645 = vld [vmem:[#allocation2 + $0xca] sm:$0xff]
      %v1646 = vld [vmem:[#allocation2 + $0xda] sm:$0xff]
      %v1647 = vld [vmem:[#allocation2 + $0xe2] sm:$0xff]
      %v1648 = vld [vmem:[#allocation2 + $0xf2] sm:$0xff]
      %v1649 = vld [vmem:[#allocation2 + $0xfa] sm:$0xff]
      %v1650 = vld [vmem:[#allocation2 + $0x10a] sm:$0xff]
      %v1651 = vld [vmem:[#allocation2 + $0x112] sm:$0xff]
      %v1652 = vld [vmem:[#allocation2 + $0x122] sm:$0xff]
      %v1653 = vld [vmem:[#allocation2 + $0x12a] sm:$0xff]
      %v1654 = vld [vmem:[#allocation2 + $0x13a] sm:$0xff]
      %v1655 = vld [vmem:[#allocation2 + $0x142] sm:$0xff]
      %v1656 = vld [vmem:[#allocation2 + $0x152] sm:$0xff]
      %v1657 = vld [vmem:[#allocation2 + $0x15a] sm:$0xff]
      %v1658 = vld [vmem:[#allocation2 + $0x16a] sm:$0xff]
      %v1659 = vld [vmem:[#allocation2 + $0x172] sm:$0xff]
      %v1660 = vld [vmem:[#allocation2 + $0x182] sm:$0xff]
      %v1661 = vld [vmem:[#allocation2 + $0x18a] sm:$0xff]
      %v1662 = vld [vmem:[#allocation2 + $0x19a] sm:$0xff]
      %v1663 = vld [vmem:[#allocation2 + $0x1a2] sm:$0xff]
      %v1664 = vpack.c.bf16 %v1628, %v1628
      %v1665 = vpack.c.bf16 %v1629, %v1629
      %v1666 = vpack.c.bf16 %v1630, %v1630
      %v1667 = vpack.c.bf16 %v1631, %v1631
      %v1668 = vpack.c.bf16 %v1632, %v1632
      %v1669 = vpack.c.bf16 %v1633, %v1633
      %v1670 = vpack.c.bf16 %v1634, %v1634
      %v1671 = vpack.c.bf16 %v1635, %v1635
      %v1672 = vpack.c.bf16 %v1636, %v1636
      %v1673 = vpack.c.bf16 %v1637, %v1637
      %v1674 = vpack.c.bf16 %v1638, %v1638
      %v1675 = vpack.c.bf16 %v1639, %v1639
      %v1676 = vpack.c.bf16 %v1640, %v1640
      %v1677 = vpack.c.bf16 %v1641, %v1641
      %v1678 = vpack.c.bf16 %v1642, %v1642
      %v1679 = vpack.c.bf16 %v1643, %v1643
      %v1680 = vpack.c.bf16 %v1644, %v1644
      %v1681 = vpack.c.bf16 %v1645, %v1645
      %v1682 = vpack.c.bf16 %v1646, %v1646
      %v1683 = vpack.c.bf16 %v1647, %v1647
      %v1684 = vpack.c.bf16 %v1648, %v1648
      %v1685 = vpack.c.bf16 %v1649, %v1649
      %v1686 = vpack.c.bf16 %v1650, %v1650
      %v1687 = vpack.c.bf16 %v1651, %v1651
      %v1688 = vpack.c.bf16 %v1652, %v1652
      %v1689 = vpack.c.bf16 %v1653, %v1653
      %v1690 = vpack.c.bf16 %v1654, %v1654
      %v1691 = vpack.c.bf16 %v1655, %v1655
      %v1692 = vpack.c.bf16 %v1656, %v1656
      %v1693 = vpack.c.bf16 %v1657, %v1657
      %v1694 = vpack.c.bf16 %v1658, %v1658
      %v1695 = vpack.c.bf16 %v1659, %v1659
      %v1696 = vpack.c.bf16 %v1660, %v1660
      %v1697 = vpack.c.bf16 %v1661, %v1661
      %v1698 = vpack.c.bf16 %v1662, %v1662
      %v1699 = vpack.c.bf16 %v1663, %v1663
      %s1700 = scalar_lea.vmem %s1, 4
      %v1701 = vld [vmem:[%s1700] sm:$0x3]
      %v1734 = vunpack.c.l.b16 %v1664
      %v1735 = vunpack.c.l.b16 %v1665
      %v1736 = vunpack.c.l.b16 %v1666
      %v1737 = vunpack.c.l.b16 %v1667
      %v1738 = vunpack.c.l.b16 %v1668
      %v1739 = vunpack.c.l.b16 %v1669
      %v1740 = vunpack.c.l.b16 %v1670
      %v1741 = vunpack.c.l.b16 %v1671
      %v1742 = vunpack.c.l.b16 %v1672
      %v1743 = vunpack.c.l.b16 %v1673
      %v1744 = vunpack.c.l.b16 %v1674
      %v1745 = vunpack.c.l.b16 %v1675
      %v1746 = vunpack.c.l.b16 %v1676
      %v1747 = vunpack.c.l.b16 %v1677
      %v1748 = vunpack.c.l.b16 %v1678
      %v1749 = vunpack.c.l.b16 %v1679
      %v1750 = vunpack.c.l.b16 %v1680
      %v1751 = vunpack.c.l.b16 %v1681
      %v1752 = vunpack.c.l.b16 %v1682
      %v1753 = vunpack.c.l.b16 %v1683
      %v1754 = vunpack.c.l.b16 %v1684
      %v1755 = vunpack.c.l.b16 %v1685
      %v1756 = vunpack.c.l.b16 %v1686
      %v1757 = vunpack.c.l.b16 %v1687
      %v1758 = vunpack.c.l.b16 %v1688
      %v1759 = vunpack.c.l.b16 %v1689
      %v1760 = vunpack.c.l.b16 %v1690
      %v1761 = vunpack.c.l.b16 %v1691
      %v1762 = vunpack.c.l.b16 %v1692
      %v1763 = vunpack.c.l.b16 %v1693
      %v1764 = vunpack.c.l.b16 %v1694
      %v1765 = vunpack.c.l.b16 %v1695
      %v1766 = vpack.c.b16 %v1735, %v1734
      %v1767 = vpack.c.b16 %v1737, %v1736
      %v1768 = vpack.c.b16 %v1739, %v1738
      %v1769 = vpack.c.b16 %v1741, %v1740
      %v1770 = vpack.c.b16 %v1743, %v1742
      %v1771 = vpack.c.b16 %v1745, %v1744
      %v1772 = vpack.c.b16 %v1747, %v1746
      %v1773 = vpack.c.b16 %v1749, %v1748
      %v1774 = vpack.c.b16 %v1751, %v1750
      %v1775 = vpack.c.b16 %v1753, %v1752
      %v1776 = vpack.c.b16 %v1755, %v1754
      %v1777 = vpack.c.b16 %v1757, %v1756
      %v1778 = vpack.c.b16 %v1759, %v1758
      %v1779 = vpack.c.b16 %v1761, %v1760
      %v1780 = vpack.c.b16 %v1763, %v1762
      %v1781 = vpack.c.b16 %v1765, %v1764
      %v1783 = vsel %vm393, %v1766, 0
      %v1786 = vsel %vm393, %v1767, 0
      %v1789 = vsel %vm393, %v1768, 0
      %v1792 = vsel %vm393, %v1769, 0
      %v1795 = vsel %vm393, %v1770, 0
      %v1798 = vsel %vm393, %v1771, 0
      %v1801 = vsel %vm393, %v1772, 0
      %v1804 = vsel %vm393, %v1773, 0
      %v1807 = vsel %vm393, %v1774, 0
      %v1810 = vsel %vm393, %v1775, 0
      %v1813 = vsel %vm393, %v1776, 0
      %v1816 = vsel %vm393, %v1777, 0
      %v1819 = vsel %vm393, %v1778, 0
      %v1822 = vsel %vm393, %v1779, 0
      %v1825 = vsel %vm393, %v1780, 0
      %v1828 = vsel %vm393, %v1781, 0
      %v1831 = vsel %vm707, %v1701, 0
      %1833 = vmatpush.bf16.msra.mxu0 0
      %1834 = vmatpush.bf16.msra.mxu0 0
      %1835 = vmatpush.bf16.msra.mxu0 0
      %1836 = vmatpush.bf16.msra.mxu0 0
      %1837 = vmatpush.bf16.msra.mxu0 0
      %1838 = vmatpush.bf16.msra.mxu0 0
      %1839 = vmatpush.bf16.msra.mxu0 0
      %1840 = vmatpush.bf16.msra.mxu0 %v1831
      %1841 = vmatmul.bf16.gmra.mxu0 %v1783
      %v1842 = vpop.f32.mrf.mxu0
      %v1843 = vadd.f32 0.0, %v1842
      %v1844 = vpop.f32.mrf.mxu0
      %v1845 = vadd.f32 0.0, %v1844
      %1846 = vmatmul.bf16.gmra.mxu0 %v1786
      %v1847 = vpop.f32.mrf.mxu0
      %v1848 = vadd.f32 0.0, %v1847
      %v1849 = vpop.f32.mrf.mxu0
      %v1850 = vadd.f32 0.0, %v1849
      %1851 = vmatmul.bf16.gmra.mxu0 %v1789
      %v1852 = vpop.f32.mrf.mxu0
      %v1853 = vadd.f32 0.0, %v1852
      %v1854 = vpop.f32.mrf.mxu0
      %v1855 = vadd.f32 0.0, %v1854
      %1856 = vmatmul.bf16.gmra.mxu0 %v1792
      %v1857 = vpop.f32.mrf.mxu0
      %v1858 = vadd.f32 0.0, %v1857
      %v1859 = vpop.f32.mrf.mxu0
      %v1860 = vadd.f32 0.0, %v1859
      %1861 = vmatmul.bf16.gmra.mxu0 %v1795
      %v1862 = vpop.f32.mrf.mxu0
      %v1863 = vadd.f32 0.0, %v1862
      %v1864 = vpop.f32.mrf.mxu0
      %v1865 = vadd.f32 0.0, %v1864
      %1866 = vmatmul.bf16.gmra.mxu0 %v1798
      %v1867 = vpop.f32.mrf.mxu0
      %v1868 = vadd.f32 0.0, %v1867
      %v1869 = vpop.f32.mrf.mxu0
      %v1870 = vadd.f32 0.0, %v1869
      %1871 = vmatmul.bf16.gmra.mxu0 %v1801
      %v1872 = vpop.f32.mrf.mxu0
      %v1873 = vadd.f32 0.0, %v1872
      %v1874 = vpop.f32.mrf.mxu0
      %v1875 = vadd.f32 0.0, %v1874
      %1876 = vmatmul.bf16.gmra.mxu0 %v1804
      %v1877 = vpop.f32.mrf.mxu0
      %v1878 = vadd.f32 0.0, %v1877
      %v1879 = vpop.f32.mrf.mxu0
      %v1880 = vadd.f32 0.0, %v1879
      %1881 = vmatmul.bf16.gmra.mxu0 %v1807
      %v1882 = vpop.f32.mrf.mxu0
      %v1883 = vadd.f32 0.0, %v1882
      %v1884 = vpop.f32.mrf.mxu0
      %v1885 = vadd.f32 0.0, %v1884
      %1886 = vmatmul.bf16.gmra.mxu0 %v1810
      %v1887 = vpop.f32.mrf.mxu0
      %v1888 = vadd.f32 0.0, %v1887
      %v1889 = vpop.f32.mrf.mxu0
      %v1890 = vadd.f32 0.0, %v1889
      %1891 = vmatmul.bf16.gmra.mxu0 %v1813
      %v1892 = vpop.f32.mrf.mxu0
      %v1893 = vadd.f32 0.0, %v1892
      %v1894 = vpop.f32.mrf.mxu0
      %v1895 = vadd.f32 0.0, %v1894
      %1896 = vmatmul.bf16.gmra.mxu0 %v1816
      %v1897 = vpop.f32.mrf.mxu0
      %v1898 = vadd.f32 0.0, %v1897
      %v1899 = vpop.f32.mrf.mxu0
      %v1900 = vadd.f32 0.0, %v1899
      %1901 = vmatmul.bf16.gmra.mxu0 %v1819
      %v1902 = vpop.f32.mrf.mxu0
      %v1903 = vadd.f32 0.0, %v1902
      %v1904 = vpop.f32.mrf.mxu0
      %v1905 = vadd.f32 0.0, %v1904
      %1906 = vmatmul.bf16.gmra.mxu0 %v1822
      %v1907 = vpop.f32.mrf.mxu0
      %v1908 = vadd.f32 0.0, %v1907
      %v1909 = vpop.f32.mrf.mxu0
      %v1910 = vadd.f32 0.0, %v1909
      %1911 = vmatmul.bf16.gmra.mxu0 %v1825
      %v1912 = vpop.f32.mrf.mxu0
      %v1913 = vadd.f32 0.0, %v1912
      %v1914 = vpop.f32.mrf.mxu0
      %v1915 = vadd.f32 0.0, %v1914
      %1916 = vmatmul.bf16.gmra.mxu0 %v1828
      %v1917 = vpop.f32.mrf.mxu0
      %v1918 = vadd.f32 0.0, %v1917
      %v1919 = vpop.f32.mrf.mxu0
      %v1920 = vadd.f32 0.0, %v1919
      %1921 = vdwg.mxu0
      %v1922 = vadd.f32 %v1596, %v1843
      %v1923 = vadd.f32 %v1597, %v1845
      %v1924 = vadd.f32 %v1598, %v1848
      %v1925 = vadd.f32 %v1599, %v1850
      %v1926 = vadd.f32 %v1600, %v1853
      %v1927 = vadd.f32 %v1601, %v1855
      %v1928 = vadd.f32 %v1602, %v1858
      %v1929 = vadd.f32 %v1603, %v1860
      %v1930 = vadd.f32 %v1604, %v1863
      %v1931 = vadd.f32 %v1605, %v1865
      %v1932 = vadd.f32 %v1606, %v1868
      %v1933 = vadd.f32 %v1607, %v1870
      %v1934 = vadd.f32 %v1608, %v1873
      %v1935 = vadd.f32 %v1609, %v1875
      %v1936 = vadd.f32 %v1610, %v1878
      %v1937 = vadd.f32 %v1611, %v1880
      %v1938 = vadd.f32 %v1612, %v1883
      %v1939 = vadd.f32 %v1613, %v1885
      %v1940 = vadd.f32 %v1614, %v1888
      %v1941 = vadd.f32 %v1615, %v1890
      %v1942 = vadd.f32 %v1616, %v1893
      %v1943 = vadd.f32 %v1617, %v1895
      %v1944 = vadd.f32 %v1618, %v1898
      %v1945 = vadd.f32 %v1619, %v1900
      %v1946 = vadd.f32 %v1620, %v1903
      %v1947 = vadd.f32 %v1621, %v1905
      %v1948 = vadd.f32 %v1622, %v1908
      %v1949 = vadd.f32 %v1623, %v1910
      %v1950 = vadd.f32 %v1624, %v1913
      %v1951 = vadd.f32 %v1625, %v1915
      %v1952 = vadd.f32 %v1626, %v1918
      %v1953 = vadd.f32 %v1627, %v1920
      %s1954 = scalar_lea.vmem %s1, 10
      %v1955 = vld [vmem:[%s1954] sm:$0x3]
      %v1958 = vunpack.c.l.b16 %v1696
      %v1959 = vunpack.c.l.b16 %v1697
      %v1960 = vpack.c.b16 %v1959, %v1958
      %v1962 = vsel %vm393, %v1960, 0
      %v1965 = vsel %vm707, %v1955, 0
      %1967 = vmatpush.bf16.msra.mxu0 0
      %1968 = vmatpush.bf16.msra.mxu0 0
      %1969 = vmatpush.bf16.msra.mxu0 0
      %1970 = vmatpush.bf16.msra.mxu0 0
      %1971 = vmatpush.bf16.msra.mxu0 0
      %1972 = vmatpush.bf16.msra.mxu0 0
      %1973 = vmatpush.bf16.msra.mxu0 0
      %1974 = vmatpush.bf16.msra.mxu0 %v1965
      %1975 = vmatmul.bf16.gmra.mxu0 %v1786
      %v1976 = vpop.f32.mrf.mxu0
      %v1977 = vadd.f32 0.0, %v1976
      %v1978 = vpop.f32.mrf.mxu0
      %v1979 = vadd.f32 0.0, %v1978
      %1980 = vmatmul.bf16.gmra.mxu0 %v1789
      %v1981 = vpop.f32.mrf.mxu0
      %v1982 = vadd.f32 0.0, %v1981
      %v1983 = vpop.f32.mrf.mxu0
      %v1984 = vadd.f32 0.0, %v1983
      %1985 = vmatmul.bf16.gmra.mxu0 %v1792
      %v1986 = vpop.f32.mrf.mxu0
      %v1987 = vadd.f32 0.0, %v1986
      %v1988 = vpop.f32.mrf.mxu0
      %v1989 = vadd.f32 0.0, %v1988
      %1990 = vmatmul.bf16.gmra.mxu0 %v1795
      %v1991 = vpop.f32.mrf.mxu0
      %v1992 = vadd.f32 0.0, %v1991
      %v1993 = vpop.f32.mrf.mxu0
      %v1994 = vadd.f32 0.0, %v1993
      %1995 = vmatmul.bf16.gmra.mxu0 %v1798
      %v1996 = vpop.f32.mrf.mxu0
      %v1997 = vadd.f32 0.0, %v1996
      %v1998 = vpop.f32.mrf.mxu0
      %v1999 = vadd.f32 0.0, %v1998
      %2000 = vmatmul.bf16.gmra.mxu0 %v1801
      %v2001 = vpop.f32.mrf.mxu0
      %v2002 = vadd.f32 0.0, %v2001
      %v2003 = vpop.f32.mrf.mxu0
      %v2004 = vadd.f32 0.0, %v2003
      %2005 = vmatmul.bf16.gmra.mxu0 %v1804
      %v2006 = vpop.f32.mrf.mxu0
      %v2007 = vadd.f32 0.0, %v2006
      %v2008 = vpop.f32.mrf.mxu0
      %v2009 = vadd.f32 0.0, %v2008
      %2010 = vmatmul.bf16.gmra.mxu0 %v1807
      %v2011 = vpop.f32.mrf.mxu0
      %v2012 = vadd.f32 0.0, %v2011
      %v2013 = vpop.f32.mrf.mxu0
      %v2014 = vadd.f32 0.0, %v2013
      %2015 = vmatmul.bf16.gmra.mxu0 %v1810
      %v2016 = vpop.f32.mrf.mxu0
      %v2017 = vadd.f32 0.0, %v2016
      %v2018 = vpop.f32.mrf.mxu0
      %v2019 = vadd.f32 0.0, %v2018
      %2020 = vmatmul.bf16.gmra.mxu0 %v1813
      %v2021 = vpop.f32.mrf.mxu0
      %v2022 = vadd.f32 0.0, %v2021
      %v2023 = vpop.f32.mrf.mxu0
      %v2024 = vadd.f32 0.0, %v2023
      %2025 = vmatmul.bf16.gmra.mxu0 %v1816
      %v2026 = vpop.f32.mrf.mxu0
      %v2027 = vadd.f32 0.0, %v2026
      %v2028 = vpop.f32.mrf.mxu0
      %v2029 = vadd.f32 0.0, %v2028
      %2030 = vmatmul.bf16.gmra.mxu0 %v1819
      %v2031 = vpop.f32.mrf.mxu0
      %v2032 = vadd.f32 0.0, %v2031
      %v2033 = vpop.f32.mrf.mxu0
      %v2034 = vadd.f32 0.0, %v2033
      %2035 = vmatmul.bf16.gmra.mxu0 %v1822
      %v2036 = vpop.f32.mrf.mxu0
      %v2037 = vadd.f32 0.0, %v2036
      %v2038 = vpop.f32.mrf.mxu0
      %v2039 = vadd.f32 0.0, %v2038
      %2040 = vmatmul.bf16.gmra.mxu0 %v1825
      %v2041 = vpop.f32.mrf.mxu0
      %v2042 = vadd.f32 0.0, %v2041
      %v2043 = vpop.f32.mrf.mxu0
      %v2044 = vadd.f32 0.0, %v2043
      %2045 = vmatmul.bf16.gmra.mxu0 %v1828
      %v2046 = vpop.f32.mrf.mxu0
      %v2047 = vadd.f32 0.0, %v2046
      %v2048 = vpop.f32.mrf.mxu0
      %v2049 = vadd.f32 0.0, %v2048
      %2050 = vmatmul.bf16.gmra.mxu0 %v1962
      %v2051 = vpop.f32.mrf.mxu0
      %v2052 = vadd.f32 0.0, %v2051
      %v2053 = vpop.f32.mrf.mxu0
      %v2054 = vadd.f32 0.0, %v2053
      %2055 = vdwg.mxu0
      %v2056 = vadd.f32 %v1922, %v1977
      %v2057 = vadd.f32 %v1923, %v1979
      %v2058 = vadd.f32 %v1924, %v1982
      %v2059 = vadd.f32 %v1925, %v1984
      %v2060 = vadd.f32 %v1926, %v1987
      %v2061 = vadd.f32 %v1927, %v1989
      %v2062 = vadd.f32 %v1928, %v1992
      %v2063 = vadd.f32 %v1929, %v1994
      %v2064 = vadd.f32 %v1930, %v1997
      %v2065 = vadd.f32 %v1931, %v1999
      %v2066 = vadd.f32 %v1932, %v2002
      %v2067 = vadd.f32 %v1933, %v2004
      %v2068 = vadd.f32 %v1934, %v2007
      %v2069 = vadd.f32 %v1935, %v2009
      %v2070 = vadd.f32 %v1936, %v2012
      %v2071 = vadd.f32 %v1937, %v2014
      %v2072 = vadd.f32 %v1938, %v2017
      %v2073 = vadd.f32 %v1939, %v2019
      %v2074 = vadd.f32 %v1940, %v2022
      %v2075 = vadd.f32 %v1941, %v2024
      %v2076 = vadd.f32 %v1942, %v2027
      %v2077 = vadd.f32 %v1943, %v2029
      %v2078 = vadd.f32 %v1944, %v2032
      %v2079 = vadd.f32 %v1945, %v2034
      %v2080 = vadd.f32 %v1946, %v2037
      %v2081 = vadd.f32 %v1947, %v2039
      %v2082 = vadd.f32 %v1948, %v2042
      %v2083 = vadd.f32 %v1949, %v2044
      %v2084 = vadd.f32 %v1950, %v2047
      %v2085 = vadd.f32 %v1951, %v2049
      %v2086 = vadd.f32 %v1952, %v2052
      %v2087 = vadd.f32 %v1953, %v2054
      %s2088 = scalar_lea.vmem %s1, 16
      %v2089 = vld [vmem:[%s2088] sm:$0x3]
      %v2092 = vunpack.c.l.b16 %v1698
      %v2093 = vunpack.c.l.b16 %v1699
      %v2094 = vpack.c.b16 %v2093, %v2092
      %v2096 = vsel %vm393, %v2094, 0
      %v2099 = vsel %vm707, %v2089, 0
      %2101 = vmatpush.bf16.msra.mxu0 0
      %2102 = vmatpush.bf16.msra.mxu0 0
      %2103 = vmatpush.bf16.msra.mxu0 0
      %2104 = vmatpush.bf16.msra.mxu0 0
      %2105 = vmatpush.bf16.msra.mxu0 0
      %2106 = vmatpush.bf16.msra.mxu0 0
      %2107 = vmatpush.bf16.msra.mxu0 0
      %2108 = vmatpush.bf16.msra.mxu0 %v2099
      %2109 = vmatmul.bf16.gmra.mxu0 %v1789
      %v2110 = vpop.f32.mrf.mxu0
      %v2111 = vadd.f32 0.0, %v2110
      %v2112 = vpop.f32.mrf.mxu0
      %v2113 = vadd.f32 0.0, %v2112
      %2114 = vmatmul.bf16.gmra.mxu0 %v1792
      %v2115 = vpop.f32.mrf.mxu0
      %v2116 = vadd.f32 0.0, %v2115
      %v2117 = vpop.f32.mrf.mxu0
      %v2118 = vadd.f32 0.0, %v2117
      %2119 = vmatmul.bf16.gmra.mxu0 %v1795
      %v2120 = vpop.f32.mrf.mxu0
      %v2121 = vadd.f32 0.0, %v2120
      %v2122 = vpop.f32.mrf.mxu0
      %v2123 = vadd.f32 0.0, %v2122
      %2124 = vmatmul.bf16.gmra.mxu0 %v1798
      %v2125 = vpop.f32.mrf.mxu0
      %v2126 = vadd.f32 0.0, %v2125
      %v2127 = vpop.f32.mrf.mxu0
      %v2128 = vadd.f32 0.0, %v2127
      %2129 = vmatmul.bf16.gmra.mxu0 %v1801
      %v2130 = vpop.f32.mrf.mxu0
      %v2131 = vadd.f32 0.0, %v2130
      %v2132 = vpop.f32.mrf.mxu0
      %v2133 = vadd.f32 0.0, %v2132
      %2134 = vmatmul.bf16.gmra.mxu0 %v1804
      %v2135 = vpop.f32.mrf.mxu0
      %v2136 = vadd.f32 0.0, %v2135
      %v2137 = vpop.f32.mrf.mxu0
      %v2138 = vadd.f32 0.0, %v2137
      %2139 = vmatmul.bf16.gmra.mxu0 %v1807
      %v2140 = vpop.f32.mrf.mxu0
      %v2141 = vadd.f32 0.0, %v2140
      %v2142 = vpop.f32.mrf.mxu0
      %v2143 = vadd.f32 0.0, %v2142
      %2144 = vmatmul.bf16.gmra.mxu0 %v1810
      %v2145 = vpop.f32.mrf.mxu0
      %v2146 = vadd.f32 0.0, %v2145
      %v2147 = vpop.f32.mrf.mxu0
      %v2148 = vadd.f32 0.0, %v2147
      %2149 = vmatmul.bf16.gmra.mxu0 %v1813
      %v2150 = vpop.f32.mrf.mxu0
      %v2151 = vadd.f32 0.0, %v2150
      %v2152 = vpop.f32.mrf.mxu0
      %v2153 = vadd.f32 0.0, %v2152
      %2154 = vmatmul.bf16.gmra.mxu0 %v1816
      %v2155 = vpop.f32.mrf.mxu0
      %v2156 = vadd.f32 0.0, %v2155
      %v2157 = vpop.f32.mrf.mxu0
      %v2158 = vadd.f32 0.0, %v2157
      %2159 = vmatmul.bf16.gmra.mxu0 %v1819
      %v2160 = vpop.f32.mrf.mxu0
      %v2161 = vadd.f32 0.0, %v2160
      %v2162 = vpop.f32.mrf.mxu0
      %v2163 = vadd.f32 0.0, %v2162
      %2164 = vmatmul.bf16.gmra.mxu0 %v1822
      %v2165 = vpop.f32.mrf.mxu0
      %v2166 = vadd.f32 0.0, %v2165
      %v2167 = vpop.f32.mrf.mxu0
      %v2168 = vadd.f32 0.0, %v2167
      %2169 = vmatmul.bf16.gmra.mxu0 %v1825
      %v2170 = vpop.f32.mrf.mxu0
      %v2171 = vadd.f32 0.0, %v2170
      %v2172 = vpop.f32.mrf.mxu0
      %v2173 = vadd.f32 0.0, %v2172
      %2174 = vmatmul.bf16.gmra.mxu0 %v1828
      %v2175 = vpop.f32.mrf.mxu0
      %v2176 = vadd.f32 0.0, %v2175
      %v2177 = vpop.f32.mrf.mxu0
      %v2178 = vadd.f32 0.0, %v2177
      %2179 = vmatmul.bf16.gmra.mxu0 %v1962
      %v2180 = vpop.f32.mrf.mxu0
      %v2181 = vadd.f32 0.0, %v2180
      %v2182 = vpop.f32.mrf.mxu0
      %v2183 = vadd.f32 0.0, %v2182
      %2184 = vmatmul.bf16.gmra.mxu0 %v2096
      %v2185 = vpop.f32.mrf.mxu0
      %v2186 = vadd.f32 0.0, %v2185
      %v2187 = vpop.f32.mrf.mxu0
      %v2188 = vadd.f32 0.0, %v2187
      %2189 = vdwg.mxu0
      %v2190 = vadd.f32 %v2056, %v2111
      %v2191 = vadd.f32 %v2057, %v2113
      %v2192 = vadd.f32 %v2058, %v2116
      %v2193 = vadd.f32 %v2059, %v2118
      %v2194 = vadd.f32 %v2060, %v2121
      %v2195 = vadd.f32 %v2061, %v2123
      %v2196 = vadd.f32 %v2062, %v2126
      %v2197 = vadd.f32 %v2063, %v2128
      %v2198 = vadd.f32 %v2064, %v2131
      %v2199 = vadd.f32 %v2065, %v2133
      %v2200 = vadd.f32 %v2066, %v2136
      %v2201 = vadd.f32 %v2067, %v2138
      %v2202 = vadd.f32 %v2068, %v2141
      %v2203 = vadd.f32 %v2069, %v2143
      %v2204 = vadd.f32 %v2070, %v2146
      %v2205 = vadd.f32 %v2071, %v2148
      %v2206 = vadd.f32 %v2072, %v2151
      %v2207 = vadd.f32 %v2073, %v2153
      %v2208 = vadd.f32 %v2074, %v2156
      %v2209 = vadd.f32 %v2075, %v2158
      %v2210 = vadd.f32 %v2076, %v2161
      %v2211 = vadd.f32 %v2077, %v2163
      %v2212 = vadd.f32 %v2078, %v2166
      %v2213 = vadd.f32 %v2079, %v2168
      %v2214 = vadd.f32 %v2080, %v2171
      %v2215 = vadd.f32 %v2081, %v2173
      %v2216 = vadd.f32 %v2082, %v2176
      %v2217 = vadd.f32 %v2083, %v2178
      %v2218 = vadd.f32 %v2084, %v2181
      %v2219 = vadd.f32 %v2085, %v2183
      %v2220 = vadd.f32 %v2086, %v2186
      %v2221 = vadd.f32 %v2087, %v2188
      %v2222 = vld [vmem:[%s4] sm:$0x1]
      %v2224 = vperm.slane %v2222, 0
      %v2226 = vmul.f32 %v2190, %v2224
      %v2227 = vmul.f32 %v2191, %v2224
      %v2228 = vmul.f32 %v2192, %v2224
      %v2229 = vmul.f32 %v2193, %v2224
      %v2230 = vmul.f32 %v2194, %v2224
      %v2231 = vmul.f32 %v2195, %v2224
      %v2232 = vmul.f32 %v2196, %v2224
      %v2233 = vmul.f32 %v2197, %v2224
      %v2234 = vmul.f32 %v2198, %v2224
      %v2235 = vmul.f32 %v2199, %v2224
      %v2236 = vmul.f32 %v2200, %v2224
      %v2237 = vmul.f32 %v2201, %v2224
      %v2238 = vmul.f32 %v2202, %v2224
      %v2239 = vmul.f32 %v2203, %v2224
      %v2240 = vmul.f32 %v2204, %v2224
      %v2241 = vmul.f32 %v2205, %v2224
      %v2242 = vmul.f32 %v2206, %v2224
      %v2243 = vmul.f32 %v2207, %v2224
      %v2244 = vmul.f32 %v2208, %v2224
      %v2245 = vmul.f32 %v2209, %v2224
      %v2246 = vmul.f32 %v2210, %v2224
      %v2247 = vmul.f32 %v2211, %v2224
      %v2248 = vmul.f32 %v2212, %v2224
      %v2249 = vmul.f32 %v2213, %v2224
      %v2250 = vmul.f32 %v2214, %v2224
      %v2251 = vmul.f32 %v2215, %v2224
      %v2252 = vmul.f32 %v2216, %v2224
      %v2253 = vmul.f32 %v2217, %v2224
      %v2254 = vmul.f32 %v2218, %v2224
      %v2255 = vmul.f32 %v2219, %v2224
      %v2256 = vmul.f32 %v2220, %v2224
      %v2257 = vmul.f32 %v2221, %v2224
      %v2258 = vld [vmem:[%s5] sm:$0x1]
      %v2260 = vperm.slane %v2258, 0
      %v2262 = vadd.f32 %v2226, %v2260
      %v2263 = vadd.f32 %v2227, %v2260
      %v2264 = vadd.f32 %v2228, %v2260
      %v2265 = vadd.f32 %v2229, %v2260
      %v2266 = vadd.f32 %v2230, %v2260
      %v2267 = vadd.f32 %v2231, %v2260
      %v2268 = vadd.f32 %v2232, %v2260
      %v2269 = vadd.f32 %v2233, %v2260
      %v2270 = vadd.f32 %v2234, %v2260
      %v2271 = vadd.f32 %v2235, %v2260
      %v2272 = vadd.f32 %v2236, %v2260
      %v2273 = vadd.f32 %v2237, %v2260
      %v2274 = vadd.f32 %v2238, %v2260
      %v2275 = vadd.f32 %v2239, %v2260
      %v2276 = vadd.f32 %v2240, %v2260
      %v2277 = vadd.f32 %v2241, %v2260
      %v2278 = vadd.f32 %v2242, %v2260
      %v2279 = vadd.f32 %v2243, %v2260
      %v2280 = vadd.f32 %v2244, %v2260
      %v2281 = vadd.f32 %v2245, %v2260
      %v2282 = vadd.f32 %v2246, %v2260
      %v2283 = vadd.f32 %v2247, %v2260
      %v2284 = vadd.f32 %v2248, %v2260
      %v2285 = vadd.f32 %v2249, %v2260
      %v2286 = vadd.f32 %v2250, %v2260
      %v2287 = vadd.f32 %v2251, %v2260
      %v2288 = vadd.f32 %v2252, %v2260
      %v2289 = vadd.f32 %v2253, %v2260
      %v2290 = vadd.f32 %v2254, %v2260
      %v2291 = vadd.f32 %v2255, %v2260
      %v2292 = vadd.f32 %v2256, %v2260
      %v2293 = vadd.f32 %v2257, %v2260
      %v2294 = vmax.f32 %v2262, 0.0
      %v2295 = vmax.f32 %v2263, 0.0
      %v2296 = vmax.f32 %v2264, 0.0
      %v2297 = vmax.f32 %v2265, 0.0
      %v2298 = vmax.f32 %v2266, 0.0
      %v2299 = vmax.f32 %v2267, 0.0
      %v2300 = vmax.f32 %v2268, 0.0
      %v2301 = vmax.f32 %v2269, 0.0
      %v2302 = vmax.f32 %v2270, 0.0
      %v2303 = vmax.f32 %v2271, 0.0
      %v2304 = vmax.f32 %v2272, 0.0
      %v2305 = vmax.f32 %v2273, 0.0
      %v2306 = vmax.f32 %v2274, 0.0
      %v2307 = vmax.f32 %v2275, 0.0
      %v2308 = vmax.f32 %v2276, 0.0
      %v2309 = vmax.f32 %v2277, 0.0
      %v2310 = vmax.f32 %v2278, 0.0
      %v2311 = vmax.f32 %v2279, 0.0
      %v2312 = vmax.f32 %v2280, 0.0
      %v2313 = vmax.f32 %v2281, 0.0
      %v2314 = vmax.f32 %v2282, 0.0
      %v2315 = vmax.f32 %v2283, 0.0
      %v2316 = vmax.f32 %v2284, 0.0
      %v2317 = vmax.f32 %v2285, 0.0
      %v2318 = vmax.f32 %v2286, 0.0
      %v2319 = vmax.f32 %v2287, 0.0
      %v2320 = vmax.f32 %v2288, 0.0
      %v2321 = vmax.f32 %v2289, 0.0
      %v2322 = vmax.f32 %v2290, 0.0
      %v2323 = vmax.f32 %v2291, 0.0
      %v2324 = vmax.f32 %v2292, 0.0
      %v2325 = vmax.f32 %v2293, 0.0
      %vm2326 = vcmask 64512
      %2327 = vst.msk [vmem:[#allocation3] sm:$0xff] %vm2326, 0.0
      %2328 = vst.msk [vmem:[#allocation3 + $0x8] sm:$0xff] %vm2326, 0.0
      %vm2329 = vcmask 58368
      %2330 = vst.msk [vmem:[#allocation3 + $0x10] sm:$0x3] %vm2329, 0.0
      %s2331 = scalar_lea.vmem [#allocation3], 408
      %2332 = vst.msk [vmem:[%s2331] sm:$0xff] %vm2326, 0.0
      %2333 = vst.msk [vmem:[%s2331 + $0x8] sm:$0xff] %vm2326, 0.0
      %2334 = vst.msk [vmem:[%s2331 + $0x10] sm:$0x3] %vm2329, 0.0
      %vm2335 = vcmask 57344
      %2336 = vst.msk [vmem:[#allocation3] sm:$0x1] %vm2335, 0.0
      %2337 = vst.msk [vmem:[#allocation3 + $0x18] sm:$0x1] %vm2335, 0.0
      %2338 = vst.msk [vmem:[#allocation3 + $0x30] sm:$0x1] %vm2335, 0.0
      %2339 = vst.msk [vmem:[#allocation3 + $0x48] sm:$0x1] %vm2335, 0.0
      %2340 = vst.msk [vmem:[#allocation3 + $0x60] sm:$0x1] %vm2335, 0.0
      %2341 = vst.msk [vmem:[#allocation3 + $0x78] sm:$0x1] %vm2335, 0.0
      %2342 = vst.msk [vmem:[#allocation3 + $0x90] sm:$0x1] %vm2335, 0.0
      %2343 = vst.msk [vmem:[#allocation3 + $0xa8] sm:$0x1] %vm2335, 0.0
      %2344 = vst.msk [vmem:[#allocation3 + $0xc0] sm:$0x1] %vm2335, 0.0
      %2345 = vst.msk [vmem:[#allocation3 + $0xd8] sm:$0x1] %vm2335, 0.0
      %2346 = vst.msk [vmem:[#allocation3 + $0xf0] sm:$0x1] %vm2335, 0.0
      %2347 = vst.msk [vmem:[#allocation3 + $0x108] sm:$0x1] %vm2335, 0.0
      %2348 = vst.msk [vmem:[#allocation3 + $0x120] sm:$0x1] %vm2335, 0.0
      %2349 = vst.msk [vmem:[#allocation3 + $0x138] sm:$0x1] %vm2335, 0.0
      %2350 = vst.msk [vmem:[#allocation3 + $0x150] sm:$0x1] %vm2335, 0.0
      %2351 = vst.msk [vmem:[#allocation3 + $0x168] sm:$0x1] %vm2335, 0.0
      %2352 = vst.msk [vmem:[#allocation3 + $0x180] sm:$0x1] %vm2335, 0.0
      %2353 = vst.msk [vmem:[#allocation3 + $0x198] sm:$0x1] %vm2335, 0.0
      %2354 = vst.msk [vmem:[#allocation3 + $0x11] sm:$0x1] %vm2335, 0.0
      %2355 = vst.msk [vmem:[#allocation3 + $0x29] sm:$0x1] %vm2335, 0.0
      %2356 = vst.msk [vmem:[#allocation3 + $0x41] sm:$0x1] %vm2335, 0.0
      %2357 = vst.msk [vmem:[#allocation3 + $0x59] sm:$0x1] %vm2335, 0.0
      %2358 = vst.msk [vmem:[#allocation3 + $0x71] sm:$0x1] %vm2335, 0.0
      %2359 = vst.msk [vmem:[#allocation3 + $0x89] sm:$0x1] %vm2335, 0.0
      %2360 = vst.msk [vmem:[#allocation3 + $0xa1] sm:$0x1] %vm2335, 0.0
      %2361 = vst.msk [vmem:[#allocation3 + $0xb9] sm:$0x1] %vm2335, 0.0
      %2362 = vst.msk [vmem:[#allocation3 + $0xd1] sm:$0x1] %vm2335, 0.0
      %2363 = vst.msk [vmem:[#allocation3 + $0xe9] sm:$0x1] %vm2335, 0.0
      %2364 = vst.msk [vmem:[#allocation3 + $0x101] sm:$0x1] %vm2335, 0.0
      %2365 = vst.msk [vmem:[#allocation3 + $0x119] sm:$0x1] %vm2335, 0.0
      %2366 = vst.msk [vmem:[#allocation3 + $0x131] sm:$0x1] %vm2335, 0.0
      %2367 = vst.msk [vmem:[#allocation3 + $0x149] sm:$0x1] %vm2335, 0.0
      %2368 = vst.msk [vmem:[#allocation3 + $0x161] sm:$0x1] %vm2335, 0.0
      %2369 = vst.msk [vmem:[#allocation3 + $0x179] sm:$0x1] %vm2335, 0.0
      %2370 = vst.msk [vmem:[#allocation3 + $0x191] sm:$0x1] %vm2335, 0.0
      %2371 = vst.msk [vmem:[#allocation3 + $0x1a9] sm:$0x1] %vm2335, 0.0
      %s2372 = scalar_lea.vmem [#allocation3], 24
      %2373 = vst.msk [vmem:[%s2372 + $0x1] sm:$0xff] %vm2326, %v2294
      %2374 = vst.msk [vmem:[%s2372 + $0x9] sm:$0xff] %vm2326, %v2295
      %2375 = vst.msk [vmem:[%s2372 + $0x19] sm:$0xff] %vm2326, %v2296
      %2376 = vst.msk [vmem:[%s2372 + $0x21] sm:$0xff] %vm2326, %v2297
      %2377 = vst.msk [vmem:[%s2372 + $0x31] sm:$0xff] %vm2326, %v2298
      %2378 = vst.msk [vmem:[%s2372 + $0x39] sm:$0xff] %vm2326, %v2299
      %2379 = vst.msk [vmem:[%s2372 + $0x49] sm:$0xff] %vm2326, %v2300
      %2380 = vst.msk [vmem:[%s2372 + $0x51] sm:$0xff] %vm2326, %v2301
      %2381 = vst.msk [vmem:[%s2372 + $0x61] sm:$0xff] %vm2326, %v2302
      %2382 = vst.msk [vmem:[%s2372 + $0x69] sm:$0xff] %vm2326, %v2303
      %2383 = vst.msk [vmem:[%s2372 + $0x79] sm:$0xff] %vm2326, %v2304
      %2384 = vst.msk [vmem:[%s2372 + $0x81] sm:$0xff] %vm2326, %v2305
      %2385 = vst.msk [vmem:[%s2372 + $0x91] sm:$0xff] %vm2326, %v2306
      %2386 = vst.msk [vmem:[%s2372 + $0x99] sm:$0xff] %vm2326, %v2307
      %2387 = vst.msk [vmem:[%s2372 + $0xa9] sm:$0xff] %vm2326, %v2308
      %2388 = vst.msk [vmem:[%s2372 + $0xb1] sm:$0xff] %vm2326, %v2309
      %2389 = vst.msk [vmem:[%s2372 + $0xc1] sm:$0xff] %vm2326, %v2310
      %2390 = vst.msk [vmem:[%s2372 + $0xc9] sm:$0xff] %vm2326, %v2311
      %2391 = vst.msk [vmem:[%s2372 + $0xd9] sm:$0xff] %vm2326, %v2312
      %2392 = vst.msk [vmem:[%s2372 + $0xe1] sm:$0xff] %vm2326, %v2313
      %2393 = vst.msk [vmem:[%s2372 + $0xf1] sm:$0xff] %vm2326, %v2314
      %2394 = vst.msk [vmem:[%s2372 + $0xf9] sm:$0xff] %vm2326, %v2315
      %2395 = vst.msk [vmem:[%s2372 + $0x109] sm:$0xff] %vm2326, %v2316
      %2396 = vst.msk [vmem:[%s2372 + $0x111] sm:$0xff] %vm2326, %v2317
      %2397 = vst.msk [vmem:[%s2372 + $0x121] sm:$0xff] %vm2326, %v2318
      %2398 = vst.msk [vmem:[%s2372 + $0x129] sm:$0xff] %vm2326, %v2319
      %2399 = vst.msk [vmem:[%s2372 + $0x139] sm:$0xff] %vm2326, %v2320
      %2400 = vst.msk [vmem:[%s2372 + $0x141] sm:$0xff] %vm2326, %v2321
      %2401 = vst.msk [vmem:[%s2372 + $0x151] sm:$0xff] %vm2326, %v2322
      %2402 = vst.msk [vmem:[%s2372 + $0x159] sm:$0xff] %vm2326, %v2323
      %2403 = vst.msk [vmem:[%s2372 + $0x169] sm:$0xff] %vm2326, %v2324
      %2404 = vst.msk [vmem:[%s2372 + $0x171] sm:$0xff] %vm2326, %v2325
      %v2405 = vld [vmem:[#allocation3] sm:$0xff]
      %v2406 = vld [vmem:[#allocation3 + $0x8] sm:$0xff]
      %v2407 = vld [vmem:[#allocation3 + $0x18] sm:$0xff]
      %v2408 = vld [vmem:[#allocation3 + $0x20] sm:$0xff]
      %v2409 = vld [vmem:[#allocation3 + $0x30] sm:$0xff]
      %v2410 = vld [vmem:[#allocation3 + $0x38] sm:$0xff]
      %v2411 = vld [vmem:[#allocation3 + $0x48] sm:$0xff]
      %v2412 = vld [vmem:[#allocation3 + $0x50] sm:$0xff]
      %v2413 = vld [vmem:[#allocation3 + $0x60] sm:$0xff]
      %v2414 = vld [vmem:[#allocation3 + $0x68] sm:$0xff]
      %v2415 = vld [vmem:[#allocation3 + $0x78] sm:$0xff]
      %v2416 = vld [vmem:[#allocation3 + $0x80] sm:$0xff]
      %v2417 = vld [vmem:[#allocation3 + $0x90] sm:$0xff]
      %v2418 = vld [vmem:[#allocation3 + $0x98] sm:$0xff]
      %v2419 = vld [vmem:[#allocation3 + $0xa8] sm:$0xff]
      %v2420 = vld [vmem:[#allocation3 + $0xb0] sm:$0xff]
      %v2421 = vld [vmem:[#allocation3 + $0xc0] sm:$0xff]
      %v2422 = vld [vmem:[#allocation3 + $0xc8] sm:$0xff]
      %v2423 = vld [vmem:[#allocation3 + $0xd8] sm:$0xff]
      %v2424 = vld [vmem:[#allocation3 + $0xe0] sm:$0xff]
      %v2425 = vld [vmem:[#allocation3 + $0xf0] sm:$0xff]
      %v2426 = vld [vmem:[#allocation3 + $0xf8] sm:$0xff]
      %v2427 = vld [vmem:[#allocation3 + $0x108] sm:$0xff]
      %v2428 = vld [vmem:[#allocation3 + $0x110] sm:$0xff]
      %v2429 = vld [vmem:[#allocation3 + $0x120] sm:$0xff]
      %v2430 = vld [vmem:[#allocation3 + $0x128] sm:$0xff]
      %v2431 = vld [vmem:[#allocation3 + $0x138] sm:$0xff]
      %v2432 = vld [vmem:[#allocation3 + $0x140] sm:$0xff]
      %v2433 = vld [vmem:[#allocation3 + $0x150] sm:$0xff]
      %v2434 = vld [vmem:[#allocation3 + $0x158] sm:$0xff]
      %v2435 = vld [vmem:[#allocation3 + $0x168] sm:$0xff]
      %v2436 = vld [vmem:[#allocation3 + $0x170] sm:$0xff]
      %v2437 = vld [vmem:[#allocation3 + $0x180] sm:$0xff]
      %v2438 = vld [vmem:[#allocation3 + $0x188] sm:$0xff]
      %v2439 = vld [vmem:[#allocation3 + $0x198] sm:$0xff]
      %v2440 = vld [vmem:[#allocation3 + $0x1a0] sm:$0xff]
      %v2441 = vpack.c.bf16 %v2405, %v2405
      %v2442 = vpack.c.bf16 %v2406, %v2406
      %v2443 = vpack.c.bf16 %v2407, %v2407
      %v2444 = vpack.c.bf16 %v2408, %v2408
      %v2445 = vpack.c.bf16 %v2409, %v2409
      %v2446 = vpack.c.bf16 %v2410, %v2410
      %v2447 = vpack.c.bf16 %v2411, %v2411
      %v2448 = vpack.c.bf16 %v2412, %v2412
      %v2449 = vpack.c.bf16 %v2413, %v2413
      %v2450 = vpack.c.bf16 %v2414, %v2414
      %v2451 = vpack.c.bf16 %v2415, %v2415
      %v2452 = vpack.c.bf16 %v2416, %v2416
      %v2453 = vpack.c.bf16 %v2417, %v2417
      %v2454 = vpack.c.bf16 %v2418, %v2418
      %v2455 = vpack.c.bf16 %v2419, %v2419
      %v2456 = vpack.c.bf16 %v2420, %v2420
      %v2457 = vpack.c.bf16 %v2421, %v2421
      %v2458 = vpack.c.bf16 %v2422, %v2422
      %v2459 = vpack.c.bf16 %v2423, %v2423
      %v2460 = vpack.c.bf16 %v2424, %v2424
      %v2461 = vpack.c.bf16 %v2425, %v2425
      %v2462 = vpack.c.bf16 %v2426, %v2426
      %v2463 = vpack.c.bf16 %v2427, %v2427
      %v2464 = vpack.c.bf16 %v2428, %v2428
      %v2465 = vpack.c.bf16 %v2429, %v2429
      %v2466 = vpack.c.bf16 %v2430, %v2430
      %v2467 = vpack.c.bf16 %v2431, %v2431
      %v2468 = vpack.c.bf16 %v2432, %v2432
      %v2469 = vpack.c.bf16 %v2433, %v2433
      %v2470 = vpack.c.bf16 %v2434, %v2434
      %v2471 = vpack.c.bf16 %v2435, %v2435
      %v2472 = vpack.c.bf16 %v2436, %v2436
      %v2473 = vpack.c.bf16 %v2437, %v2437
      %v2474 = vpack.c.bf16 %v2438, %v2438
      %v2475 = vpack.c.bf16 %v2439, %v2439
      %v2476 = vpack.c.bf16 %v2440, %v2440
      %v2477 = vld [vmem:[%s2] sm:$0xf]
      %s2478 = scalar_lea.vmem %s2, 12
      %v2479 = vld [vmem:[%s2478] sm:$0xf]
      %v2512 = vunpack.c.l.b16 %v2443
      %v2513 = vunpack.c.l.b16 %v2444
      %v2514 = vunpack.c.l.b16 %v2445
      %v2515 = vunpack.c.l.b16 %v2446
      %v2516 = vunpack.c.l.b16 %v2447
      %v2517 = vunpack.c.l.b16 %v2448
      %v2518 = vunpack.c.l.b16 %v2449
      %v2519 = vunpack.c.l.b16 %v2450
      %v2520 = vunpack.c.l.b16 %v2451
      %v2521 = vunpack.c.l.b16 %v2452
      %v2522 = vunpack.c.l.b16 %v2453
      %v2523 = vunpack.c.l.b16 %v2454
      %v2524 = vunpack.c.l.b16 %v2455
      %v2525 = vunpack.c.l.b16 %v2456
      %v2526 = vunpack.c.l.b16 %v2457
      %v2527 = vunpack.c.l.b16 %v2458
      %v2528 = vunpack.c.l.b16 %v2459
      %v2529 = vunpack.c.l.b16 %v2460
      %v2530 = vunpack.c.l.b16 %v2461
      %v2531 = vunpack.c.l.b16 %v2462
      %v2532 = vunpack.c.l.b16 %v2463
      %v2533 = vunpack.c.l.b16 %v2464
      %v2534 = vunpack.c.l.b16 %v2465
      %v2535 = vunpack.c.l.b16 %v2466
      %v2536 = vunpack.c.l.b16 %v2467
      %v2537 = vunpack.c.l.b16 %v2468
      %v2538 = vunpack.c.l.b16 %v2469
      %v2539 = vunpack.c.l.b16 %v2470
      %v2540 = vunpack.c.l.b16 %v2471
      %v2541 = vunpack.c.l.b16 %v2472
      %v2542 = vunpack.c.l.b16 %v2473
      %v2543 = vunpack.c.l.b16 %v2474
      %v2544 = vpack.c.b16 %v2513, %v2512
      %v2545 = vpack.c.b16 %v2515, %v2514
      %v2546 = vpack.c.b16 %v2517, %v2516
      %v2547 = vpack.c.b16 %v2519, %v2518
      %v2548 = vpack.c.b16 %v2521, %v2520
      %v2549 = vpack.c.b16 %v2523, %v2522
      %v2550 = vpack.c.b16 %v2525, %v2524
      %v2551 = vpack.c.b16 %v2527, %v2526
      %v2552 = vpack.c.b16 %v2529, %v2528
      %v2553 = vpack.c.b16 %v2531, %v2530
      %v2554 = vpack.c.b16 %v2533, %v2532
      %v2555 = vpack.c.b16 %v2535, %v2534
      %v2556 = vpack.c.b16 %v2537, %v2536
      %v2557 = vpack.c.b16 %v2539, %v2538
      %v2558 = vpack.c.b16 %v2541, %v2540
      %v2559 = vpack.c.b16 %v2543, %v2542
      %v2561 = vsel %vm2326, %v2544, 0
      %v2564 = vsel %vm2326, %v2545, 0
      %v2567 = vsel %vm2326, %v2546, 0
      %v2570 = vsel %vm2326, %v2547, 0
      %v2573 = vsel %vm2326, %v2548, 0
      %v2576 = vsel %vm2326, %v2549, 0
      %v2579 = vsel %vm2326, %v2550, 0
      %v2582 = vsel %vm2326, %v2551, 0
      %v2585 = vsel %vm2326, %v2552, 0
      %v2588 = vsel %vm2326, %v2553, 0
      %v2591 = vsel %vm2326, %v2554, 0
      %v2594 = vsel %vm2326, %v2555, 0
      %v2597 = vsel %vm2326, %v2556, 0
      %v2600 = vsel %vm2326, %v2557, 0
      %v2603 = vsel %vm2326, %v2558, 0
      %v2606 = vsel %vm2326, %v2559, 0
      %vm2608 = vcmask 1043456
      %v2610 = vsel %vm2608, %v2479, 0
      %2612 = vmatpush.bf16.msra.mxu0 0
      %2613 = vmatpush.bf16.msra.mxu0 0
      %2614 = vmatpush.bf16.msra.mxu0 0
      %2615 = vmatpush.bf16.msra.mxu0 0
      %2616 = vmatpush.bf16.msra.mxu0 0
      %2617 = vmatpush.bf16.msra.mxu0 0
      %2618 = vmatpush.bf16.msra.mxu0 0
      %2619 = vmatpush.bf16.msra.mxu0 %v2610
      %2620 = vmatmul.bf16.gmra.mxu0 %v2561
      %v2621 = vpop.f32.mrf.mxu0
      %v2622 = vadd.f32 0.0, %v2621
      %v2623 = vpop.f32.mrf.mxu0
      %v2624 = vadd.f32 0.0, %v2623
      %2625 = vmatmul.bf16.gmra.mxu0 %v2564
      %v2626 = vpop.f32.mrf.mxu0
      %v2627 = vadd.f32 0.0, %v2626
      %v2628 = vpop.f32.mrf.mxu0
      %v2629 = vadd.f32 0.0, %v2628
      %2630 = vmatmul.bf16.gmra.mxu0 %v2567
      %v2631 = vpop.f32.mrf.mxu0
      %v2632 = vadd.f32 0.0, %v2631
      %v2633 = vpop.f32.mrf.mxu0
      %v2634 = vadd.f32 0.0, %v2633
      %2635 = vmatmul.bf16.gmra.mxu0 %v2570
      %v2636 = vpop.f32.mrf.mxu0
      %v2637 = vadd.f32 0.0, %v2636
      %v2638 = vpop.f32.mrf.mxu0
      %v2639 = vadd.f32 0.0, %v2638
      %2640 = vmatmul.bf16.gmra.mxu0 %v2573
      %v2641 = vpop.f32.mrf.mxu0
      %v2642 = vadd.f32 0.0, %v2641
      %v2643 = vpop.f32.mrf.mxu0
      %v2644 = vadd.f32 0.0, %v2643
      %2645 = vmatmul.bf16.gmra.mxu0 %v2576
      %v2646 = vpop.f32.mrf.mxu0
      %v2647 = vadd.f32 0.0, %v2646
      %v2648 = vpop.f32.mrf.mxu0
      %v2649 = vadd.f32 0.0, %v2648
      %2650 = vmatmul.bf16.gmra.mxu0 %v2579
      %v2651 = vpop.f32.mrf.mxu0
      %v2652 = vadd.f32 0.0, %v2651
      %v2653 = vpop.f32.mrf.mxu0
      %v2654 = vadd.f32 0.0, %v2653
      %2655 = vmatmul.bf16.gmra.mxu0 %v2582
      %v2656 = vpop.f32.mrf.mxu0
      %v2657 = vadd.f32 0.0, %v2656
      %v2658 = vpop.f32.mrf.mxu0
      %v2659 = vadd.f32 0.0, %v2658
      %2660 = vmatmul.bf16.gmra.mxu0 %v2585
      %v2661 = vpop.f32.mrf.mxu0
      %v2662 = vadd.f32 0.0, %v2661
      %v2663 = vpop.f32.mrf.mxu0
      %v2664 = vadd.f32 0.0, %v2663
      %2665 = vmatmul.bf16.gmra.mxu0 %v2588
      %v2666 = vpop.f32.mrf.mxu0
      %v2667 = vadd.f32 0.0, %v2666
      %v2668 = vpop.f32.mrf.mxu0
      %v2669 = vadd.f32 0.0, %v2668
      %2670 = vmatmul.bf16.gmra.mxu0 %v2591
      %v2671 = vpop.f32.mrf.mxu0
      %v2672 = vadd.f32 0.0, %v2671
      %v2673 = vpop.f32.mrf.mxu0
      %v2674 = vadd.f32 0.0, %v2673
      %2675 = vmatmul.bf16.gmra.mxu0 %v2594
      %v2676 = vpop.f32.mrf.mxu0
      %v2677 = vadd.f32 0.0, %v2676
      %v2678 = vpop.f32.mrf.mxu0
      %v2679 = vadd.f32 0.0, %v2678
      %2680 = vmatmul.bf16.gmra.mxu0 %v2597
      %v2681 = vpop.f32.mrf.mxu0
      %v2682 = vadd.f32 0.0, %v2681
      %v2683 = vpop.f32.mrf.mxu0
      %v2684 = vadd.f32 0.0, %v2683
      %2685 = vmatmul.bf16.gmra.mxu0 %v2600
      %v2686 = vpop.f32.mrf.mxu0
      %v2687 = vadd.f32 0.0, %v2686
      %v2688 = vpop.f32.mrf.mxu0
      %v2689 = vadd.f32 0.0, %v2688
      %2690 = vmatmul.bf16.gmra.mxu0 %v2603
      %v2691 = vpop.f32.mrf.mxu0
      %v2692 = vadd.f32 0.0, %v2691
      %v2693 = vpop.f32.mrf.mxu0
      %v2694 = vadd.f32 0.0, %v2693
      %2695 = vmatmul.bf16.gmra.mxu0 %v2606
      %v2696 = vpop.f32.mrf.mxu0
      %v2697 = vadd.f32 0.0, %v2696
      %v2698 = vpop.f32.mrf.mxu0
      %v2699 = vadd.f32 0.0, %v2698
      %2700 = vdwg.mxu0
      %v2703 = vunpack.c.l.b16 %v2441
      %v2704 = vunpack.c.l.b16 %v2442
      %v2705 = vpack.c.b16 %v2704, %v2703
      %v2707 = vsel %vm2326, %v2705, 0
      %v2710 = vsel %vm2608, %v2477, 0
      %2712 = vmatpush.bf16.msra.mxu0 0
      %2713 = vmatpush.bf16.msra.mxu0 0
      %2714 = vmatpush.bf16.msra.mxu0 0
      %2715 = vmatpush.bf16.msra.mxu0 0
      %2716 = vmatpush.bf16.msra.mxu0 0
      %2717 = vmatpush.bf16.msra.mxu0 0
      %2718 = vmatpush.bf16.msra.mxu0 0
      %2719 = vmatpush.bf16.msra.mxu0 %v2710
      %2720 = vmatmul.bf16.gmra.mxu0 %v2707
      %v2721 = vpop.f32.mrf.mxu0
      %v2722 = vadd.f32 %v2622, %v2721
      %v2723 = vpop.f32.mrf.mxu0
      %v2724 = vadd.f32 %v2624, %v2723
      %2725 = vmatmul.bf16.gmra.mxu0 %v2561
      %v2726 = vpop.f32.mrf.mxu0
      %v2727 = vadd.f32 %v2627, %v2726
      %v2728 = vpop.f32.mrf.mxu0
      %v2729 = vadd.f32 %v2629, %v2728
      %2730 = vmatmul.bf16.gmra.mxu0 %v2564
      %v2731 = vpop.f32.mrf.mxu0
      %v2732 = vadd.f32 %v2632, %v2731
      %v2733 = vpop.f32.mrf.mxu0
      %v2734 = vadd.f32 %v2634, %v2733
      %2735 = vmatmul.bf16.gmra.mxu0 %v2567
      %v2736 = vpop.f32.mrf.mxu0
      %v2737 = vadd.f32 %v2637, %v2736
      %v2738 = vpop.f32.mrf.mxu0
      %v2739 = vadd.f32 %v2639, %v2738
      %2740 = vmatmul.bf16.gmra.mxu0 %v2570
      %v2741 = vpop.f32.mrf.mxu0
      %v2742 = vadd.f32 %v2642, %v2741
      %v2743 = vpop.f32.mrf.mxu0
      %v2744 = vadd.f32 %v2644, %v2743
      %2745 = vmatmul.bf16.gmra.mxu0 %v2573
      %v2746 = vpop.f32.mrf.mxu0
      %v2747 = vadd.f32 %v2647, %v2746
      %v2748 = vpop.f32.mrf.mxu0
      %v2749 = vadd.f32 %v2649, %v2748
      %2750 = vmatmul.bf16.gmra.mxu0 %v2576
      %v2751 = vpop.f32.mrf.mxu0
      %v2752 = vadd.f32 %v2652, %v2751
      %v2753 = vpop.f32.mrf.mxu0
      %v2754 = vadd.f32 %v2654, %v2753
      %2755 = vmatmul.bf16.gmra.mxu0 %v2579
      %v2756 = vpop.f32.mrf.mxu0
      %v2757 = vadd.f32 %v2657, %v2756
      %v2758 = vpop.f32.mrf.mxu0
      %v2759 = vadd.f32 %v2659, %v2758
      %2760 = vmatmul.bf16.gmra.mxu0 %v2582
      %v2761 = vpop.f32.mrf.mxu0
      %v2762 = vadd.f32 %v2662, %v2761
      %v2763 = vpop.f32.mrf.mxu0
      %v2764 = vadd.f32 %v2664, %v2763
      %2765 = vmatmul.bf16.gmra.mxu0 %v2585
      %v2766 = vpop.f32.mrf.mxu0
      %v2767 = vadd.f32 %v2667, %v2766
      %v2768 = vpop.f32.mrf.mxu0
      %v2769 = vadd.f32 %v2669, %v2768
      %2770 = vmatmul.bf16.gmra.mxu0 %v2588
      %v2771 = vpop.f32.mrf.mxu0
      %v2772 = vadd.f32 %v2672, %v2771
      %v2773 = vpop.f32.mrf.mxu0
      %v2774 = vadd.f32 %v2674, %v2773
      %2775 = vmatmul.bf16.gmra.mxu0 %v2591
      %v2776 = vpop.f32.mrf.mxu0
      %v2777 = vadd.f32 %v2677, %v2776
      %v2778 = vpop.f32.mrf.mxu0
      %v2779 = vadd.f32 %v2679, %v2778
      %2780 = vmatmul.bf16.gmra.mxu0 %v2594
      %v2781 = vpop.f32.mrf.mxu0
      %v2782 = vadd.f32 %v2682, %v2781
      %v2783 = vpop.f32.mrf.mxu0
      %v2784 = vadd.f32 %v2684, %v2783
      %2785 = vmatmul.bf16.gmra.mxu0 %v2597
      %v2786 = vpop.f32.mrf.mxu0
      %v2787 = vadd.f32 %v2687, %v2786
      %v2788 = vpop.f32.mrf.mxu0
      %v2789 = vadd.f32 %v2689, %v2788
      %2790 = vmatmul.bf16.gmra.mxu0 %v2600
      %v2791 = vpop.f32.mrf.mxu0
      %v2792 = vadd.f32 %v2692, %v2791
      %v2793 = vpop.f32.mrf.mxu0
      %v2794 = vadd.f32 %v2694, %v2793
      %2795 = vmatmul.bf16.gmra.mxu0 %v2603
      %v2796 = vpop.f32.mrf.mxu0
      %v2797 = vadd.f32 %v2697, %v2796
      %v2798 = vpop.f32.mrf.mxu0
      %v2799 = vadd.f32 %v2699, %v2798
      %2800 = vdwg.mxu0
      %s2801 = scalar_lea.vmem %s2, 24
      %v2802 = vld [vmem:[%s2801] sm:$0xf]
      %v2805 = vunpack.c.l.b16 %v2475
      %v2806 = vunpack.c.l.b16 %v2476
      %v2807 = vpack.c.b16 %v2806, %v2805
      %v2809 = vsel %vm2326, %v2807, 0
      %v2812 = vsel %vm2608, %v2802, 0
      %2814 = vmatpush.bf16.msra.mxu0 0
      %2815 = vmatpush.bf16.msra.mxu0 0
      %2816 = vmatpush.bf16.msra.mxu0 0
      %2817 = vmatpush.bf16.msra.mxu0 0
      %2818 = vmatpush.bf16.msra.mxu0 0
      %2819 = vmatpush.bf16.msra.mxu0 0
      %2820 = vmatpush.bf16.msra.mxu0 0
      %2821 = vmatpush.bf16.msra.mxu0 %v2812
      %2822 = vmatmul.bf16.gmra.mxu0 %v2564
      %v2823 = vpop.f32.mrf.mxu0
      %v2824 = vadd.f32 0.0, %v2823
      %v2825 = vpop.f32.mrf.mxu0
      %v2826 = vadd.f32 0.0, %v2825
      %2827 = vmatmul.bf16.gmra.mxu0 %v2567
      %v2828 = vpop.f32.mrf.mxu0
      %v2829 = vadd.f32 0.0, %v2828
      %v2830 = vpop.f32.mrf.mxu0
      %v2831 = vadd.f32 0.0, %v2830
      %2832 = vmatmul.bf16.gmra.mxu0 %v2570
      %v2833 = vpop.f32.mrf.mxu0
      %v2834 = vadd.f32 0.0, %v2833
      %v2835 = vpop.f32.mrf.mxu0
      %v2836 = vadd.f32 0.0, %v2835
      %2837 = vmatmul.bf16.gmra.mxu0 %v2573
      %v2838 = vpop.f32.mrf.mxu0
      %v2839 = vadd.f32 0.0, %v2838
      %v2840 = vpop.f32.mrf.mxu0
      %v2841 = vadd.f32 0.0, %v2840
      %2842 = vmatmul.bf16.gmra.mxu0 %v2576
      %v2843 = vpop.f32.mrf.mxu0
      %v2844 = vadd.f32 0.0, %v2843
      %v2845 = vpop.f32.mrf.mxu0
      %v2846 = vadd.f32 0.0, %v2845
      %2847 = vmatmul.bf16.gmra.mxu0 %v2579
      %v2848 = vpop.f32.mrf.mxu0
      %v2849 = vadd.f32 0.0, %v2848
      %v2850 = vpop.f32.mrf.mxu0
      %v2851 = vadd.f32 0.0, %v2850
      %2852 = vmatmul.bf16.gmra.mxu0 %v2582
      %v2853 = vpop.f32.mrf.mxu0
      %v2854 = vadd.f32 0.0, %v2853
      %v2855 = vpop.f32.mrf.mxu0
      %v2856 = vadd.f32 0.0, %v2855
      %2857 = vmatmul.bf16.gmra.mxu0 %v2585
      %v2858 = vpop.f32.mrf.mxu0
      %v2859 = vadd.f32 0.0, %v2858
      %v2860 = vpop.f32.mrf.mxu0
      %v2861 = vadd.f32 0.0, %v2860
      %2862 = vmatmul.bf16.gmra.mxu0 %v2588
      %v2863 = vpop.f32.mrf.mxu0
      %v2864 = vadd.f32 0.0, %v2863
      %v2865 = vpop.f32.mrf.mxu0
      %v2866 = vadd.f32 0.0, %v2865
      %2867 = vmatmul.bf16.gmra.mxu0 %v2591
      %v2868 = vpop.f32.mrf.mxu0
      %v2869 = vadd.f32 0.0, %v2868
      %v2870 = vpop.f32.mrf.mxu0
      %v2871 = vadd.f32 0.0, %v2870
      %2872 = vmatmul.bf16.gmra.mxu0 %v2594
      %v2873 = vpop.f32.mrf.mxu0
      %v2874 = vadd.f32 0.0, %v2873
      %v2875 = vpop.f32.mrf.mxu0
      %v2876 = vadd.f32 0.0, %v2875
      %2877 = vmatmul.bf16.gmra.mxu0 %v2597
      %v2878 = vpop.f32.mrf.mxu0
      %v2879 = vadd.f32 0.0, %v2878
      %v2880 = vpop.f32.mrf.mxu0
      %v2881 = vadd.f32 0.0, %v2880
      %2882 = vmatmul.bf16.gmra.mxu0 %v2600
      %v2883 = vpop.f32.mrf.mxu0
      %v2884 = vadd.f32 0.0, %v2883
      %v2885 = vpop.f32.mrf.mxu0
      %v2886 = vadd.f32 0.0, %v2885
      %2887 = vmatmul.bf16.gmra.mxu0 %v2603
      %v2888 = vpop.f32.mrf.mxu0
      %v2889 = vadd.f32 0.0, %v2888
      %v2890 = vpop.f32.mrf.mxu0
      %v2891 = vadd.f32 0.0, %v2890
      %2892 = vmatmul.bf16.gmra.mxu0 %v2606
      %v2893 = vpop.f32.mrf.mxu0
      %v2894 = vadd.f32 0.0, %v2893
      %v2895 = vpop.f32.mrf.mxu0
      %v2896 = vadd.f32 0.0, %v2895
      %2897 = vmatmul.bf16.gmra.mxu0 %v2809
      %v2898 = vpop.f32.mrf.mxu0
      %v2899 = vadd.f32 0.0, %v2898
      %v2900 = vpop.f32.mrf.mxu0
      %v2901 = vadd.f32 0.0, %v2900
      %2902 = vdwg.mxu0
      %v2903 = vadd.f32 %v2722, %v2824
      %v2904 = vadd.f32 %v2724, %v2826
      %v2905 = vadd.f32 %v2727, %v2829
      %v2906 = vadd.f32 %v2729, %v2831
      %v2907 = vadd.f32 %v2732, %v2834
      %v2908 = vadd.f32 %v2734, %v2836
      %v2909 = vadd.f32 %v2737, %v2839
      %v2910 = vadd.f32 %v2739, %v2841
      %v2911 = vadd.f32 %v2742, %v2844
      %v2912 = vadd.f32 %v2744, %v2846
      %v2913 = vadd.f32 %v2747, %v2849
      %v2914 = vadd.f32 %v2749, %v2851
      %v2915 = vadd.f32 %v2752, %v2854
      %v2916 = vadd.f32 %v2754, %v2856
      %v2917 = vadd.f32 %v2757, %v2859
      %v2918 = vadd.f32 %v2759, %v2861
      %v2919 = vadd.f32 %v2762, %v2864
      %v2920 = vadd.f32 %v2764, %v2866
      %v2921 = vadd.f32 %v2767, %v2869
      %v2922 = vadd.f32 %v2769, %v2871
      %v2923 = vadd.f32 %v2772, %v2874
      %v2924 = vadd.f32 %v2774, %v2876
      %v2925 = vadd.f32 %v2777, %v2879
      %v2926 = vadd.f32 %v2779, %v2881
      %v2927 = vadd.f32 %v2782, %v2884
      %v2928 = vadd.f32 %v2784, %v2886
      %v2929 = vadd.f32 %v2787, %v2889
      %v2930 = vadd.f32 %v2789, %v2891
      %v2931 = vadd.f32 %v2792, %v2894
      %v2932 = vadd.f32 %v2794, %v2896
      %v2933 = vadd.f32 %v2797, %v2899
      %v2934 = vadd.f32 %v2799, %v2901
      %v2935 = vld [vmem:[#allocation3 + $0x1] sm:$0xff]
      %v2936 = vld [vmem:[#allocation3 + $0x9] sm:$0xff]
      %v2937 = vld [vmem:[#allocation3 + $0x19] sm:$0xff]
      %v2938 = vld [vmem:[#allocation3 + $0x21] sm:$0xff]
      %v2939 = vld [vmem:[#allocation3 + $0x31] sm:$0xff]
      %v2940 = vld [vmem:[#allocation3 + $0x39] sm:$0xff]
      %v2941 = vld [vmem:[#allocation3 + $0x49] sm:$0xff]
      %v2942 = vld [vmem:[#allocation3 + $0x51] sm:$0xff]
      %v2943 = vld [vmem:[#allocation3 + $0x61] sm:$0xff]
      %v2944 = vld [vmem:[#allocation3 + $0x69] sm:$0xff]
      %v2945 = vld [vmem:[#allocation3 + $0x79] sm:$0xff]
      %v2946 = vld [vmem:[#allocation3 + $0x81] sm:$0xff]
      %v2947 = vld [vmem:[#allocation3 + $0x91] sm:$0xff]
      %v2948 = vld [vmem:[#allocation3 + $0x99] sm:$0xff]
      %v2949 = vld [vmem:[#allocation3 + $0xa9] sm:$0xff]
      %v2950 = vld [vmem:[#allocation3 + $0xb1] sm:$0xff]
      %v2951 = vld [vmem:[#allocation3 + $0xc1] sm:$0xff]
      %v2952 = vld [vmem:[#allocation3 + $0xc9] sm:$0xff]
      %v2953 = vld [vmem:[#allocation3 + $0xd9] sm:$0xff]
      %v2954 = vld [vmem:[#allocation3 + $0xe1] sm:$0xff]
      %v2955 = vld [vmem:[#allocation3 + $0xf1] sm:$0xff]
      %v2956 = vld [vmem:[#allocation3 + $0xf9] sm:$0xff]
      %v2957 = vld [vmem:[#allocation3 + $0x109] sm:$0xff]
      %v2958 = vld [vmem:[#allocation3 + $0x111] sm:$0xff]
      %v2959 = vld [vmem:[#allocation3 + $0x121] sm:$0xff]
      %v2960 = vld [vmem:[#allocation3 + $0x129] sm:$0xff]
      %v2961 = vld [vmem:[#allocation3 + $0x139] sm:$0xff]
      %v2962 = vld [vmem:[#allocation3 + $0x141] sm:$0xff]
      %v2963 = vld [vmem:[#allocation3 + $0x151] sm:$0xff]
      %v2964 = vld [vmem:[#allocation3 + $0x159] sm:$0xff]
      %v2965 = vld [vmem:[#allocation3 + $0x169] sm:$0xff]
      %v2966 = vld [vmem:[#allocation3 + $0x171] sm:$0xff]
      %v2967 = vld [vmem:[#allocation3 + $0x181] sm:$0xff]
      %v2968 = vld [vmem:[#allocation3 + $0x189] sm:$0xff]
      %v2969 = vld [vmem:[#allocation3 + $0x199] sm:$0xff]
      %v2970 = vld [vmem:[#allocation3 + $0x1a1] sm:$0xff]
      %v2971 = vpack.c.bf16 %v2935, %v2935
      %v2972 = vpack.c.bf16 %v2936, %v2936
      %v2973 = vpack.c.bf16 %v2937, %v2937
      %v2974 = vpack.c.bf16 %v2938, %v2938
      %v2975 = vpack.c.bf16 %v2939, %v2939
      %v2976 = vpack.c.bf16 %v2940, %v2940
      %v2977 = vpack.c.bf16 %v2941, %v2941
      %v2978 = vpack.c.bf16 %v2942, %v2942
      %v2979 = vpack.c.bf16 %v2943, %v2943
      %v2980 = vpack.c.bf16 %v2944, %v2944
      %v2981 = vpack.c.bf16 %v2945, %v2945
      %v2982 = vpack.c.bf16 %v2946, %v2946
      %v2983 = vpack.c.bf16 %v2947, %v2947
      %v2984 = vpack.c.bf16 %v2948, %v2948
      %v2985 = vpack.c.bf16 %v2949, %v2949
      %v2986 = vpack.c.bf16 %v2950, %v2950
      %v2987 = vpack.c.bf16 %v2951, %v2951
      %v2988 = vpack.c.bf16 %v2952, %v2952
      %v2989 = vpack.c.bf16 %v2953, %v2953
      %v2990 = vpack.c.bf16 %v2954, %v2954
      %v2991 = vpack.c.bf16 %v2955, %v2955
      %v2992 = vpack.c.bf16 %v2956, %v2956
      %v2993 = vpack.c.bf16 %v2957, %v2957
      %v2994 = vpack.c.bf16 %v2958, %v2958
      %v2995 = vpack.c.bf16 %v2959, %v2959
      %v2996 = vpack.c.bf16 %v2960, %v2960
      %v2997 = vpack.c.bf16 %v2961, %v2961
      %v2998 = vpack.c.bf16 %v2962, %v2962
      %v2999 = vpack.c.bf16 %v2963, %v2963
      %v3000 = vpack.c.bf16 %v2964, %v2964
      %v3001 = vpack.c.bf16 %v2965, %v2965
      %v3002 = vpack.c.bf16 %v2966, %v2966
      %v3003 = vpack.c.bf16 %v2967, %v2967
      %v3004 = vpack.c.bf16 %v2968, %v2968
      %v3005 = vpack.c.bf16 %v2969, %v2969
      %v3006 = vpack.c.bf16 %v2970, %v2970
      %s3007 = scalar_lea.vmem %s2, 4
      %v3008 = vld [vmem:[%s3007] sm:$0xf]
      %v3041 = vunpack.c.l.b16 %v2971
      %v3042 = vunpack.c.l.b16 %v2972
      %v3043 = vunpack.c.l.b16 %v2973
      %v3044 = vunpack.c.l.b16 %v2974
      %v3045 = vunpack.c.l.b16 %v2975
      %v3046 = vunpack.c.l.b16 %v2976
      %v3047 = vunpack.c.l.b16 %v2977
      %v3048 = vunpack.c.l.b16 %v2978
      %v3049 = vunpack.c.l.b16 %v2979
      %v3050 = vunpack.c.l.b16 %v2980
      %v3051 = vunpack.c.l.b16 %v2981
      %v3052 = vunpack.c.l.b16 %v2982
      %v3053 = vunpack.c.l.b16 %v2983
      %v3054 = vunpack.c.l.b16 %v2984
      %v3055 = vunpack.c.l.b16 %v2985
      %v3056 = vunpack.c.l.b16 %v2986
      %v3057 = vunpack.c.l.b16 %v2987
      %v3058 = vunpack.c.l.b16 %v2988
      %v3059 = vunpack.c.l.b16 %v2989
      %v3060 = vunpack.c.l.b16 %v2990
      %v3061 = vunpack.c.l.b16 %v2991
      %v3062 = vunpack.c.l.b16 %v2992
      %v3063 = vunpack.c.l.b16 %v2993
      %v3064 = vunpack.c.l.b16 %v2994
      %v3065 = vunpack.c.l.b16 %v2995
      %v3066 = vunpack.c.l.b16 %v2996
      %v3067 = vunpack.c.l.b16 %v2997
      %v3068 = vunpack.c.l.b16 %v2998
      %v3069 = vunpack.c.l.b16 %v2999
      %v3070 = vunpack.c.l.b16 %v3000
      %v3071 = vunpack.c.l.b16 %v3001
      %v3072 = vunpack.c.l.b16 %v3002
      %v3073 = vpack.c.b16 %v3042, %v3041
      %v3074 = vpack.c.b16 %v3044, %v3043
      %v3075 = vpack.c.b16 %v3046, %v3045
      %v3076 = vpack.c.b16 %v3048, %v3047
      %v3077 = vpack.c.b16 %v3050, %v3049
      %v3078 = vpack.c.b16 %v3052, %v3051
      %v3079 = vpack.c.b16 %v3054, %v3053
      %v3080 = vpack.c.b16 %v3056, %v3055
      %v3081 = vpack.c.b16 %v3058, %v3057
      %v3082 = vpack.c.b16 %v3060, %v3059
      %v3083 = vpack.c.b16 %v3062, %v3061
      %v3084 = vpack.c.b16 %v3064, %v3063
      %v3085 = vpack.c.b16 %v3066, %v3065
      %v3086 = vpack.c.b16 %v3068, %v3067
      %v3087 = vpack.c.b16 %v3070, %v3069
      %v3088 = vpack.c.b16 %v3072, %v3071
      %v3090 = vsel %vm2326, %v3073, 0
      %v3093 = vsel %vm2326, %v3074, 0
      %v3096 = vsel %vm2326, %v3075, 0
      %v3099 = vsel %vm2326, %v3076, 0
      %v3102 = vsel %vm2326, %v3077, 0
      %v3105 = vsel %vm2326, %v3078, 0
      %v3108 = vsel %vm2326, %v3079, 0
      %v3111 = vsel %vm2326, %v3080, 0
      %v3114 = vsel %vm2326, %v3081, 0
      %v3117 = vsel %vm2326, %v3082, 0
      %v3120 = vsel %vm2326, %v3083, 0
      %v3123 = vsel %vm2326, %v3084, 0
      %v3126 = vsel %vm2326, %v3085, 0
      %v3129 = vsel %vm2326, %v3086, 0
      %v3132 = vsel %vm2326, %v3087, 0
      %v3135 = vsel %vm2326, %v3088, 0
      %v3138 = vsel %vm2608, %v3008, 0
      %3140 = vmatpush.bf16.msra.mxu0 0
      %3141 = vmatpush.bf16.msra.mxu0 0
      %3142 = vmatpush.bf16.msra.mxu0 0
      %3143 = vmatpush.bf16.msra.mxu0 0
      %3144 = vmatpush.bf16.msra.mxu0 0
      %3145 = vmatpush.bf16.msra.mxu0 0
      %3146 = vmatpush.bf16.msra.mxu0 0
      %3147 = vmatpush.bf16.msra.mxu0 %v3138
      %3148 = vmatmul.bf16.gmra.mxu0 %v3090
      %v3149 = vpop.f32.mrf.mxu0
      %v3150 = vadd.f32 0.0, %v3149
      %v3151 = vpop.f32.mrf.mxu0
      %v3152 = vadd.f32 0.0, %v3151
      %3153 = vmatmul.bf16.gmra.mxu0 %v3093
      %v3154 = vpop.f32.mrf.mxu0
      %v3155 = vadd.f32 0.0, %v3154
      %v3156 = vpop.f32.mrf.mxu0
      %v3157 = vadd.f32 0.0, %v3156
      %3158 = vmatmul.bf16.gmra.mxu0 %v3096
      %v3159 = vpop.f32.mrf.mxu0
      %v3160 = vadd.f32 0.0, %v3159
      %v3161 = vpop.f32.mrf.mxu0
      %v3162 = vadd.f32 0.0, %v3161
      %3163 = vmatmul.bf16.gmra.mxu0 %v3099
      %v3164 = vpop.f32.mrf.mxu0
      %v3165 = vadd.f32 0.0, %v3164
      %v3166 = vpop.f32.mrf.mxu0
      %v3167 = vadd.f32 0.0, %v3166
      %3168 = vmatmul.bf16.gmra.mxu0 %v3102
      %v3169 = vpop.f32.mrf.mxu0
      %v3170 = vadd.f32 0.0, %v3169
      %v3171 = vpop.f32.mrf.mxu0
      %v3172 = vadd.f32 0.0, %v3171
      %3173 = vmatmul.bf16.gmra.mxu0 %v3105
      %v3174 = vpop.f32.mrf.mxu0
      %v3175 = vadd.f32 0.0, %v3174
      %v3176 = vpop.f32.mrf.mxu0
      %v3177 = vadd.f32 0.0, %v3176
      %3178 = vmatmul.bf16.gmra.mxu0 %v3108
      %v3179 = vpop.f32.mrf.mxu0
      %v3180 = vadd.f32 0.0, %v3179
      %v3181 = vpop.f32.mrf.mxu0
      %v3182 = vadd.f32 0.0, %v3181
      %3183 = vmatmul.bf16.gmra.mxu0 %v3111
      %v3184 = vpop.f32.mrf.mxu0
      %v3185 = vadd.f32 0.0, %v3184
      %v3186 = vpop.f32.mrf.mxu0
      %v3187 = vadd.f32 0.0, %v3186
      %3188 = vmatmul.bf16.gmra.mxu0 %v3114
      %v3189 = vpop.f32.mrf.mxu0
      %v3190 = vadd.f32 0.0, %v3189
      %v3191 = vpop.f32.mrf.mxu0
      %v3192 = vadd.f32 0.0, %v3191
      %3193 = vmatmul.bf16.gmra.mxu0 %v3117
      %v3194 = vpop.f32.mrf.mxu0
      %v3195 = vadd.f32 0.0, %v3194
      %v3196 = vpop.f32.mrf.mxu0
      %v3197 = vadd.f32 0.0, %v3196
      %3198 = vmatmul.bf16.gmra.mxu0 %v3120
      %v3199 = vpop.f32.mrf.mxu0
      %v3200 = vadd.f32 0.0, %v3199
      %v3201 = vpop.f32.mrf.mxu0
      %v3202 = vadd.f32 0.0, %v3201
      %3203 = vmatmul.bf16.gmra.mxu0 %v3123
      %v3204 = vpop.f32.mrf.mxu0
      %v3205 = vadd.f32 0.0, %v3204
      %v3206 = vpop.f32.mrf.mxu0
      %v3207 = vadd.f32 0.0, %v3206
      %3208 = vmatmul.bf16.gmra.mxu0 %v3126
      %v3209 = vpop.f32.mrf.mxu0
      %v3210 = vadd.f32 0.0, %v3209
      %v3211 = vpop.f32.mrf.mxu0
      %v3212 = vadd.f32 0.0, %v3211
      %3213 = vmatmul.bf16.gmra.mxu0 %v3129
      %v3214 = vpop.f32.mrf.mxu0
      %v3215 = vadd.f32 0.0, %v3214
      %v3216 = vpop.f32.mrf.mxu0
      %v3217 = vadd.f32 0.0, %v3216
      %3218 = vmatmul.bf16.gmra.mxu0 %v3132
      %v3219 = vpop.f32.mrf.mxu0
      %v3220 = vadd.f32 0.0, %v3219
      %v3221 = vpop.f32.mrf.mxu0
      %v3222 = vadd.f32 0.0, %v3221
      %3223 = vmatmul.bf16.gmra.mxu0 %v3135
      %v3224 = vpop.f32.mrf.mxu0
      %v3225 = vadd.f32 0.0, %v3224
      %v3226 = vpop.f32.mrf.mxu0
      %v3227 = vadd.f32 0.0, %v3226
      %3228 = vdwg.mxu0
      %v3229 = vadd.f32 %v2903, %v3150
      %v3230 = vadd.f32 %v2904, %v3152
      %v3231 = vadd.f32 %v2905, %v3155
      %v3232 = vadd.f32 %v2906, %v3157
      %v3233 = vadd.f32 %v2907, %v3160
      %v3234 = vadd.f32 %v2908, %v3162
      %v3235 = vadd.f32 %v2909, %v3165
      %v3236 = vadd.f32 %v2910, %v3167
      %v3237 = vadd.f32 %v2911, %v3170
      %v3238 = vadd.f32 %v2912, %v3172
      %v3239 = vadd.f32 %v2913, %v3175
      %v3240 = vadd.f32 %v2914, %v3177
      %v3241 = vadd.f32 %v2915, %v3180
      %v3242 = vadd.f32 %v2916, %v3182
      %v3243 = vadd.f32 %v2917, %v3185
      %v3244 = vadd.f32 %v2918, %v3187
      %v3245 = vadd.f32 %v2919, %v3190
      %v3246 = vadd.f32 %v2920, %v3192
      %v3247 = vadd.f32 %v2921, %v3195
      %v3248 = vadd.f32 %v2922, %v3197
      %v3249 = vadd.f32 %v2923, %v3200
      %v3250 = vadd.f32 %v2924, %v3202
      %v3251 = vadd.f32 %v2925, %v3205
      %v3252 = vadd.f32 %v2926, %v3207
      %v3253 = vadd.f32 %v2927, %v3210
      %v3254 = vadd.f32 %v2928, %v3212
      %v3255 = vadd.f32 %v2929, %v3215
      %v3256 = vadd.f32 %v2930, %v3217
      %v3257 = vadd.f32 %v2931, %v3220
      %v3258 = vadd.f32 %v2932, %v3222
      %v3259 = vadd.f32 %v2933, %v3225
      %v3260 = vadd.f32 %v2934, %v3227
      %s3261 = scalar_lea.vmem %s2, 16
      %v3262 = vld [vmem:[%s3261] sm:$0xf]
      %v3265 = vunpack.c.l.b16 %v3003
      %v3266 = vunpack.c.l.b16 %v3004
      %v3267 = vpack.c.b16 %v3266, %v3265
      %v3269 = vsel %vm2326, %v3267, 0
      %v3272 = vsel %vm2608, %v3262, 0
      %3274 = vmatpush.bf16.msra.mxu0 0
      %3275 = vmatpush.bf16.msra.mxu0 0
      %3276 = vmatpush.bf16.msra.mxu0 0
      %3277 = vmatpush.bf16.msra.mxu0 0
      %3278 = vmatpush.bf16.msra.mxu0 0
      %3279 = vmatpush.bf16.msra.mxu0 0
      %3280 = vmatpush.bf16.msra.mxu0 0
      %3281 = vmatpush.bf16.msra.mxu0 %v3272
      %3282 = vmatmul.bf16.gmra.mxu0 %v3093
      %v3283 = vpop.f32.mrf.mxu0
      %v3284 = vadd.f32 0.0, %v3283
      %v3285 = vpop.f32.mrf.mxu0
      %v3286 = vadd.f32 0.0, %v3285
      %3287 = vmatmul.bf16.gmra.mxu0 %v3096
      %v3288 = vpop.f32.mrf.mxu0
      %v3289 = vadd.f32 0.0, %v3288
      %v3290 = vpop.f32.mrf.mxu0
      %v3291 = vadd.f32 0.0, %v3290
      %3292 = vmatmul.bf16.gmra.mxu0 %v3099
      %v3293 = vpop.f32.mrf.mxu0
      %v3294 = vadd.f32 0.0, %v3293
      %v3295 = vpop.f32.mrf.mxu0
      %v3296 = vadd.f32 0.0, %v3295
      %3297 = vmatmul.bf16.gmra.mxu0 %v3102
      %v3298 = vpop.f32.mrf.mxu0
      %v3299 = vadd.f32 0.0, %v3298
      %v3300 = vpop.f32.mrf.mxu0
      %v3301 = vadd.f32 0.0, %v3300
      %3302 = vmatmul.bf16.gmra.mxu0 %v3105
      %v3303 = vpop.f32.mrf.mxu0
      %v3304 = vadd.f32 0.0, %v3303
      %v3305 = vpop.f32.mrf.mxu0
      %v3306 = vadd.f32 0.0, %v3305
      %3307 = vmatmul.bf16.gmra.mxu0 %v3108
      %v3308 = vpop.f32.mrf.mxu0
      %v3309 = vadd.f32 0.0, %v3308
      %v3310 = vpop.f32.mrf.mxu0
      %v3311 = vadd.f32 0.0, %v3310
      %3312 = vmatmul.bf16.gmra.mxu0 %v3111
      %v3313 = vpop.f32.mrf.mxu0
      %v3314 = vadd.f32 0.0, %v3313
      %v3315 = vpop.f32.mrf.mxu0
      %v3316 = vadd.f32 0.0, %v3315
      %3317 = vmatmul.bf16.gmra.mxu0 %v3114
      %v3318 = vpop.f32.mrf.mxu0
      %v3319 = vadd.f32 0.0, %v3318
      %v3320 = vpop.f32.mrf.mxu0
      %v3321 = vadd.f32 0.0, %v3320
      %3322 = vmatmul.bf16.gmra.mxu0 %v3117
      %v3323 = vpop.f32.mrf.mxu0
      %v3324 = vadd.f32 0.0, %v3323
      %v3325 = vpop.f32.mrf.mxu0
      %v3326 = vadd.f32 0.0, %v3325
      %3327 = vmatmul.bf16.gmra.mxu0 %v3120
      %v3328 = vpop.f32.mrf.mxu0
      %v3329 = vadd.f32 0.0, %v3328
      %v3330 = vpop.f32.mrf.mxu0
      %v3331 = vadd.f32 0.0, %v3330
      %3332 = vmatmul.bf16.gmra.mxu0 %v3123
      %v3333 = vpop.f32.mrf.mxu0
      %v3334 = vadd.f32 0.0, %v3333
      %v3335 = vpop.f32.mrf.mxu0
      %v3336 = vadd.f32 0.0, %v3335
      %3337 = vmatmul.bf16.gmra.mxu0 %v3126
      %v3338 = vpop.f32.mrf.mxu0
      %v3339 = vadd.f32 0.0, %v3338
      %v3340 = vpop.f32.mrf.mxu0
      %v3341 = vadd.f32 0.0, %v3340
      %3342 = vmatmul.bf16.gmra.mxu0 %v3129
      %v3343 = vpop.f32.mrf.mxu0
      %v3344 = vadd.f32 0.0, %v3343
      %v3345 = vpop.f32.mrf.mxu0
      %v3346 = vadd.f32 0.0, %v3345
      %3347 = vmatmul.bf16.gmra.mxu0 %v3132
      %v3348 = vpop.f32.mrf.mxu0
      %v3349 = vadd.f32 0.0, %v3348
      %v3350 = vpop.f32.mrf.mxu0
      %v3351 = vadd.f32 0.0, %v3350
      %3352 = vmatmul.bf16.gmra.mxu0 %v3135
      %v3353 = vpop.f32.mrf.mxu0
      %v3354 = vadd.f32 0.0, %v3353
      %v3355 = vpop.f32.mrf.mxu0
      %v3356 = vadd.f32 0.0, %v3355
      %3357 = vmatmul.bf16.gmra.mxu0 %v3269
      %v3358 = vpop.f32.mrf.mxu0
      %v3359 = vadd.f32 0.0, %v3358
      %v3360 = vpop.f32.mrf.mxu0
      %v3361 = vadd.f32 0.0, %v3360
      %3362 = vdwg.mxu0
      %v3363 = vadd.f32 %v3229, %v3284
      %v3364 = vadd.f32 %v3230, %v3286
      %v3365 = vadd.f32 %v3231, %v3289
      %v3366 = vadd.f32 %v3232, %v3291
      %v3367 = vadd.f32 %v3233, %v3294
      %v3368 = vadd.f32 %v3234, %v3296
      %v3369 = vadd.f32 %v3235, %v3299
      %v3370 = vadd.f32 %v3236, %v3301
      %v3371 = vadd.f32 %v3237, %v3304
      %v3372 = vadd.f32 %v3238, %v3306
      %v3373 = vadd.f32 %v3239, %v3309
      %v3374 = vadd.f32 %v3240, %v3311
      %v3375 = vadd.f32 %v3241, %v3314
      %v3376 = vadd.f32 %v3242, %v3316
      %v3377 = vadd.f32 %v3243, %v3319
      %v3378 = vadd.f32 %v3244, %v3321
      %v3379 = vadd.f32 %v3245, %v3324
      %v3380 = vadd.f32 %v3246, %v3326
      %v3381 = vadd.f32 %v3247, %v3329
      %v3382 = vadd.f32 %v3248, %v3331
      %v3383 = vadd.f32 %v3249, %v3334
      %v3384 = vadd.f32 %v3250, %v3336
      %v3385 = vadd.f32 %v3251, %v3339
      %v3386 = vadd.f32 %v3252, %v3341
      %v3387 = vadd.f32 %v3253, %v3344
      %v3388 = vadd.f32 %v3254, %v3346
      %v3389 = vadd.f32 %v3255, %v3349
      %v3390 = vadd.f32 %v3256, %v3351
      %v3391 = vadd.f32 %v3257, %v3354
      %v3392 = vadd.f32 %v3258, %v3356
      %v3393 = vadd.f32 %v3259, %v3359
      %v3394 = vadd.f32 %v3260, %v3361
      %s3395 = scalar_lea.vmem %s2, 28
      %v3396 = vld [vmem:[%s3395] sm:$0xf]
      %v3399 = vunpack.c.l.b16 %v3005
      %v3400 = vunpack.c.l.b16 %v3006
      %v3401 = vpack.c.b16 %v3400, %v3399
      %v3403 = vsel %vm2326, %v3401, 0
      %v3406 = vsel %vm2608, %v3396, 0
      %3408 = vmatpush.bf16.msra.mxu0 0
      %3409 = vmatpush.bf16.msra.mxu0 0
      %3410 = vmatpush.bf16.msra.mxu0 0
      %3411 = vmatpush.bf16.msra.mxu0 0
      %3412 = vmatpush.bf16.msra.mxu0 0
      %3413 = vmatpush.bf16.msra.mxu0 0
      %3414 = vmatpush.bf16.msra.mxu0 0
      %3415 = vmatpush.bf16.msra.mxu0 %v3406
      %3416 = vmatmul.bf16.gmra.mxu0 %v3096
      %v3417 = vpop.f32.mrf.mxu0
      %v3418 = vadd.f32 0.0, %v3417
      %v3419 = vpop.f32.mrf.mxu0
      %v3420 = vadd.f32 0.0, %v3419
      %3421 = vmatmul.bf16.gmra.mxu0 %v3099
      %v3422 = vpop.f32.mrf.mxu0
      %v3423 = vadd.f32 0.0, %v3422
      %v3424 = vpop.f32.mrf.mxu0
      %v3425 = vadd.f32 0.0, %v3424
      %3426 = vmatmul.bf16.gmra.mxu0 %v3102
      %v3427 = vpop.f32.mrf.mxu0
      %v3428 = vadd.f32 0.0, %v3427
      %v3429 = vpop.f32.mrf.mxu0
      %v3430 = vadd.f32 0.0, %v3429
      %3431 = vmatmul.bf16.gmra.mxu0 %v3105
      %v3432 = vpop.f32.mrf.mxu0
      %v3433 = vadd.f32 0.0, %v3432
      %v3434 = vpop.f32.mrf.mxu0
      %v3435 = vadd.f32 0.0, %v3434
      %3436 = vmatmul.bf16.gmra.mxu0 %v3108
      %v3437 = vpop.f32.mrf.mxu0
      %v3438 = vadd.f32 0.0, %v3437
      %v3439 = vpop.f32.mrf.mxu0
      %v3440 = vadd.f32 0.0, %v3439
      %3441 = vmatmul.bf16.gmra.mxu0 %v3111
      %v3442 = vpop.f32.mrf.mxu0
      %v3443 = vadd.f32 0.0, %v3442
      %v3444 = vpop.f32.mrf.mxu0
      %v3445 = vadd.f32 0.0, %v3444
      %3446 = vmatmul.bf16.gmra.mxu0 %v3114
      %v3447 = vpop.f32.mrf.mxu0
      %v3448 = vadd.f32 0.0, %v3447
      %v3449 = vpop.f32.mrf.mxu0
      %v3450 = vadd.f32 0.0, %v3449
      %3451 = vmatmul.bf16.gmra.mxu0 %v3117
      %v3452 = vpop.f32.mrf.mxu0
      %v3453 = vadd.f32 0.0, %v3452
      %v3454 = vpop.f32.mrf.mxu0
      %v3455 = vadd.f32 0.0, %v3454
      %3456 = vmatmul.bf16.gmra.mxu0 %v3120
      %v3457 = vpop.f32.mrf.mxu0
      %v3458 = vadd.f32 0.0, %v3457
      %v3459 = vpop.f32.mrf.mxu0
      %v3460 = vadd.f32 0.0, %v3459
      %3461 = vmatmul.bf16.gmra.mxu0 %v3123
      %v3462 = vpop.f32.mrf.mxu0
      %v3463 = vadd.f32 0.0, %v3462
      %v3464 = vpop.f32.mrf.mxu0
      %v3465 = vadd.f32 0.0, %v3464
      %3466 = vmatmul.bf16.gmra.mxu0 %v3126
      %v3467 = vpop.f32.mrf.mxu0
      %v3468 = vadd.f32 0.0, %v3467
      %v3469 = vpop.f32.mrf.mxu0
      %v3470 = vadd.f32 0.0, %v3469
      %3471 = vmatmul.bf16.gmra.mxu0 %v3129
      %v3472 = vpop.f32.mrf.mxu0
      %v3473 = vadd.f32 0.0, %v3472
      %v3474 = vpop.f32.mrf.mxu0
      %v3475 = vadd.f32 0.0, %v3474
      %3476 = vmatmul.bf16.gmra.mxu0 %v3132
      %v3477 = vpop.f32.mrf.mxu0
      %v3478 = vadd.f32 0.0, %v3477
      %v3479 = vpop.f32.mrf.mxu0
      %v3480 = vadd.f32 0.0, %v3479
      %3481 = vmatmul.bf16.gmra.mxu0 %v3135
      %v3482 = vpop.f32.mrf.mxu0
      %v3483 = vadd.f32 0.0, %v3482
      %v3484 = vpop.f32.mrf.mxu0
      %v3485 = vadd.f32 0.0, %v3484
      %3486 = vmatmul.bf16.gmra.mxu0 %v3269
      %v3487 = vpop.f32.mrf.mxu0
      %v3488 = vadd.f32 0.0, %v3487
      %v3489 = vpop.f32.mrf.mxu0
      %v3490 = vadd.f32 0.0, %v3489
      %3491 = vmatmul.bf16.gmra.mxu0 %v3403
      %v3492 = vpop.f32.mrf.mxu0
      %v3493 = vadd.f32 0.0, %v3492
      %v3494 = vpop.f32.mrf.mxu0
      %v3495 = vadd.f32 0.0, %v3494
      %3496 = vdwg.mxu0
      %v3497 = vadd.f32 %v3363, %v3418
      %v3498 = vadd.f32 %v3364, %v3420
      %v3499 = vadd.f32 %v3365, %v3423
      %v3500 = vadd.f32 %v3366, %v3425
      %v3501 = vadd.f32 %v3367, %v3428
      %v3502 = vadd.f32 %v3368, %v3430
      %v3503 = vadd.f32 %v3369, %v3433
      %v3504 = vadd.f32 %v3370, %v3435
      %v3505 = vadd.f32 %v3371, %v3438
      %v3506 = vadd.f32 %v3372, %v3440
      %v3507 = vadd.f32 %v3373, %v3443
      %v3508 = vadd.f32 %v3374, %v3445
      %v3509 = vadd.f32 %v3375, %v3448
      %v3510 = vadd.f32 %v3376, %v3450
      %v3511 = vadd.f32 %v3377, %v3453
      %v3512 = vadd.f32 %v3378, %v3455
      %v3513 = vadd.f32 %v3379, %v3458
      %v3514 = vadd.f32 %v3380, %v3460
      %v3515 = vadd.f32 %v3381, %v3463
      %v3516 = vadd.f32 %v3382, %v3465
      %v3517 = vadd.f32 %v3383, %v3468
      %v3518 = vadd.f32 %v3384, %v3470
      %v3519 = vadd.f32 %v3385, %v3473
      %v3520 = vadd.f32 %v3386, %v3475
      %v3521 = vadd.f32 %v3387, %v3478
      %v3522 = vadd.f32 %v3388, %v3480
      %v3523 = vadd.f32 %v3389, %v3483
      %v3524 = vadd.f32 %v3390, %v3485
      %v3525 = vadd.f32 %v3391, %v3488
      %v3526 = vadd.f32 %v3392, %v3490
      %v3527 = vadd.f32 %v3393, %v3493
      %v3528 = vadd.f32 %v3394, %v3495
      %v3529 = vld [vmem:[#allocation3 + $0x2] sm:$0xff]
      %v3530 = vld [vmem:[#allocation3 + $0xa] sm:$0xff]
      %v3531 = vld [vmem:[#allocation3 + $0x1a] sm:$0xff]
      %v3532 = vld [vmem:[#allocation3 + $0x22] sm:$0xff]
      %v3533 = vld [vmem:[#allocation3 + $0x32] sm:$0xff]
      %v3534 = vld [vmem:[#allocation3 + $0x3a] sm:$0xff]
      %v3535 = vld [vmem:[#allocation3 + $0x4a] sm:$0xff]
      %v3536 = vld [vmem:[#allocation3 + $0x52] sm:$0xff]
      %v3537 = vld [vmem:[#allocation3 + $0x62] sm:$0xff]
      %v3538 = vld [vmem:[#allocation3 + $0x6a] sm:$0xff]
      %v3539 = vld [vmem:[#allocation3 + $0x7a] sm:$0xff]
      %v3540 = vld [vmem:[#allocation3 + $0x82] sm:$0xff]
      %v3541 = vld [vmem:[#allocation3 + $0x92] sm:$0xff]
      %v3542 = vld [vmem:[#allocation3 + $0x9a] sm:$0xff]
      %v3543 = vld [vmem:[#allocation3 + $0xaa] sm:$0xff]
      %v3544 = vld [vmem:[#allocation3 + $0xb2] sm:$0xff]
      %v3545 = vld [vmem:[#allocation3 + $0xc2] sm:$0xff]
      %v3546 = vld [vmem:[#allocation3 + $0xca] sm:$0xff]
      %v3547 = vld [vmem:[#allocation3 + $0xda] sm:$0xff]
      %v3548 = vld [vmem:[#allocation3 + $0xe2] sm:$0xff]
      %v3549 = vld [vmem:[#allocation3 + $0xf2] sm:$0xff]
      %v3550 = vld [vmem:[#allocation3 + $0xfa] sm:$0xff]
      %v3551 = vld [vmem:[#allocation3 + $0x10a] sm:$0xff]
      %v3552 = vld [vmem:[#allocation3 + $0x112] sm:$0xff]
      %v3553 = vld [vmem:[#allocation3 + $0x122] sm:$0xff]
      %v3554 = vld [vmem:[#allocation3 + $0x12a] sm:$0xff]
      %v3555 = vld [vmem:[#allocation3 + $0x13a] sm:$0xff]
      %v3556 = vld [vmem:[#allocation3 + $0x142] sm:$0xff]
      %v3557 = vld [vmem:[#allocation3 + $0x152] sm:$0xff]
      %v3558 = vld [vmem:[#allocation3 + $0x15a] sm:$0xff]
      %v3559 = vld [vmem:[#allocation3 + $0x16a] sm:$0xff]
      %v3560 = vld [vmem:[#allocation3 + $0x172] sm:$0xff]
      %v3561 = vld [vmem:[#allocation3 + $0x182] sm:$0xff]
      %v3562 = vld [vmem:[#allocation3 + $0x18a] sm:$0xff]
      %v3563 = vld [vmem:[#allocation3 + $0x19a] sm:$0xff]
      %v3564 = vld [vmem:[#allocation3 + $0x1a2] sm:$0xff]
      %v3565 = vpack.c.bf16 %v3529, %v3529
      %v3566 = vpack.c.bf16 %v3530, %v3530
      %v3567 = vpack.c.bf16 %v3531, %v3531
      %v3568 = vpack.c.bf16 %v3532, %v3532
      %v3569 = vpack.c.bf16 %v3533, %v3533
      %v3570 = vpack.c.bf16 %v3534, %v3534
      %v3571 = vpack.c.bf16 %v3535, %v3535
      %v3572 = vpack.c.bf16 %v3536, %v3536
      %v3573 = vpack.c.bf16 %v3537, %v3537
      %v3574 = vpack.c.bf16 %v3538, %v3538
      %v3575 = vpack.c.bf16 %v3539, %v3539
      %v3576 = vpack.c.bf16 %v3540, %v3540
      %v3577 = vpack.c.bf16 %v3541, %v3541
      %v3578 = vpack.c.bf16 %v3542, %v3542
      %v3579 = vpack.c.bf16 %v3543, %v3543
      %v3580 = vpack.c.bf16 %v3544, %v3544
      %v3581 = vpack.c.bf16 %v3545, %v3545
      %v3582 = vpack.c.bf16 %v3546, %v3546
      %v3583 = vpack.c.bf16 %v3547, %v3547
      %v3584 = vpack.c.bf16 %v3548, %v3548
      %v3585 = vpack.c.bf16 %v3549, %v3549
      %v3586 = vpack.c.bf16 %v3550, %v3550
      %v3587 = vpack.c.bf16 %v3551, %v3551
      %v3588 = vpack.c.bf16 %v3552, %v3552
      %v3589 = vpack.c.bf16 %v3553, %v3553
      %v3590 = vpack.c.bf16 %v3554, %v3554
      %v3591 = vpack.c.bf16 %v3555, %v3555
      %v3592 = vpack.c.bf16 %v3556, %v3556
      %v3593 = vpack.c.bf16 %v3557, %v3557
      %v3594 = vpack.c.bf16 %v3558, %v3558
      %v3595 = vpack.c.bf16 %v3559, %v3559
      %v3596 = vpack.c.bf16 %v3560, %v3560
      %v3597 = vpack.c.bf16 %v3561, %v3561
      %v3598 = vpack.c.bf16 %v3562, %v3562
      %v3599 = vpack.c.bf16 %v3563, %v3563
      %v3600 = vpack.c.bf16 %v3564, %v3564
      %s3601 = scalar_lea.vmem %s2, 8
      %v3602 = vld [vmem:[%s3601] sm:$0xf]
      %v3635 = vunpack.c.l.b16 %v3565
      %v3636 = vunpack.c.l.b16 %v3566
      %v3637 = vunpack.c.l.b16 %v3567
      %v3638 = vunpack.c.l.b16 %v3568
      %v3639 = vunpack.c.l.b16 %v3569
      %v3640 = vunpack.c.l.b16 %v3570
      %v3641 = vunpack.c.l.b16 %v3571
      %v3642 = vunpack.c.l.b16 %v3572
      %v3643 = vunpack.c.l.b16 %v3573
      %v3644 = vunpack.c.l.b16 %v3574
      %v3645 = vunpack.c.l.b16 %v3575
      %v3646 = vunpack.c.l.b16 %v3576
      %v3647 = vunpack.c.l.b16 %v3577
      %v3648 = vunpack.c.l.b16 %v3578
      %v3649 = vunpack.c.l.b16 %v3579
      %v3650 = vunpack.c.l.b16 %v3580
      %v3651 = vunpack.c.l.b16 %v3581
      %v3652 = vunpack.c.l.b16 %v3582
      %v3653 = vunpack.c.l.b16 %v3583
      %v3654 = vunpack.c.l.b16 %v3584
      %v3655 = vunpack.c.l.b16 %v3585
      %v3656 = vunpack.c.l.b16 %v3586
      %v3657 = vunpack.c.l.b16 %v3587
      %v3658 = vunpack.c.l.b16 %v3588
      %v3659 = vunpack.c.l.b16 %v3589
      %v3660 = vunpack.c.l.b16 %v3590
      %v3661 = vunpack.c.l.b16 %v3591
      %v3662 = vunpack.c.l.b16 %v3592
      %v3663 = vunpack.c.l.b16 %v3593
      %v3664 = vunpack.c.l.b16 %v3594
      %v3665 = vunpack.c.l.b16 %v3595
      %v3666 = vunpack.c.l.b16 %v3596
      %v3667 = vpack.c.b16 %v3636, %v3635
      %v3668 = vpack.c.b16 %v3638, %v3637
      %v3669 = vpack.c.b16 %v3640, %v3639
      %v3670 = vpack.c.b16 %v3642, %v3641
      %v3671 = vpack.c.b16 %v3644, %v3643
      %v3672 = vpack.c.b16 %v3646, %v3645
      %v3673 = vpack.c.b16 %v3648, %v3647
      %v3674 = vpack.c.b16 %v3650, %v3649
      %v3675 = vpack.c.b16 %v3652, %v3651
      %v3676 = vpack.c.b16 %v3654, %v3653
      %v3677 = vpack.c.b16 %v3656, %v3655
      %v3678 = vpack.c.b16 %v3658, %v3657
      %v3679 = vpack.c.b16 %v3660, %v3659
      %v3680 = vpack.c.b16 %v3662, %v3661
      %v3681 = vpack.c.b16 %v3664, %v3663
      %v3682 = vpack.c.b16 %v3666, %v3665
      %v3684 = vsel %vm2326, %v3667, 0
      %v3687 = vsel %vm2326, %v3668, 0
      %v3690 = vsel %vm2326, %v3669, 0
      %v3693 = vsel %vm2326, %v3670, 0
      %v3696 = vsel %vm2326, %v3671, 0
      %v3699 = vsel %vm2326, %v3672, 0
      %v3702 = vsel %vm2326, %v3673, 0
      %v3705 = vsel %vm2326, %v3674, 0
      %v3708 = vsel %vm2326, %v3675, 0
      %v3711 = vsel %vm2326, %v3676, 0
      %v3714 = vsel %vm2326, %v3677, 0
      %v3717 = vsel %vm2326, %v3678, 0
      %v3720 = vsel %vm2326, %v3679, 0
      %v3723 = vsel %vm2326, %v3680, 0
      %v3726 = vsel %vm2326, %v3681, 0
      %v3729 = vsel %vm2326, %v3682, 0
      %v3732 = vsel %vm2608, %v3602, 0
      %3734 = vmatpush.bf16.msra.mxu0 0
      %3735 = vmatpush.bf16.msra.mxu0 0
      %3736 = vmatpush.bf16.msra.mxu0 0
      %3737 = vmatpush.bf16.msra.mxu0 0
      %3738 = vmatpush.bf16.msra.mxu0 0
      %3739 = vmatpush.bf16.msra.mxu0 0
      %3740 = vmatpush.bf16.msra.mxu0 0
      %3741 = vmatpush.bf16.msra.mxu0 %v3732
      %3742 = vmatmul.bf16.gmra.mxu0 %v3684
      %v3743 = vpop.f32.mrf.mxu0
      %v3744 = vadd.f32 0.0, %v3743
      %v3745 = vpop.f32.mrf.mxu0
      %v3746 = vadd.f32 0.0, %v3745
      %3747 = vmatmul.bf16.gmra.mxu0 %v3687
      %v3748 = vpop.f32.mrf.mxu0
      %v3749 = vadd.f32 0.0, %v3748
      %v3750 = vpop.f32.mrf.mxu0
      %v3751 = vadd.f32 0.0, %v3750
      %3752 = vmatmul.bf16.gmra.mxu0 %v3690
      %v3753 = vpop.f32.mrf.mxu0
      %v3754 = vadd.f32 0.0, %v3753
      %v3755 = vpop.f32.mrf.mxu0
      %v3756 = vadd.f32 0.0, %v3755
      %3757 = vmatmul.bf16.gmra.mxu0 %v3693
      %v3758 = vpop.f32.mrf.mxu0
      %v3759 = vadd.f32 0.0, %v3758
      %v3760 = vpop.f32.mrf.mxu0
      %v3761 = vadd.f32 0.0, %v3760
      %3762 = vmatmul.bf16.gmra.mxu0 %v3696
      %v3763 = vpop.f32.mrf.mxu0
      %v3764 = vadd.f32 0.0, %v3763
      %v3765 = vpop.f32.mrf.mxu0
      %v3766 = vadd.f32 0.0, %v3765
      %3767 = vmatmul.bf16.gmra.mxu0 %v3699
      %v3768 = vpop.f32.mrf.mxu0
      %v3769 = vadd.f32 0.0, %v3768
      %v3770 = vpop.f32.mrf.mxu0
      %v3771 = vadd.f32 0.0, %v3770
      %3772 = vmatmul.bf16.gmra.mxu0 %v3702
      %v3773 = vpop.f32.mrf.mxu0
      %v3774 = vadd.f32 0.0, %v3773
      %v3775 = vpop.f32.mrf.mxu0
      %v3776 = vadd.f32 0.0, %v3775
      %3777 = vmatmul.bf16.gmra.mxu0 %v3705
      %v3778 = vpop.f32.mrf.mxu0
      %v3779 = vadd.f32 0.0, %v3778
      %v3780 = vpop.f32.mrf.mxu0
      %v3781 = vadd.f32 0.0, %v3780
      %3782 = vmatmul.bf16.gmra.mxu0 %v3708
      %v3783 = vpop.f32.mrf.mxu0
      %v3784 = vadd.f32 0.0, %v3783
      %v3785 = vpop.f32.mrf.mxu0
      %v3786 = vadd.f32 0.0, %v3785
      %3787 = vmatmul.bf16.gmra.mxu0 %v3711
      %v3788 = vpop.f32.mrf.mxu0
      %v3789 = vadd.f32 0.0, %v3788
      %v3790 = vpop.f32.mrf.mxu0
      %v3791 = vadd.f32 0.0, %v3790
      %3792 = vmatmul.bf16.gmra.mxu0 %v3714
      %v3793 = vpop.f32.mrf.mxu0
      %v3794 = vadd.f32 0.0, %v3793
      %v3795 = vpop.f32.mrf.mxu0
      %v3796 = vadd.f32 0.0, %v3795
      %3797 = vmatmul.bf16.gmra.mxu0 %v3717
      %v3798 = vpop.f32.mrf.mxu0
      %v3799 = vadd.f32 0.0, %v3798
      %v3800 = vpop.f32.mrf.mxu0
      %v3801 = vadd.f32 0.0, %v3800
      %3802 = vmatmul.bf16.gmra.mxu0 %v3720
      %v3803 = vpop.f32.mrf.mxu0
      %v3804 = vadd.f32 0.0, %v3803
      %v3805 = vpop.f32.mrf.mxu0
      %v3806 = vadd.f32 0.0, %v3805
      %3807 = vmatmul.bf16.gmra.mxu0 %v3723
      %v3808 = vpop.f32.mrf.mxu0
      %v3809 = vadd.f32 0.0, %v3808
      %v3810 = vpop.f32.mrf.mxu0
      %v3811 = vadd.f32 0.0, %v3810
      %3812 = vmatmul.bf16.gmra.mxu0 %v3726
      %v3813 = vpop.f32.mrf.mxu0
      %v3814 = vadd.f32 0.0, %v3813
      %v3815 = vpop.f32.mrf.mxu0
      %v3816 = vadd.f32 0.0, %v3815
      %3817 = vmatmul.bf16.gmra.mxu0 %v3729
      %v3818 = vpop.f32.mrf.mxu0
      %v3819 = vadd.f32 0.0, %v3818
      %v3820 = vpop.f32.mrf.mxu0
      %v3821 = vadd.f32 0.0, %v3820
      %3822 = vdwg.mxu0
      %v3823 = vadd.f32 %v3497, %v3744
      %v3824 = vadd.f32 %v3498, %v3746
      %v3825 = vadd.f32 %v3499, %v3749
      %v3826 = vadd.f32 %v3500, %v3751
      %v3827 = vadd.f32 %v3501, %v3754
      %v3828 = vadd.f32 %v3502, %v3756
      %v3829 = vadd.f32 %v3503, %v3759
      %v3830 = vadd.f32 %v3504, %v3761
      %v3831 = vadd.f32 %v3505, %v3764
      %v3832 = vadd.f32 %v3506, %v3766
      %v3833 = vadd.f32 %v3507, %v3769
      %v3834 = vadd.f32 %v3508, %v3771
      %v3835 = vadd.f32 %v3509, %v3774
      %v3836 = vadd.f32 %v3510, %v3776
      %v3837 = vadd.f32 %v3511, %v3779
      %v3838 = vadd.f32 %v3512, %v3781
      %v3839 = vadd.f32 %v3513, %v3784
      %v3840 = vadd.f32 %v3514, %v3786
      %v3841 = vadd.f32 %v3515, %v3789
      %v3842 = vadd.f32 %v3516, %v3791
      %v3843 = vadd.f32 %v3517, %v3794
      %v3844 = vadd.f32 %v3518, %v3796
      %v3845 = vadd.f32 %v3519, %v3799
      %v3846 = vadd.f32 %v3520, %v3801
      %v3847 = vadd.f32 %v3521, %v3804
      %v3848 = vadd.f32 %v3522, %v3806
      %v3849 = vadd.f32 %v3523, %v3809
      %v3850 = vadd.f32 %v3524, %v3811
      %v3851 = vadd.f32 %v3525, %v3814
      %v3852 = vadd.f32 %v3526, %v3816
      %v3853 = vadd.f32 %v3527, %v3819
      %v3854 = vadd.f32 %v3528, %v3821
      %s3855 = scalar_lea.vmem %s2, 20
      %v3856 = vld [vmem:[%s3855] sm:$0xf]
      %v3859 = vunpack.c.l.b16 %v3597
      %v3860 = vunpack.c.l.b16 %v3598
      %v3861 = vpack.c.b16 %v3860, %v3859
      %v3863 = vsel %vm2326, %v3861, 0
      %v3866 = vsel %vm2608, %v3856, 0
      %3868 = vmatpush.bf16.msra.mxu0 0
      %3869 = vmatpush.bf16.msra.mxu0 0
      %3870 = vmatpush.bf16.msra.mxu0 0
      %3871 = vmatpush.bf16.msra.mxu0 0
      %3872 = vmatpush.bf16.msra.mxu0 0
      %3873 = vmatpush.bf16.msra.mxu0 0
      %3874 = vmatpush.bf16.msra.mxu0 0
      %3875 = vmatpush.bf16.msra.mxu0 %v3866
      %3876 = vmatmul.bf16.gmra.mxu0 %v3687
      %v3877 = vpop.f32.mrf.mxu0
      %v3878 = vadd.f32 0.0, %v3877
      %v3879 = vpop.f32.mrf.mxu0
      %v3880 = vadd.f32 0.0, %v3879
      %3881 = vmatmul.bf16.gmra.mxu0 %v3690
      %v3882 = vpop.f32.mrf.mxu0
      %v3883 = vadd.f32 0.0, %v3882
      %v3884 = vpop.f32.mrf.mxu0
      %v3885 = vadd.f32 0.0, %v3884
      %3886 = vmatmul.bf16.gmra.mxu0 %v3693
      %v3887 = vpop.f32.mrf.mxu0
      %v3888 = vadd.f32 0.0, %v3887
      %v3889 = vpop.f32.mrf.mxu0
      %v3890 = vadd.f32 0.0, %v3889
      %3891 = vmatmul.bf16.gmra.mxu0 %v3696
      %v3892 = vpop.f32.mrf.mxu0
      %v3893 = vadd.f32 0.0, %v3892
      %v3894 = vpop.f32.mrf.mxu0
      %v3895 = vadd.f32 0.0, %v3894
      %3896 = vmatmul.bf16.gmra.mxu0 %v3699
      %v3897 = vpop.f32.mrf.mxu0
      %v3898 = vadd.f32 0.0, %v3897
      %v3899 = vpop.f32.mrf.mxu0
      %v3900 = vadd.f32 0.0, %v3899
      %3901 = vmatmul.bf16.gmra.mxu0 %v3702
      %v3902 = vpop.f32.mrf.mxu0
      %v3903 = vadd.f32 0.0, %v3902
      %v3904 = vpop.f32.mrf.mxu0
      %v3905 = vadd.f32 0.0, %v3904
      %3906 = vmatmul.bf16.gmra.mxu0 %v3705
      %v3907 = vpop.f32.mrf.mxu0
      %v3908 = vadd.f32 0.0, %v3907
      %v3909 = vpop.f32.mrf.mxu0
      %v3910 = vadd.f32 0.0, %v3909
      %3911 = vmatmul.bf16.gmra.mxu0 %v3708
      %v3912 = vpop.f32.mrf.mxu0
      %v3913 = vadd.f32 0.0, %v3912
      %v3914 = vpop.f32.mrf.mxu0
      %v3915 = vadd.f32 0.0, %v3914
      %3916 = vmatmul.bf16.gmra.mxu0 %v3711
      %v3917 = vpop.f32.mrf.mxu0
      %v3918 = vadd.f32 0.0, %v3917
      %v3919 = vpop.f32.mrf.mxu0
      %v3920 = vadd.f32 0.0, %v3919
      %3921 = vmatmul.bf16.gmra.mxu0 %v3714
      %v3922 = vpop.f32.mrf.mxu0
      %v3923 = vadd.f32 0.0, %v3922
      %v3924 = vpop.f32.mrf.mxu0
      %v3925 = vadd.f32 0.0, %v3924
      %3926 = vmatmul.bf16.gmra.mxu0 %v3717
      %v3927 = vpop.f32.mrf.mxu0
      %v3928 = vadd.f32 0.0, %v3927
      %v3929 = vpop.f32.mrf.mxu0
      %v3930 = vadd.f32 0.0, %v3929
      %3931 = vmatmul.bf16.gmra.mxu0 %v3720
      %v3932 = vpop.f32.mrf.mxu0
      %v3933 = vadd.f32 0.0, %v3932
      %v3934 = vpop.f32.mrf.mxu0
      %v3935 = vadd.f32 0.0, %v3934
      %3936 = vmatmul.bf16.gmra.mxu0 %v3723
      %v3937 = vpop.f32.mrf.mxu0
      %v3938 = vadd.f32 0.0, %v3937
      %v3939 = vpop.f32.mrf.mxu0
      %v3940 = vadd.f32 0.0, %v3939
      %3941 = vmatmul.bf16.gmra.mxu0 %v3726
      %v3942 = vpop.f32.mrf.mxu0
      %v3943 = vadd.f32 0.0, %v3942
      %v3944 = vpop.f32.mrf.mxu0
      %v3945 = vadd.f32 0.0, %v3944
      %3946 = vmatmul.bf16.gmra.mxu0 %v3729
      %v3947 = vpop.f32.mrf.mxu0
      %v3948 = vadd.f32 0.0, %v3947
      %v3949 = vpop.f32.mrf.mxu0
      %v3950 = vadd.f32 0.0, %v3949
      %3951 = vmatmul.bf16.gmra.mxu0 %v3863
      %v3952 = vpop.f32.mrf.mxu0
      %v3953 = vadd.f32 0.0, %v3952
      %v3954 = vpop.f32.mrf.mxu0
      %v3955 = vadd.f32 0.0, %v3954
      %3956 = vdwg.mxu0
      %v3957 = vadd.f32 %v3823, %v3878
      %v3958 = vadd.f32 %v3824, %v3880
      %v3959 = vadd.f32 %v3825, %v3883
      %v3960 = vadd.f32 %v3826, %v3885
      %v3961 = vadd.f32 %v3827, %v3888
      %v3962 = vadd.f32 %v3828, %v3890
      %v3963 = vadd.f32 %v3829, %v3893
      %v3964 = vadd.f32 %v3830, %v3895
      %v3965 = vadd.f32 %v3831, %v3898
      %v3966 = vadd.f32 %v3832, %v3900
      %v3967 = vadd.f32 %v3833, %v3903
      %v3968 = vadd.f32 %v3834, %v3905
      %v3969 = vadd.f32 %v3835, %v3908
      %v3970 = vadd.f32 %v3836, %v3910
      %v3971 = vadd.f32 %v3837, %v3913
      %v3972 = vadd.f32 %v3838, %v3915
      %v3973 = vadd.f32 %v3839, %v3918
      %v3974 = vadd.f32 %v3840, %v3920
      %v3975 = vadd.f32 %v3841, %v3923
      %v3976 = vadd.f32 %v3842, %v3925
      %v3977 = vadd.f32 %v3843, %v3928
      %v3978 = vadd.f32 %v3844, %v3930
      %v3979 = vadd.f32 %v3845, %v3933
      %v3980 = vadd.f32 %v3846, %v3935
      %v3981 = vadd.f32 %v3847, %v3938
      %v3982 = vadd.f32 %v3848, %v3940
      %v3983 = vadd.f32 %v3849, %v3943
      %v3984 = vadd.f32 %v3850, %v3945
      %v3985 = vadd.f32 %v3851, %v3948
      %v3986 = vadd.f32 %v3852, %v3950
      %v3987 = vadd.f32 %v3853, %v3953
      %v3988 = vadd.f32 %v3854, %v3955
      %s3989 = scalar_lea.vmem %s2, 32
      %v3990 = vld [vmem:[%s3989] sm:$0xf]
      %v3993 = vunpack.c.l.b16 %v3599
      %v3994 = vunpack.c.l.b16 %v3600
      %v3995 = vpack.c.b16 %v3994, %v3993
      %v3997 = vsel %vm2326, %v3995, 0
      %v4000 = vsel %vm2608, %v3990, 0
      %4002 = vmatpush.bf16.msra.mxu0 0
      %4003 = vmatpush.bf16.msra.mxu0 0
      %4004 = vmatpush.bf16.msra.mxu0 0
      %4005 = vmatpush.bf16.msra.mxu0 0
      %4006 = vmatpush.bf16.msra.mxu0 0
      %4007 = vmatpush.bf16.msra.mxu0 0
      %4008 = vmatpush.bf16.msra.mxu0 0
      %4009 = vmatpush.bf16.msra.mxu0 %v4000
      %4010 = vmatmul.bf16.gmra.mxu0 %v3690
      %v4011 = vpop.f32.mrf.mxu0
      %v4012 = vadd.f32 0.0, %v4011
      %v4013 = vpop.f32.mrf.mxu0
      %v4014 = vadd.f32 0.0, %v4013
      %4015 = vmatmul.bf16.gmra.mxu0 %v3693
      %v4016 = vpop.f32.mrf.mxu0
      %v4017 = vadd.f32 0.0, %v4016
      %v4018 = vpop.f32.mrf.mxu0
      %v4019 = vadd.f32 0.0, %v4018
      %4020 = vmatmul.bf16.gmra.mxu0 %v3696
      %v4021 = vpop.f32.mrf.mxu0
      %v4022 = vadd.f32 0.0, %v4021
      %v4023 = vpop.f32.mrf.mxu0
      %v4024 = vadd.f32 0.0, %v4023
      %4025 = vmatmul.bf16.gmra.mxu0 %v3699
      %v4026 = vpop.f32.mrf.mxu0
      %v4027 = vadd.f32 0.0, %v4026
      %v4028 = vpop.f32.mrf.mxu0
      %v4029 = vadd.f32 0.0, %v4028
      %4030 = vmatmul.bf16.gmra.mxu0 %v3702
      %v4031 = vpop.f32.mrf.mxu0
      %v4032 = vadd.f32 0.0, %v4031
      %v4033 = vpop.f32.mrf.mxu0
      %v4034 = vadd.f32 0.0, %v4033
      %4035 = vmatmul.bf16.gmra.mxu0 %v3705
      %v4036 = vpop.f32.mrf.mxu0
      %v4037 = vadd.f32 0.0, %v4036
      %v4038 = vpop.f32.mrf.mxu0
      %v4039 = vadd.f32 0.0, %v4038
      %4040 = vmatmul.bf16.gmra.mxu0 %v3708
      %v4041 = vpop.f32.mrf.mxu0
      %v4042 = vadd.f32 0.0, %v4041
      %v4043 = vpop.f32.mrf.mxu0
      %v4044 = vadd.f32 0.0, %v4043
      %4045 = vmatmul.bf16.gmra.mxu0 %v3711
      %v4046 = vpop.f32.mrf.mxu0
      %v4047 = vadd.f32 0.0, %v4046
      %v4048 = vpop.f32.mrf.mxu0
      %v4049 = vadd.f32 0.0, %v4048
      %4050 = vmatmul.bf16.gmra.mxu0 %v3714
      %v4051 = vpop.f32.mrf.mxu0
      %v4052 = vadd.f32 0.0, %v4051
      %v4053 = vpop.f32.mrf.mxu0
      %v4054 = vadd.f32 0.0, %v4053
      %4055 = vmatmul.bf16.gmra.mxu0 %v3717
      %v4056 = vpop.f32.mrf.mxu0
      %v4057 = vadd.f32 0.0, %v4056
      %v4058 = vpop.f32.mrf.mxu0
      %v4059 = vadd.f32 0.0, %v4058
      %4060 = vmatmul.bf16.gmra.mxu0 %v3720
      %v4061 = vpop.f32.mrf.mxu0
      %v4062 = vadd.f32 0.0, %v4061
      %v4063 = vpop.f32.mrf.mxu0
      %v4064 = vadd.f32 0.0, %v4063
      %4065 = vmatmul.bf16.gmra.mxu0 %v3723
      %v4066 = vpop.f32.mrf.mxu0
      %v4067 = vadd.f32 0.0, %v4066
      %v4068 = vpop.f32.mrf.mxu0
      %v4069 = vadd.f32 0.0, %v4068
      %4070 = vmatmul.bf16.gmra.mxu0 %v3726
      %v4071 = vpop.f32.mrf.mxu0
      %v4072 = vadd.f32 0.0, %v4071
      %v4073 = vpop.f32.mrf.mxu0
      %v4074 = vadd.f32 0.0, %v4073
      %4075 = vmatmul.bf16.gmra.mxu0 %v3729
      %v4076 = vpop.f32.mrf.mxu0
      %v4077 = vadd.f32 0.0, %v4076
      %v4078 = vpop.f32.mrf.mxu0
      %v4079 = vadd.f32 0.0, %v4078
      %4080 = vmatmul.bf16.gmra.mxu0 %v3863
      %v4081 = vpop.f32.mrf.mxu0
      %v4082 = vadd.f32 0.0, %v4081
      %v4083 = vpop.f32.mrf.mxu0
      %v4084 = vadd.f32 0.0, %v4083
      %4085 = vmatmul.bf16.gmra.mxu0 %v3997
      %v4086 = vpop.f32.mrf.mxu0
      %v4087 = vadd.f32 0.0, %v4086
      %v4088 = vpop.f32.mrf.mxu0
      %v4089 = vadd.f32 0.0, %v4088
      %4090 = vdwg.mxu0
      %v4091 = vadd.f32 %v3957, %v4012
      %v4092 = vadd.f32 %v3958, %v4014
      %v4093 = vadd.f32 %v3959, %v4017
      %v4094 = vadd.f32 %v3960, %v4019
      %v4095 = vadd.f32 %v3961, %v4022
      %v4096 = vadd.f32 %v3962, %v4024
      %v4097 = vadd.f32 %v3963, %v4027
      %v4098 = vadd.f32 %v3964, %v4029
      %v4099 = vadd.f32 %v3965, %v4032
      %v4100 = vadd.f32 %v3966, %v4034
      %v4101 = vadd.f32 %v3967, %v4037
      %v4102 = vadd.f32 %v3968, %v4039
      %v4103 = vadd.f32 %v3969, %v4042
      %v4104 = vadd.f32 %v3970, %v4044
      %v4105 = vadd.f32 %v3971, %v4047
      %v4106 = vadd.f32 %v3972, %v4049
      %v4107 = vadd.f32 %v3973, %v4052
      %v4108 = vadd.f32 %v3974, %v4054
      %v4109 = vadd.f32 %v3975, %v4057
      %v4110 = vadd.f32 %v3976, %v4059
      %v4111 = vadd.f32 %v3977, %v4062
      %v4112 = vadd.f32 %v3978, %v4064
      %v4113 = vadd.f32 %v3979, %v4067
      %v4114 = vadd.f32 %v3980, %v4069
      %v4115 = vadd.f32 %v3981, %v4072
      %v4116 = vadd.f32 %v3982, %v4074
      %v4117 = vadd.f32 %v3983, %v4077
      %v4118 = vadd.f32 %v3984, %v4079
      %v4119 = vadd.f32 %v3985, %v4082
      %v4120 = vadd.f32 %v3986, %v4084
      %v4121 = vadd.f32 %v3987, %v4087
      %v4122 = vadd.f32 %v3988, %v4089
      %v4123 = vld [vmem:[%s6] sm:$0x1]
      %v4125 = vperm.slane %v4123, 0
      %v4127 = vmul.f32 %v4091, %v4125
      %v4128 = vmul.f32 %v4092, %v4125
      %v4129 = vmul.f32 %v4093, %v4125
      %v4130 = vmul.f32 %v4094, %v4125
      %v4131 = vmul.f32 %v4095, %v4125
      %v4132 = vmul.f32 %v4096, %v4125
      %v4133 = vmul.f32 %v4097, %v4125
      %v4134 = vmul.f32 %v4098, %v4125
      %v4135 = vmul.f32 %v4099, %v4125
      %v4136 = vmul.f32 %v4100, %v4125
      %v4137 = vmul.f32 %v4101, %v4125
      %v4138 = vmul.f32 %v4102, %v4125
      %v4139 = vmul.f32 %v4103, %v4125
      %v4140 = vmul.f32 %v4104, %v4125
      %v4141 = vmul.f32 %v4105, %v4125
      %v4142 = vmul.f32 %v4106, %v4125
      %v4143 = vmul.f32 %v4107, %v4125
      %v4144 = vmul.f32 %v4108, %v4125
      %v4145 = vmul.f32 %v4109, %v4125
      %v4146 = vmul.f32 %v4110, %v4125
      %v4147 = vmul.f32 %v4111, %v4125
      %v4148 = vmul.f32 %v4112, %v4125
      %v4149 = vmul.f32 %v4113, %v4125
      %v4150 = vmul.f32 %v4114, %v4125
      %v4151 = vmul.f32 %v4115, %v4125
      %v4152 = vmul.f32 %v4116, %v4125
      %v4153 = vmul.f32 %v4117, %v4125
      %v4154 = vmul.f32 %v4118, %v4125
      %v4155 = vmul.f32 %v4119, %v4125
      %v4156 = vmul.f32 %v4120, %v4125
      %v4157 = vmul.f32 %v4121, %v4125
      %v4158 = vmul.f32 %v4122, %v4125
      %v4159 = vld [vmem:[%s7] sm:$0x1]
      %v4161 = vperm.slane %v4159, 0
      %v4163 = vadd.f32 %v4127, %v4161
      %v4164 = vadd.f32 %v4128, %v4161
      %v4165 = vadd.f32 %v4129, %v4161
      %v4166 = vadd.f32 %v4130, %v4161
      %v4167 = vadd.f32 %v4131, %v4161
      %v4168 = vadd.f32 %v4132, %v4161
      %v4169 = vadd.f32 %v4133, %v4161
      %v4170 = vadd.f32 %v4134, %v4161
      %v4171 = vadd.f32 %v4135, %v4161
      %v4172 = vadd.f32 %v4136, %v4161
      %v4173 = vadd.f32 %v4137, %v4161
      %v4174 = vadd.f32 %v4138, %v4161
      %v4175 = vadd.f32 %v4139, %v4161
      %v4176 = vadd.f32 %v4140, %v4161
      %v4177 = vadd.f32 %v4141, %v4161
      %v4178 = vadd.f32 %v4142, %v4161
      %v4179 = vadd.f32 %v4143, %v4161
      %v4180 = vadd.f32 %v4144, %v4161
      %v4181 = vadd.f32 %v4145, %v4161
      %v4182 = vadd.f32 %v4146, %v4161
      %v4183 = vadd.f32 %v4147, %v4161
      %v4184 = vadd.f32 %v4148, %v4161
      %v4185 = vadd.f32 %v4149, %v4161
      %v4186 = vadd.f32 %v4150, %v4161
      %v4187 = vadd.f32 %v4151, %v4161
      %v4188 = vadd.f32 %v4152, %v4161
      %v4189 = vadd.f32 %v4153, %v4161
      %v4190 = vadd.f32 %v4154, %v4161
      %v4191 = vadd.f32 %v4155, %v4161
      %v4192 = vadd.f32 %v4156, %v4161
      %v4193 = vadd.f32 %v4157, %v4161
      %v4194 = vadd.f32 %v4158, %v4161
      %v4195 = vld [vmem:[%s3] sm:$0x3]
      %v4228 = vunpack.c.l.b16 %v361
      %v4229 = vunpack.c.l.b16 %v362
      %v4230 = vunpack.c.l.b16 %v363
      %v4231 = vunpack.c.l.b16 %v364
      %v4232 = vunpack.c.l.b16 %v365
      %v4233 = vunpack.c.l.b16 %v366
      %v4234 = vunpack.c.l.b16 %v367
      %v4235 = vunpack.c.l.b16 %v368
      %v4236 = vunpack.c.l.b16 %v369
      %v4237 = vunpack.c.l.b16 %v370
      %v4238 = vunpack.c.l.b16 %v371
      %v4239 = vunpack.c.l.b16 %v372
      %v4240 = vunpack.c.l.b16 %v373
      %v4241 = vunpack.c.l.b16 %v374
      %v4242 = vunpack.c.l.b16 %v375
      %v4243 = vunpack.c.l.b16 %v376
      %v4244 = vunpack.c.l.b16 %v377
      %v4245 = vunpack.c.l.b16 %v378
      %v4246 = vunpack.c.l.b16 %v379
      %v4247 = vunpack.c.l.b16 %v380
      %v4248 = vunpack.c.l.b16 %v381
      %v4249 = vunpack.c.l.b16 %v382
      %v4250 = vunpack.c.l.b16 %v383
      %v4251 = vunpack.c.l.b16 %v384
      %v4252 = vunpack.c.l.b16 %v385
      %v4253 = vunpack.c.l.b16 %v386
      %v4254 = vunpack.c.l.b16 %v387
      %v4255 = vunpack.c.l.b16 %v388
      %v4256 = vunpack.c.l.b16 %v389
      %v4257 = vunpack.c.l.b16 %v390
      %v4258 = vunpack.c.l.b16 %v391
      %v4259 = vunpack.c.l.b16 %v392
      %v4260 = vpack.c.b16 %v4229, %v4228
      %v4261 = vpack.c.b16 %v4231, %v4230
      %v4262 = vpack.c.b16 %v4233, %v4232
      %v4263 = vpack.c.b16 %v4235, %v4234
      %v4264 = vpack.c.b16 %v4237, %v4236
      %v4265 = vpack.c.b16 %v4239, %v4238
      %v4266 = vpack.c.b16 %v4241, %v4240
      %v4267 = vpack.c.b16 %v4243, %v4242
      %v4268 = vpack.c.b16 %v4245, %v4244
      %v4269 = vpack.c.b16 %v4247, %v4246
      %v4270 = vpack.c.b16 %v4249, %v4248
      %v4271 = vpack.c.b16 %v4251, %v4250
      %v4272 = vpack.c.b16 %v4253, %v4252
      %v4273 = vpack.c.b16 %v4255, %v4254
      %v4274 = vpack.c.b16 %v4257, %v4256
      %v4275 = vpack.c.b16 %v4259, %v4258
      %v4277 = vsel %vm393, %v4260, 0
      %v4280 = vsel %vm393, %v4261, 0
      %v4283 = vsel %vm393, %v4262, 0
      %v4286 = vsel %vm393, %v4263, 0
      %v4289 = vsel %vm393, %v4264, 0
      %v4292 = vsel %vm393, %v4265, 0
      %v4295 = vsel %vm393, %v4266, 0
      %v4298 = vsel %vm393, %v4267, 0
      %v4301 = vsel %vm393, %v4268, 0
      %v4304 = vsel %vm393, %v4269, 0
      %v4307 = vsel %vm393, %v4270, 0
      %v4310 = vsel %vm393, %v4271, 0
      %v4313 = vsel %vm393, %v4272, 0
      %v4316 = vsel %vm393, %v4273, 0
      %v4319 = vsel %vm393, %v4274, 0
      %v4322 = vsel %vm393, %v4275, 0
      %v4325 = vsel %vm707, %v4195, 0
      %4327 = vmatpush.bf16.msra.mxu0 0
      %4328 = vmatpush.bf16.msra.mxu0 0
      %4329 = vmatpush.bf16.msra.mxu0 0
      %4330 = vmatpush.bf16.msra.mxu0 0
      %4331 = vmatpush.bf16.msra.mxu0 0
      %4332 = vmatpush.bf16.msra.mxu0 0
      %4333 = vmatpush.bf16.msra.mxu0 0
      %4334 = vmatpush.bf16.msra.mxu0 %v4325
      %4335 = vmatmul.bf16.gmra.mxu0 %v4277
      %v4336 = vpop.f32.mrf.mxu0
      %v4337 = vadd.f32 0.0, %v4336
      %v4338 = vpop.f32.mrf.mxu0
      %v4339 = vadd.f32 0.0, %v4338
      %4340 = vmatmul.bf16.gmra.mxu0 %v4280
      %v4341 = vpop.f32.mrf.mxu0
      %v4342 = vadd.f32 0.0, %v4341
      %v4343 = vpop.f32.mrf.mxu0
      %v4344 = vadd.f32 0.0, %v4343
      %4345 = vmatmul.bf16.gmra.mxu0 %v4283
      %v4346 = vpop.f32.mrf.mxu0
      %v4347 = vadd.f32 0.0, %v4346
      %v4348 = vpop.f32.mrf.mxu0
      %v4349 = vadd.f32 0.0, %v4348
      %4350 = vmatmul.bf16.gmra.mxu0 %v4286
      %v4351 = vpop.f32.mrf.mxu0
      %v4352 = vadd.f32 0.0, %v4351
      %v4353 = vpop.f32.mrf.mxu0
      %v4354 = vadd.f32 0.0, %v4353
      %4355 = vmatmul.bf16.gmra.mxu0 %v4289
      %v4356 = vpop.f32.mrf.mxu0
      %v4357 = vadd.f32 0.0, %v4356
      %v4358 = vpop.f32.mrf.mxu0
      %v4359 = vadd.f32 0.0, %v4358
      %4360 = vmatmul.bf16.gmra.mxu0 %v4292
      %v4361 = vpop.f32.mrf.mxu0
      %v4362 = vadd.f32 0.0, %v4361
      %v4363 = vpop.f32.mrf.mxu0
      %v4364 = vadd.f32 0.0, %v4363
      %4365 = vmatmul.bf16.gmra.mxu0 %v4295
      %v4366 = vpop.f32.mrf.mxu0
      %v4367 = vadd.f32 0.0, %v4366
      %v4368 = vpop.f32.mrf.mxu0
      %v4369 = vadd.f32 0.0, %v4368
      %4370 = vmatmul.bf16.gmra.mxu0 %v4298
      %v4371 = vpop.f32.mrf.mxu0
      %v4372 = vadd.f32 0.0, %v4371
      %v4373 = vpop.f32.mrf.mxu0
      %v4374 = vadd.f32 0.0, %v4373
      %4375 = vmatmul.bf16.gmra.mxu0 %v4301
      %v4376 = vpop.f32.mrf.mxu0
      %v4377 = vadd.f32 0.0, %v4376
      %v4378 = vpop.f32.mrf.mxu0
      %v4379 = vadd.f32 0.0, %v4378
      %4380 = vmatmul.bf16.gmra.mxu0 %v4304
      %v4381 = vpop.f32.mrf.mxu0
      %v4382 = vadd.f32 0.0, %v4381
      %v4383 = vpop.f32.mrf.mxu0
      %v4384 = vadd.f32 0.0, %v4383
      %4385 = vmatmul.bf16.gmra.mxu0 %v4307
      %v4386 = vpop.f32.mrf.mxu0
      %v4387 = vadd.f32 0.0, %v4386
      %v4388 = vpop.f32.mrf.mxu0
      %v4389 = vadd.f32 0.0, %v4388
      %4390 = vmatmul.bf16.gmra.mxu0 %v4310
      %v4391 = vpop.f32.mrf.mxu0
      %v4392 = vadd.f32 0.0, %v4391
      %v4393 = vpop.f32.mrf.mxu0
      %v4394 = vadd.f32 0.0, %v4393
      %4395 = vmatmul.bf16.gmra.mxu0 %v4313
      %v4396 = vpop.f32.mrf.mxu0
      %v4397 = vadd.f32 0.0, %v4396
      %v4398 = vpop.f32.mrf.mxu0
      %v4399 = vadd.f32 0.0, %v4398
      %4400 = vmatmul.bf16.gmra.mxu0 %v4316
      %v4401 = vpop.f32.mrf.mxu0
      %v4402 = vadd.f32 0.0, %v4401
      %v4403 = vpop.f32.mrf.mxu0
      %v4404 = vadd.f32 0.0, %v4403
      %4405 = vmatmul.bf16.gmra.mxu0 %v4319
      %v4406 = vpop.f32.mrf.mxu0
      %v4407 = vadd.f32 0.0, %v4406
      %v4408 = vpop.f32.mrf.mxu0
      %v4409 = vadd.f32 0.0, %v4408
      %4410 = vmatmul.bf16.gmra.mxu0 %v4322
      %v4411 = vpop.f32.mrf.mxu0
      %v4412 = vadd.f32 0.0, %v4411
      %v4413 = vpop.f32.mrf.mxu0
      %v4414 = vadd.f32 0.0, %v4413
      %4415 = vdwg.mxu0
      %v4416 = vld [vmem:[%s8] sm:$0x1]
      %v4418 = vperm.slane %v4416, 0
      %v4420 = vmul.f32 %v4337, %v4418
      %v4421 = vmul.f32 %v4339, %v4418
      %v4422 = vmul.f32 %v4342, %v4418
      %v4423 = vmul.f32 %v4344, %v4418
      %v4424 = vmul.f32 %v4347, %v4418
      %v4425 = vmul.f32 %v4349, %v4418
      %v4426 = vmul.f32 %v4352, %v4418
      %v4427 = vmul.f32 %v4354, %v4418
      %v4428 = vmul.f32 %v4357, %v4418
      %v4429 = vmul.f32 %v4359, %v4418
      %v4430 = vmul.f32 %v4362, %v4418
      %v4431 = vmul.f32 %v4364, %v4418
      %v4432 = vmul.f32 %v4367, %v4418
      %v4433 = vmul.f32 %v4369, %v4418
      %v4434 = vmul.f32 %v4372, %v4418
      %v4435 = vmul.f32 %v4374, %v4418
      %v4436 = vmul.f32 %v4377, %v4418
      %v4437 = vmul.f32 %v4379, %v4418
      %v4438 = vmul.f32 %v4382, %v4418
      %v4439 = vmul.f32 %v4384, %v4418
      %v4440 = vmul.f32 %v4387, %v4418
      %v4441 = vmul.f32 %v4389, %v4418
      %v4442 = vmul.f32 %v4392, %v4418
      %v4443 = vmul.f32 %v4394, %v4418
      %v4444 = vmul.f32 %v4397, %v4418
      %v4445 = vmul.f32 %v4399, %v4418
      %v4446 = vmul.f32 %v4402, %v4418
      %v4447 = vmul.f32 %v4404, %v4418
      %v4448 = vmul.f32 %v4407, %v4418
      %v4449 = vmul.f32 %v4409, %v4418
      %v4450 = vmul.f32 %v4412, %v4418
      %v4451 = vmul.f32 %v4414, %v4418
      %v4452 = vld [vmem:[%s9] sm:$0x1]
      %v4454 = vperm.slane %v4452, 0
      %v4456 = vadd.f32 %v4420, %v4454
      %v4457 = vadd.f32 %v4421, %v4454
      %v4458 = vadd.f32 %v4422, %v4454
      %v4459 = vadd.f32 %v4423, %v4454
      %v4460 = vadd.f32 %v4424, %v4454
      %v4461 = vadd.f32 %v4425, %v4454
      %v4462 = vadd.f32 %v4426, %v4454
      %v4463 = vadd.f32 %v4427, %v4454
      %v4464 = vadd.f32 %v4428, %v4454
      %v4465 = vadd.f32 %v4429, %v4454
      %v4466 = vadd.f32 %v4430, %v4454
      %v4467 = vadd.f32 %v4431, %v4454
      %v4468 = vadd.f32 %v4432, %v4454
      %v4469 = vadd.f32 %v4433, %v4454
      %v4470 = vadd.f32 %v4434, %v4454
      %v4471 = vadd.f32 %v4435, %v4454
      %v4472 = vadd.f32 %v4436, %v4454
      %v4473 = vadd.f32 %v4437, %v4454
      %v4474 = vadd.f32 %v4438, %v4454
      %v4475 = vadd.f32 %v4439, %v4454
      %v4476 = vadd.f32 %v4440, %v4454
      %v4477 = vadd.f32 %v4441, %v4454
      %v4478 = vadd.f32 %v4442, %v4454
      %v4479 = vadd.f32 %v4443, %v4454
      %v4480 = vadd.f32 %v4444, %v4454
      %v4481 = vadd.f32 %v4445, %v4454
      %v4482 = vadd.f32 %v4446, %v4454
      %v4483 = vadd.f32 %v4447, %v4454
      %v4484 = vadd.f32 %v4448, %v4454
      %v4485 = vadd.f32 %v4449, %v4454
      %v4486 = vadd.f32 %v4450, %v4454
      %v4487 = vadd.f32 %v4451, %v4454
      %v4488 = vadd.f32 %v4163, %v4456
      %v4489 = vadd.f32 %v4164, %v4457
      %v4490 = vadd.f32 %v4165, %v4458
      %v4491 = vadd.f32 %v4166, %v4459
      %v4492 = vadd.f32 %v4167, %v4460
      %v4493 = vadd.f32 %v4168, %v4461
      %v4494 = vadd.f32 %v4169, %v4462
      %v4495 = vadd.f32 %v4170, %v4463
      %v4496 = vadd.f32 %v4171, %v4464
      %v4497 = vadd.f32 %v4172, %v4465
      %v4498 = vadd.f32 %v4173, %v4466
      %v4499 = vadd.f32 %v4174, %v4467
      %v4500 = vadd.f32 %v4175, %v4468
      %v4501 = vadd.f32 %v4176, %v4469
      %v4502 = vadd.f32 %v4177, %v4470
      %v4503 = vadd.f32 %v4178, %v4471
      %v4504 = vadd.f32 %v4179, %v4472
      %v4505 = vadd.f32 %v4180, %v4473
      %v4506 = vadd.f32 %v4181, %v4474
      %v4507 = vadd.f32 %v4182, %v4475
      %v4508 = vadd.f32 %v4183, %v4476
      %v4509 = vadd.f32 %v4184, %v4477
      %v4510 = vadd.f32 %v4185, %v4478
      %v4511 = vadd.f32 %v4186, %v4479
      %v4512 = vadd.f32 %v4187, %v4480
      %v4513 = vadd.f32 %v4188, %v4481
      %v4514 = vadd.f32 %v4189, %v4482
      %v4515 = vadd.f32 %v4190, %v4483
      %v4516 = vadd.f32 %v4191, %v4484
      %v4517 = vadd.f32 %v4192, %v4485
      %v4518 = vadd.f32 %v4193, %v4486
      %v4519 = vadd.f32 %v4194, %v4487
      %v4520 = vmax.f32 %v4488, 0.0
      %v4521 = vmax.f32 %v4489, 0.0
      %v4522 = vmax.f32 %v4490, 0.0
      %v4523 = vmax.f32 %v4491, 0.0
      %v4524 = vmax.f32 %v4492, 0.0
      %v4525 = vmax.f32 %v4493, 0.0
      %v4526 = vmax.f32 %v4494, 0.0
      %v4527 = vmax.f32 %v4495, 0.0
      %v4528 = vmax.f32 %v4496, 0.0
      %v4529 = vmax.f32 %v4497, 0.0
      %v4530 = vmax.f32 %v4498, 0.0
      %v4531 = vmax.f32 %v4499, 0.0
      %v4532 = vmax.f32 %v4500, 0.0
      %v4533 = vmax.f32 %v4501, 0.0
      %v4534 = vmax.f32 %v4502, 0.0
      %v4535 = vmax.f32 %v4503, 0.0
      %v4536 = vmax.f32 %v4504, 0.0
      %v4537 = vmax.f32 %v4505, 0.0
      %v4538 = vmax.f32 %v4506, 0.0
      %v4539 = vmax.f32 %v4507, 0.0
      %v4540 = vmax.f32 %v4508, 0.0
      %v4541 = vmax.f32 %v4509, 0.0
      %v4542 = vmax.f32 %v4510, 0.0
      %v4543 = vmax.f32 %v4511, 0.0
      %v4544 = vmax.f32 %v4512, 0.0
      %v4545 = vmax.f32 %v4513, 0.0
      %v4546 = vmax.f32 %v4514, 0.0
      %v4547 = vmax.f32 %v4515, 0.0
      %v4548 = vmax.f32 %v4516, 0.0
      %v4549 = vmax.f32 %v4517, 0.0
      %v4550 = vmax.f32 %v4518, 0.0
      %v4551 = vmax.f32 %v4519, 0.0
      %4552 = vst.msk [vmem:[%s359] sm:$0xff] %vm2326, %v4520
      %4553 = vst.msk [vmem:[%s359 + $0x8] sm:$0xff] %vm2326, %v4521
      %4554 = vst.msk [vmem:[%s359 + $0x10] sm:$0xff] %vm2326, %v4522
      %4555 = vst.msk [vmem:[%s359 + $0x18] sm:$0xff] %vm2326, %v4523
      %4556 = vst.msk [vmem:[%s359 + $0x20] sm:$0xff] %vm2326, %v4524
      %4557 = vst.msk [vmem:[%s359 + $0x28] sm:$0xff] %vm2326, %v4525
      %4558 = vst.msk [vmem:[%s359 + $0x30] sm:$0xff] %vm2326, %v4526
      %4559 = vst.msk [vmem:[%s359 + $0x38] sm:$0xff] %vm2326, %v4527
      %4560 = vst.msk [vmem:[%s359 + $0x40] sm:$0xff] %vm2326, %v4528
      %4561 = vst.msk [vmem:[%s359 + $0x48] sm:$0xff] %vm2326, %v4529
      %4562 = vst.msk [vmem:[%s359 + $0x50] sm:$0xff] %vm2326, %v4530
      %4563 = vst.msk [vmem:[%s359 + $0x58] sm:$0xff] %vm2326, %v4531
      %4564 = vst.msk [vmem:[%s359 + $0x60] sm:$0xff] %vm2326, %v4532
      %4565 = vst.msk [vmem:[%s359 + $0x68] sm:$0xff] %vm2326, %v4533
      %4566 = vst.msk [vmem:[%s359 + $0x70] sm:$0xff] %vm2326, %v4534
      %4567 = vst.msk [vmem:[%s359 + $0x78] sm:$0xff] %vm2326, %v4535
      %4568 = vst.msk [vmem:[%s359 + $0x80] sm:$0xff] %vm2326, %v4536
      %4569 = vst.msk [vmem:[%s359 + $0x88] sm:$0xff] %vm2326, %v4537
      %4570 = vst.msk [vmem:[%s359 + $0x90] sm:$0xff] %vm2326, %v4538
      %4571 = vst.msk [vmem:[%s359 + $0x98] sm:$0xff] %vm2326, %v4539
      %4572 = vst.msk [vmem:[%s359 + $0xa0] sm:$0xff] %vm2326, %v4540
      %4573 = vst.msk [vmem:[%s359 + $0xa8] sm:$0xff] %vm2326, %v4541
      %4574 = vst.msk [vmem:[%s359 + $0xb0] sm:$0xff] %vm2326, %v4542
      %4575 = vst.msk [vmem:[%s359 + $0xb8] sm:$0xff] %vm2326, %v4543
      %4576 = vst.msk [vmem:[%s359 + $0xc0] sm:$0xff] %vm2326, %v4544
      %4577 = vst.msk [vmem:[%s359 + $0xc8] sm:$0xff] %vm2326, %v4545
      %4578 = vst.msk [vmem:[%s359 + $0xd0] sm:$0xff] %vm2326, %v4546
      %4579 = vst.msk [vmem:[%s359 + $0xd8] sm:$0xff] %vm2326, %v4547
      %4580 = vst.msk [vmem:[%s359 + $0xe0] sm:$0xff] %vm2326, %v4548
      %4581 = vst.msk [vmem:[%s359 + $0xe8] sm:$0xff] %vm2326, %v4549
      %4582 = vst.msk [vmem:[%s359 + $0xf0] sm:$0xff] %vm2326, %v4550
      %4583 = vst.msk [vmem:[%s359 + $0xf8] sm:$0xff] %vm2326, %v4551
      %p4584 = scmp.lt.s32.totalorder %s21, 1
      %s4585 = scalar_select %p4584, %s21, 1
      %s4586 = smul.addr %s4585, 32
      %s4587 = smul.addr %s4586, 8
      %s4588 = scalar_lea.vmem %s10, %s4587
      // Predicated region
      $region61: #{tpu_custom_call.1} parent=59 // pred_check
        %p4589 = pneg %p254
      $region62: #{tpu_custom_call.1} parent=59 // pred_check_branch
        %4591 = sbr.rel (%p4589) target = $region64
      $region63: #{tpu_custom_call.1} parent=59 // pred_region
        _
      $region64: #{tpu_custom_call.1} parent=59 // pred_fallthru
        _
    $region60: #{tpu_custom_call.1} parent=5 // pred_fallthru
      _
    %p4592 = scmp.le.s32.totalorder 2, %s16
    // Predicated region
    $region65: #{tpu_custom_call.1} parent=5 // pred_check
      %p4593 = pneg %p4592
    $region66: #{tpu_custom_call.1} parent=5 // pred_check_branch
      %4595 = sbr.rel (%p4593) target = $region68
    $region67: #{tpu_custom_call.1} parent=5 // pred_region
      %s4596 = ssub.s32 %s16, 2
      // Predicated region
      $region69: #{tpu_custom_call.1} parent=67 // pred_check
        %p4597 = pneg %p260
      $region70: #{tpu_custom_call.1} parent=67 // pred_check_branch
        %4599 = sbr.rel (%p4597) target = $region72
      $region71: #{tpu_custom_call.1} parent=67 // pred_region
        %p4600 = scmp.lt.s32.totalorder %s22, 1
        %s4601 = scalar_select %p4600, %s22, 1
        %s4602 = smul.addr %s4601, 32
        %s4603 = smul.addr %s4602, 8
        %s4604 = scalar_lea.vmem %s10, %s4603
      $region72: #{tpu_custom_call.1} parent=67 // pred_fallthru
        _
    $region68: #{tpu_custom_call.1} parent=5 // pred_fallthru
      _
  $region6: #{tpu_custom_call.1} parent=0 // loop_footer
    %s20 = sadd.s32 1, %s16
  $region7: #{tpu_custom_call.1} parent=0 // loop_footer_branch
    %15 = sbr.rel target = $region3
  $region8: #{tpu_custom_call.1} parent=0 // loop_exit
    _

</llo_original>
